<compile_context>
chip_gen: v7x
topology: tpu7x:2x2x1
jax: 0.10.0
libtpu: 0.0.40
codegen_flags: <defaults>
</compile_context>

<pallas_src>
import functools
import math

import jax
import jax.numpy as jnp
from jax import lax
from jax.experimental import pallas as pl
from jax.experimental.pallas import tpu as pltpu

_VMEM_LIMIT = 48 * 1024 * 1024
CNUM = 32
N_IN = 5


# ----------------------------------------------------------------------------
# layer configs (mirror the PyTorch constructor, including get_pad)
# ----------------------------------------------------------------------------
def get_pad(in_, ksize, stride, atrous=1):
    out_ = math.ceil(float(in_) / stride)
    return int(((out_ - 1) * stride + atrous * (ksize - 1) + 1 - in_) / 2)


def GC(cin, cout, k, stride, pad, dil=1, act=True, deconv=False):
    return dict(cin=cin, cout=cout, k=k, stride=stride, pad=pad, dil=dil,
                act=act, deconv=deconv)


def GDC(cin, cout, k, stride, pad, dil=1, act=True):
    return GC(cin, cout, k, stride, pad, dil, act, deconv=True)


COARSE_CFG = [
    GC(N_IN, CNUM, 5, 1, get_pad(256, 5, 1)),
    GC(CNUM, 2 * CNUM, 4, 2, get_pad(256, 4, 2)),
    GC(2 * CNUM, 2 * CNUM, 3, 1, get_pad(128, 3, 1)),
    GC(2 * CNUM, 4 * CNUM, 4, 2, get_pad(128, 4, 2)),
    GC(4 * CNUM, 4 * CNUM, 3, 1, get_pad(64, 3, 1)),
    GC(4 * CNUM, 4 * CNUM, 3, 1, get_pad(64, 3, 1)),
    GC(4 * CNUM, 4 * CNUM, 3, 1, get_pad(64, 3, 1, 2), dil=2),
    GC(4 * CNUM, 4 * CNUM, 3, 1, get_pad(64, 3, 1, 4), dil=4),
    GC(4 * CNUM, 4 * CNUM, 3, 1, get_pad(64, 3, 1, 8), dil=8),
    GC(4 * CNUM, 4 * CNUM, 3, 1, get_pad(64, 3, 1, 16), dil=16),
    GC(4 * CNUM, 4 * CNUM, 3, 1, get_pad(64, 3, 1)),
    GC(4 * CNUM, 4 * CNUM, 3, 1, get_pad(64, 3, 1)),
    GDC(4 * CNUM, 2 * CNUM, 3, 1, get_pad(128, 3, 1)),
    GC(2 * CNUM, 2 * CNUM, 3, 1, get_pad(128, 3, 1)),
    GDC(2 * CNUM, CNUM, 3, 1, get_pad(256, 3, 1)),
    GC(CNUM, CNUM // 2, 3, 1, get_pad(256, 3, 1)),
    GC(CNUM // 2, 3, 3, 1, get_pad(128, 3, 1), act=False),
]

REFINE_CONV_CFG = [
    GC(N_IN, CNUM, 5, 1, get_pad(256, 5, 1)),
    GC(CNUM, CNUM, 4, 2, get_pad(256, 4, 2)),
    GC(CNUM, 2 * CNUM, 3, 1, get_pad(128, 3, 1)),
    GC(2 * CNUM, 2 * CNUM, 4, 2, get_pad(128, 4, 2)),
    GC(2 * CNUM, 4 * CNUM, 3, 1, get_pad(64, 3, 1)),
    GC(4 * CNUM, 4 * CNUM, 3, 1, get_pad(64, 3, 1)),
    GC(4 * CNUM, 4 * CNUM, 3, 1, get_pad(64, 3, 1)),
    GC(4 * CNUM, 4 * CNUM, 3, 1, get_pad(64, 3, 1, 2), dil=2),
    GC(4 * CNUM, 4 * CNUM, 3, 1, get_pad(64, 3, 1, 4), dil=4),
    GC(4 * CNUM, 4 * CNUM, 3, 1, get_pad(64, 3, 1, 8), dil=8),
    GC(4 * CNUM, 4 * CNUM, 3, 1, get_pad(64, 3, 1, 16), dil=16),
]

REFINE_UP_CFG = [
    GC(4 * CNUM, 4 * CNUM, 3, 1, get_pad(64, 3, 1)),
    GC(4 * CNUM, 4 * CNUM, 3, 1, get_pad(64, 3, 1)),
    GDC(4 * CNUM, 2 * CNUM, 3, 1, get_pad(128, 3, 1)),
    GC(2 * CNUM, 2 * CNUM, 3, 1, get_pad(128, 3, 1)),
    GDC(2 * CNUM, CNUM, 3, 1, get_pad(256, 3, 1)),
    GC(CNUM, CNUM // 2, 3, 1, get_pad(256, 3, 1)),
    GC(CNUM // 2, 3, 3, 1, get_pad(256, 3, 1), act=False),
]


# ----------------------------------------------------------------------------
# Kernel 1: fused gated convolution (feature conv + mask conv + gating)
# ----------------------------------------------------------------------------
def _gated_conv_kernel(x_ref, w_ref, b_ref, o_ref, acc_ref, *,
                       kh, kw, dil, oh, ow, cout, act):
    npad = acc_ref.shape[-1]
    # bias folded into the accumulator init (no separate bias add / DMA stream).
    acc_ref[...] = jnp.broadcast_to(b_ref[...], (oh * ow, npad))
    # fused im2col: one shifted VMEM window + one MXU matmul per kernel tap.
    for i in range(kh):
        for j in range(kw):
            win = x_ref[0, i * dil:i * dil + oh, j * dil:j * dil + ow, :]
            win = win.reshape(oh * ow, win.shape[-1])
            acc_ref[...] += jnp.dot(win, w_ref[i * kw + j],
                                    preferred_element_type=jnp.float32)
    acc = acc_ref[...]
    feat = acc[:, :cout]
    gate = jax.nn.sigmoid(acc[:, cout:2 * cout])
    if act:  # LeakyReLU(0.2)
        feat = jnp.where(feat >= 0.0, feat, 0.2 * feat)
    o_ref[0] = (feat * gate).reshape(oh, ow, cout)


def pack_gated_weights(wf, wm, bf, bm, stride):
    """Pack feature+mask conv weights into (taps, K, Npad) bf16, bias (1, Npad) f32.

    Channel layout of the packed output: [0:cout] = feature conv, [cout:2*cout] =
    mask (gate) conv, rest zero-padding up to a multiple of 128 lanes.
    Stride-2 4x4 convs are converted to stride-1 2x2 convs over space-to-depth
    channels (p, q, c) -> (p*2+q)*cin + c.
    """
    cout, cin, kh, kw = wf.shape
    if stride == 2:
        assert kh == 4 and kw == 4
        def rearrange(w):
            w = w.reshape(cout, cin, 2, 2, 2, 2)       # o, c, a, p, b, q  (i=2a+p, j=2b+q)
            w = jnp.transpose(w, (2, 4, 3, 5, 1, 0))   # a, b, p, q, c, o
            return w.reshape(4, 4 * cin, cout)
    else:
        def rearrange(w):
            return jnp.transpose(w, (2, 3, 1, 0)).reshape(kh * kw, cin, cout)
    wft, wmt = rearrange(wf), rearrange(wm)
    two_cout = 2 * cout
    npad = ((two_cout + 127) // 128) * 128             # lane-dense matmul output
    w = jnp.concatenate([wft, wmt], axis=-1)
    w = jnp.pad(w, ((0, 0), (0, 0), (0, npad - two_cout))).astype(jnp.bfloat16)
    b = jnp.pad(jnp.concatenate([bf, bm]), (0, npad - two_cout)).astype(jnp.float32)
    return w, b.reshape(1, npad)


def gated_conv_forward(x, w_packed, b_packed, cfg):
    """Fused gated conv: LeakyReLU(conv_f(x)) * sigmoid(conv_m(x)) (no BN)."""
    k, stride, pad = cfg['k'], cfg['stride'], cfg['pad']
    dil, cout, act = cfg['dil'], cfg['cout'], cfg['act']
    n, h, wd, cin = x.shape
    xp = jnp.pad(x, ((0, 0), (pad, pad), (pad, pad), (0, 0)))
    if stride == 2:
        hp, wp = h + 2 * pad, wd + 2 * pad
        assert k == 4 and dil == 1 and hp % 2 == 0 and wp % 2 == 0
        xp = xp.reshape(n, hp // 2, 2, wp // 2, 2, cin)
        xp = xp.transpose(0, 1, 3, 2, 4, 5).reshape(n, hp // 2, wp // 2, 4 * cin)
        kh = kw = 2
        dd = 1
        oh = (h + 2 * pad - k) // 2 + 1
        ow = (wd + 2 * pad - k) // 2 + 1
    else:
        kh = kw = k
        dd = dil
        oh = h + 2 * pad - dil * (k - 1)
        ow = wd + 2 * pad - dil * (k - 1)
    xp = xp.astype(jnp.bfloat16)
    hp2, wp2, cin2 = xp.shape[1], xp.shape[2], xp.shape[3]
    npad = w_packed.shape[-1]

    kern = functools.partial(_gated_conv_kernel, kh=kh, kw=kw, dil=dd,
                             oh=oh, ow=ow, cout=cout, act=act)
    return pl.pallas_call(
        kern,
        out_shape=jax.ShapeDtypeStruct((n, oh, ow, cout), jnp.float32),
        grid=(n,),
        in_specs=[pl.BlockSpec((1, hp2, wp2, cin2), lambda i: (i, 0, 0, 0)),
                  pl.BlockSpec((kh * kw, cin2, npad), lambda i: (0, 0, 0)),
                  pl.BlockSpec((1, npad), lambda i: (0, 0))],
        out_specs=pl.BlockSpec((1, oh, ow, cout), lambda i: (i, 0, 0, 0)),
        scratch_shapes=[pltpu.VMEM((oh * ow, npad), jnp.float32)],
        compiler_params=pltpu.CompilerParams(
            dimension_semantics=("parallel",),
            vmem_limit_bytes=_VMEM_LIMIT),
    )(xp, w_packed, b_packed)


def gated_conv_layer(x, p, cfg):
    if cfg['deconv']:
        # GatedDeConv2dWithActivation: nearest x2 upsample (F.interpolate) first.
        x = jnp.repeat(jnp.repeat(x, 2, axis=1), 2, axis=2)
    y = gated_conv_forward(x, p['w'], p['b'], cfg)
    # TODO(synk): BatchNorm2d uses training-mode batch statistics computed in
    # plain JAX (gamma=1, beta=0 at init); running-stat tracking not modeled.
    mean = jnp.mean(y, axis=(0, 1, 2), keepdims=True)
    var = jnp.mean(jnp.square(y - mean), axis=(0, 1, 2), keepdims=True)
    return (y - mean) * lax.rsqrt(var + 1e-5)


# ----------------------------------------------------------------------------
# Kernel 2: Self_Attn (per-image fused q/k/v projection + softmax attention)
# ----------------------------------------------------------------------------
def _self_attn_kernel(x_ref, wq_ref, wk_ref, wv_ref,
                      bq_ref, bk_ref, bv_ref, g_ref, o_ref):
    x = x_ref[0]                                                   # (Npix, C) f32
    q = jnp.dot(x, wq_ref[...], preferred_element_type=jnp.float32) + bq_ref[...]
    k = jnp.dot(x, wk_ref[...], preferred_element_type=jnp.float32) + bk_ref[...]
    v = jnp.dot(x, wv_ref[...], preferred_element_type=jnp.float32) + bv_ref[...]
    energy = lax.dot_general(q, k, (((1,), (1,)), ((), ())),
                             preferred_element_type=jnp.float32)   # q @ k^T
    m = jnp.max(energy, axis=-1, keepdims=True)
    e = jnp.exp(energy - m)
    attn = e * pl.reciprocal(jnp.sum(e, axis=-1, keepdims=True), approx=True)
    out = jnp.dot(attn, v, preferred_element_type=jnp.float32)
    o_ref[0] = g_ref[...] * out + x


def self_attention(x, p):
    n, h, w, c = x.shape
    npix = h * w
    c8 = p['wq'].shape[1]
    xf = x.reshape(n, npix, c)
    out = pl.pallas_call(
        _self_attn_kernel,
        out_shape=jax.ShapeDtypeStruct((n, npix, c), jnp.float32),
        grid=(n,),
        in_specs=[pl.BlockSpec((1, npix, c), lambda i: (i, 0, 0)),
                  pl.BlockSpec((c, c8), lambda i: (0, 0)),
                  pl.BlockSpec((c, c8), lambda i: (0, 0)),
                  pl.BlockSpec((c, c), lambda i: (0, 0)),
                  pl.BlockSpec((1, c8), lambda i: (0, 0)),
                  pl.BlockSpec((1, c8), lambda i: (0, 0)),
                  pl.BlockSpec((1, c), lambda i: (0, 0)),
                  pl.BlockSpec((1, 1), lambda i: (0, 0))],
        out_specs=pl.BlockSpec((1, npix, c), lambda i: (i, 0, 0)),
        compiler_params=pltpu.CompilerParams(
            dimension_semantics=("parallel",),
            vmem_limit_bytes=_VMEM_LIMIT),
    )(xf, p['wq'], p['wk'], p['wv'], p['bq'], p['bk'], p['bv'], p['gamma'])
    return out.reshape(n, h, w, c)


# ----------------------------------------------------------------------------
# parameters
# ----------------------------------------------------------------------------
def init_gated_conv(key, cfg):
    cin, cout, k, stride = cfg['cin'], cfg['cout'], cfg['k'], cfg['stride']
    k1, k2, k3, k4 = jax.random.split(key, 4)
    fan_in = cin * k * k
    std = math.sqrt(2.0 / fan_in)                 # kaiming_normal_
    bound = 1.0 / math.sqrt(fan_in)
    wf = jax.random.normal(k1, (cout, cin, k, k), jnp.float32) * std
    wm = jax.random.normal(k2, (cout, cin, k, k), jnp.float32) * std
    bf = jax.random.uniform(k3, (cout,), jnp.float32, -bound, bound)
    bm = jax.random.uniform(k4, (cout,), jnp.float32, -bound, bound)
    w_packed, b_packed = pack_gated_weights(wf, wm, bf, bm, stride)
    return {'w': w_packed, 'b': b_packed}


def init_self_attn(key, c):
    c8 = c // 8
    ks = jax.random.split(key, 6)

    def conv1x1(kw_key, kb_key, cin, cout):
        bound = 1.0 / math.sqrt(cin)
        w = jax.random.normal(kw_key, (cin, cout), jnp.float32) * math.sqrt(1.0 / cin)
        b = jax.random.uniform(kb_key, (1, cout), jnp.float32, -bound, bound)
        return w, b

    wq, bq = conv1x1(ks[0], ks[1], c, c8)
    wk, bk = conv1x1(ks[2], ks[3], c, c8)
    wv, bv = conv1x1(ks[4], ks[5], c, c)
    return {'wq': wq, 'bq': bq, 'wk': wk, 'bk': bk, 'wv': wv, 'bv': bv,
            'gamma': jnp.zeros((1, 1), jnp.float32)}   # gamma = 0 at init


def init_params(key):
    kc, kr, ka, ku = jax.random.split(key, 4)

    def init_net(k, cfgs):
        ks = jax.random.split(k, len(cfgs))
        return [init_gated_conv(kk, cfg) for kk, cfg in zip(ks, cfgs)]

    return {'coarse': init_net(kc, COARSE_CFG),
            'refine_conv': init_net(kr, REFINE_CONV_CFG),
            'attn': init_self_attn(ka, 4 * CNUM),
            'refine_up': init_net(ku, REFINE_UP_CFG)}


# ----------------------------------------------------------------------------
# full InpaintSANet forward (NHWC everywhere)
# ----------------------------------------------------------------------------
def run_net(x, params, cfgs):
    for p, cfg in zip(params, cfgs):
        x = gated_conv_layer(x, p, cfg)
    return x


@jax.jit
def inpaint_sanet_forward(params, imgs, masks):
    """imgs: (N, H, W, 3) in [-1, 1]; masks: (N, H, W, 1) in {0, 1}."""
    masked = imgs * (1.0 - masks) + masks
    ones = jnp.ones_like(masks)
    inp = jnp.concatenate([masked, masks, ones], axis=-1)          # 5 channels
    x = run_net(inp, params['coarse'], COARSE_CFG)
    coarse_x = jnp.clip(x, -1.0, 1.0)

    masked = imgs * (1.0 - masks) + coarse_x * masks
    inp = jnp.concatenate([masked, masks, ones], axis=-1)
    x = run_net(inp, params['refine_conv'], REFINE_CONV_CFG)
    x = self_attention(x, params['attn'])
    x = run_net(x, params['refine_up'], REFINE_UP_CFG)
    x = jnp.clip(x, -1.0, 1.0)
    return coarse_x, x


# ----------------------------------------------------------------------------
# demo / self-checks
# ----------------------------------------------------------------------------
if __name__ == "__main__":
    root = jax.random.PRNGKey(0)
    k_params, k_img, k_mask, k_chk = jax.random.split(root, 4)

    # --- unit-check the fused gated-conv kernel against a pure-JAX reference ---
    def ref_gated_conv(x, wf, wm, bf, bm, cfg):
        xb = x.astype(jnp.bfloat16).astype(jnp.float32)
        dn = ('NHWC', 'OIHW', 'NHWC')
        s, p, d = cfg['stride'], cfg['pad'], cfg['dil']

        def conv(w):
            wb = w.astype(jnp.bfloat16).astype(jnp.float32)
            return lax.conv_general_dilated(
                xb, wb, (s, s), [(p, p), (p, p)], rhs_dilation=(d, d),
                dimension_numbers=dn, preferred_element_type=jnp.float32)

        f = conv(wf) + bf
        g = conv(wm) + bm
        if cfg['act']:
            f = jnp.where(f >= 0.0, f, 0.2 * f)
        return f * jax.nn.sigmoid(g)

    check_cfgs = [GC(32, 64, 3, 1, 2, dil=2),    # dilated stride-1 path
                  GC(32, 64, 4, 2, 1),           # stride-2 (space-to-depth) path
                  GC(16, 3, 3, 1, 1, act=False)] # no-activation narrow output
    for idx, ccfg in enumerate(check_cfgs):
        kk = jax.random.split(jax.random.fold_in(k_chk, idx), 5)
        cin, cout, k = ccfg['cin'], ccfg['cout'], ccfg['k']
        xchk = jax.random.normal(kk[0], (2, 16, 16, cin), jnp.float32)
        wf = jax.random.normal(kk[1], (cout, cin, k, k), jnp.float32) * 0.05
        wm = jax.random.normal(kk[2], (cout, cin, k, k), jnp.float32) * 0.05
        bf = jax.random.normal(kk[3], (cout,), jnp.float32) * 0.1
        bm = jax.random.normal(kk[4], (cout,), jnp.float32) * 0.1
        wpk, bpk = pack_gated_weights(wf, wm, bf, bm, ccfg['stride'])
        got = jax.jit(lambda a, b, c: gated_conv_forward(a, b, c, ccfg))(xchk, wpk, bpk)
        want = ref_gated_conv(xchk, wf, wm, bf, bm, ccfg)
        err = float(jnp.max(jnp.abs(got - want)))
        assert err < 2e-2, f"gated conv mismatch (cfg {idx}): max err {err}"

    # --- full InpaintSANet forward (reduced 64x64 spatial instead of 256x256) ---
    N, H, W = 2, 64, 64
    params = init_params(k_params)
    imgs = jax.random.uniform(k_img, (N, H, W, 3), jnp.float32, -1.0, 1.0)
    masks = (jax.random.uniform(k_mask, (N, H, W, 1)) > 0.75).astype(jnp.float32)

    coarse_x, refined = inpaint_sanet_forward(params, imgs, masks)
    jax.block_until_ready((coarse_x, refined))

    assert coarse_x.shape == (N, H, W, 3), coarse_x.shape
    assert refined.shape == (N, H, W, 3), refined.shape
    assert bool(jnp.all(jnp.isfinite(coarse_x))) and bool(jnp.all(jnp.isfinite(refined)))
    print("KERNEL_OK")
</pallas_src>

<mosaic_0001>
module attributes {stable_mosaic.version = 11 : i64} {
  func.func @_gated_conv_kernel(%arg0: i32, %arg1: memref<1x20x20x32xbf16, #tpu.memory_space<vmem>>, %arg2: memref<9x32x128xbf16, #tpu.memory_space<vmem>>, %arg3: memref<1x128xf32, #tpu.memory_space<vmem>>, %arg4: memref<1x16x16x64xf32, #tpu.memory_space<vmem>>, %arg5: memref<256x128xf32, #tpu.memory_space<vmem>>) attributes {dimension_semantics = [#tpu.dimension_semantics<parallel>], iteration_bounds = array<i64: 2>, scalar_prefetch = 0 : i64, scratch_operands = 1 : i64, tpu.core_type = #tpu.core_type<tc>, window_params = [{transform_indices = @transform_0, window_bounds = array<i64: 1, 20, 20, 32>}, {pipeline_mode = #tpu.pipeline_mode<synchronous>, transform_indices = @transform_1, window_bounds = array<i64: 9, 32, 128>}, {pipeline_mode = #tpu.pipeline_mode<synchronous>, transform_indices = @transform_2, window_bounds = array<i64: 1, 128>}, {transform_indices = @transform_3, window_bounds = array<i64: 1, 16, 16, 64>}]} {
    %c0 = arith.constant 0 : index
    %c0_0 = arith.constant 0 : index
    %0 = vector.load %arg3[%c0, %c0_0] : memref<1x128xf32, #tpu.memory_space<vmem>>, vector<1x128xf32>
    %1 = vector.shape_cast %0 : vector<1x128xf32> to vector<1x128xf32>
    %2 = vector.broadcast %1 : vector<1x128xf32> to vector<256x128xf32>
    %c0_1 = arith.constant 0 : index
    %c0_2 = arith.constant 0 : index
    %3 = vector.load %arg5[%c0_1, %c0_2] : memref<256x128xf32, #tpu.memory_space<vmem>>, vector<256x128xf32>
    tpu.vector_store %arg5[%c0_1, %c0_2], %2 {strides = array<i32>} : memref<256x128xf32, #tpu.memory_space<vmem>>, vector<256x128xf32>,
    %c0_3 = arith.constant 0 : index
    %c0_4 = arith.constant 0 : index
    %c0_5 = arith.constant 0 : index
    %c0_6 = arith.constant 0 : index
    %4 = vector.load %arg1[%c0_3, %c0_4, %c0_5, %c0_6] : memref<1x20x20x32xbf16, #tpu.memory_space<vmem>>, vector<1x16x16x32xbf16>
    %5 = vector.shape_cast %4 : vector<1x16x16x32xbf16> to vector<16x16x32xbf16>
    %6 = vector.shape_cast %5 : vector<16x16x32xbf16> to vector<256x32xbf16>
    %c0_7 = arith.constant 0 : index
    %c0_8 = arith.constant 0 : index
    %7 = vector.load %arg5[%c0_7, %c0_8] : memref<256x128xf32, #tpu.memory_space<vmem>>, vector<256x128xf32>
    %c0_9 = arith.constant 0 : index
    %c0_10 = arith.constant 0 : index
    %c0_11 = arith.constant 0 : index
    %8 = vector.load %arg2[%c0_9, %c0_10, %c0_11] : memref<9x32x128xbf16, #tpu.memory_space<vmem>>, vector<1x32x128xbf16>
    %9 = vector.shape_cast %8 : vector<1x32x128xbf16> to vector<32x128xbf16>
    %cst = arith.constant dense<0.000000e+00> : vector<256x128xf32>
    %10 = tpu.matmul %6, %9, %cst {dimension_numbers = #tpu.dot_dimension_numbers<[1], [0], [0], [1], [0, 0, 1, 1], [], []>} : vector<256x32xbf16>, vector<32x128xbf16>, vector<256x128xf32> -> vector<256x128xf32>
    %11 = arith.addf %7, %10 : vector<256x128xf32>
    %c0_12 = arith.constant 0 : index
    %c0_13 = arith.constant 0 : index
    %12 = vector.load %arg5[%c0_12, %c0_13] : memref<256x128xf32, #tpu.memory_space<vmem>>, vector<256x128xf32>
    tpu.vector_store %arg5[%c0_12, %c0_13], %11 {strides = array<i32>} : memref<256x128xf32, #tpu.memory_space<vmem>>, vector<256x128xf32>,
    %c0_14 = arith.constant 0 : index
    %c0_15 = arith.constant 0 : index
    %c2 = arith.constant 2 : index
    %c0_16 = arith.constant 0 : index
    %13 = vector.load %arg1[%c0_14, %c0_15, %c2, %c0_16] : memref<1x20x20x32xbf16, #tpu.memory_space<vmem>>, vector<1x16x16x32xbf16>
    %14 = vector.shape_cast %13 : vector<1x16x16x32xbf16> to vector<16x16x32xbf16>
    %15 = vector.shape_cast %14 : vector<16x16x32xbf16> to vector<256x32xbf16>
    %c0_17 = arith.constant 0 : index
    %c0_18 = arith.constant 0 : index
    %16 = vector.load %arg5[%c0_17, %c0_18] : memref<256x128xf32, #tpu.memory_space<vmem>>, vector<256x128xf32>
    %c1 = arith.constant 1 : index
    %c0_19 = arith.constant 0 : index
    %c0_20 = arith.constant 0 : index
    %17 = vector.load %arg2[%c1, %c0_19, %c0_20] : memref<9x32x128xbf16, #tpu.memory_space<vmem>>, vector<1x32x128xbf16>
    %18 = vector.shape_cast %17 : vector<1x32x128xbf16> to vector<32x128xbf16>
    %cst_21 = arith.constant dense<0.000000e+00> : vector<256x128xf32>
    %19 = tpu.matmul %15, %18, %cst_21 {dimension_numbers = #tpu.dot_dimension_numbers<[1], [0], [0], [1], [0, 0, 1, 1], [], []>} : vector<256x32xbf16>, vector<32x128xbf16>, vector<256x128xf32> -> vector<256x128xf32>
    %20 = arith.addf %16, %19 : vector<256x128xf32>
    %c0_22 = arith.constant 0 : index
    %c0_23 = arith.constant 0 : index
    %21 = vector.load %arg5[%c0_22, %c0_23] : memref<256x128xf32, #tpu.memory_space<vmem>>, vector<256x128xf32>
    tpu.vector_store %arg5[%c0_22, %c0_23], %20 {strides = array<i32>} : memref<256x128xf32, #tpu.memory_space<vmem>>, vector<256x128xf32>,
    %c0_24 = arith.constant 0 : index
    %c0_25 = arith.constant 0 : index
    %c4 = arith.constant 4 : index
    %c0_26 = arith.constant 0 : index
    %22 = vector.load %arg1[%c0_24, %c0_25, %c4, %c0_26] : memref<1x20x20x32xbf16, #tpu.memory_space<vmem>>, vector<1x16x16x32xbf16>
    %23 = vector.shape_cast %22 : vector<1x16x16x32xbf16> to vector<16x16x32xbf16>
    %24 = vector.shape_cast %23 : vector<16x16x32xbf16> to vector<256x32xbf16>
    %c0_27 = arith.constant 0 : index
    %c0_28 = arith.constant 0 : index
    %25 = vector.load %arg5[%c0_27, %c0_28] : memref<256x128xf32, #tpu.memory_space<vmem>>, vector<256x128xf32>
    %c2_29 = arith.constant 2 : index
    %c0_30 = arith.constant 0 : index
    %c0_31 = arith.constant 0 : index
    %26 = vector.load %arg2[%c2_29, %c0_30, %c0_31] : memref<9x32x128xbf16, #tpu.memory_space<vmem>>, vector<1x32x128xbf16>
    %27 = vector.shape_cast %26 : vector<1x32x128xbf16> to vector<32x128xbf16>
    %cst_32 = arith.constant dense<0.000000e+00> : vector<256x128xf32>
    %28 = tpu.matmul %24, %27, %cst_32 {dimension_numbers = #tpu.dot_dimension_numbers<[1], [0], [0], [1], [0, 0, 1, 1], [], []>} : vector<256x32xbf16>, vector<32x128xbf16>, vector<256x128xf32> -> vector<256x128xf32>
    %29 = arith.addf %25, %28 : vector<256x128xf32>
    %c0_33 = arith.constant 0 : index
    %c0_34 = arith.constant 0 : index
    %30 = vector.load %arg5[%c0_33, %c0_34] : memref<256x128xf32, #tpu.memory_space<vmem>>, vector<256x128xf32>
    tpu.vector_store %arg5[%c0_33, %c0_34], %29 {strides = array<i32>} : memref<256x128xf32, #tpu.memory_space<vmem>>, vector<256x128xf32>,
    %c0_35 = arith.constant 0 : index
    %c2_36 = arith.constant 2 : index
    %c0_37 = arith.constant 0 : index
    %c0_38 = arith.constant 0 : index
    %31 = vector.load %arg1[%c0_35, %c2_36, %c0_37, %c0_38] : memref<1x20x20x32xbf16, #tpu.memory_space<vmem>>, vector<1x16x16x32xbf16>
    %32 = vector.shape_cast %31 : vector<1x16x16x32xbf16> to vector<16x16x32xbf16>
    %33 = vector.shape_cast %32 : vector<16x16x32xbf16> to vector<256x32xbf16>
    %c0_39 = arith.constant 0 : index
    %c0_40 = arith.constant 0 : index
    %34 = vector.load %arg5[%c0_39, %c0_40] : memref<256x128xf32, #tpu.memory_space<vmem>>, vector<256x128xf32>
    %c3 = arith.constant 3 : index
    %c0_41 = arith.constant 0 : index
    %c0_42 = arith.constant 0 : index
    %35 = vector.load %arg2[%c3, %c0_41, %c0_42] : memref<9x32x128xbf16, #tpu.memory_space<vmem>>, vector<1x32x128xbf16>
    %36 = vector.shape_cast %35 : vector<1x32x128xbf16> to vector<32x128xbf16>
    %cst_43 = arith.constant dense<0.000000e+00> : vector<256x128xf32>
    %37 = tpu.matmul %33, %36, %cst_43 {dimension_numbers = #tpu.dot_dimension_numbers<[1], [0], [0], [1], [0, 0, 1, 1], [], []>} : vector<256x32xbf16>, vector<32x128xbf16>, vector<256x128xf32> -> vector<256x128xf32>
    %38 = arith.addf %34, %37 : vector<256x128xf32>
    %c0_44 = arith.constant 0 : index
    %c0_45 = arith.constant 0 : index
    %39 = vector.load %arg5[%c0_44, %c0_45] : memref<256x128xf32, #tpu.memory_space<vmem>>, vector<256x128xf32>
    tpu.vector_store %arg5[%c0_44, %c0_45], %38 {strides = array<i32>} : memref<256x128xf32, #tpu.memory_space<vmem>>, vector<256x128xf32>,
    %c0_46 = arith.constant 0 : index
    %c2_47 = arith.constant 2 : index
    %c2_48 = arith.constant 2 : index
    %c0_49 = arith.constant 0 : index
    %40 = vector.load %arg1[%c0_46, %c2_47, %c2_48, %c0_49] : memref<1x20x20x32xbf16, #tpu.memory_space<vmem>>, vector<1x16x16x32xbf16>
    %41 = vector.shape_cast %40 : vector<1x16x16x32xbf16> to vector<16x16x32xbf16>
    %42 = vector.shape_cast %41 : vector<16x16x32xbf16> to vector<256x32xbf16>
    %c0_50 = arith.constant 0 : index
    %c0_51 = arith.constant 0 : index
    %43 = vector.load %arg5[%c0_50, %c0_51] : memref<256x128xf32, #tpu.memory_space<vmem>>, vector<256x128xf32>
    %c4_52 = arith.constant 4 : index
    %c0_53 = arith.constant 0 : index
    %c0_54 = arith.constant 0 : index
    %44 = vector.load %arg2[%c4_52, %c0_53, %c0_54] : memref<9x32x128xbf16, #tpu.memory_space<vmem>>, vector<1x32x128xbf16>
    %45 = vector.shape_cast %44 : vector<1x32x128xbf16> to vector<32x128xbf16>
    %cst_55 = arith.constant dense<0.000000e+00> : vector<256x128xf32>
    %46 = tpu.matmul %42, %45, %cst_55 {dimension_numbers = #tpu.dot_dimension_numbers<[1], [0], [0], [1], [0, 0, 1, 1], [], []>} : vector<256x32xbf16>, vector<32x128xbf16>, vector<256x128xf32> -> vector<256x128xf32>
    %47 = arith.addf %43, %46 : vector<256x128xf32>
    %c0_56 = arith.constant 0 : index
    %c0_57 = arith.constant 0 : index
    %48 = vector.load %arg5[%c0_56, %c0_57] : memref<256x128xf32, #tpu.memory_space<vmem>>, vector<256x128xf32>
    tpu.vector_store %arg5[%c0_56, %c0_57], %47 {strides = array<i32>} : memref<256x128xf32, #tpu.memory_space<vmem>>, vector<256x128xf32>,
    %c0_58 = arith.constant 0 : index
    %c2_59 = arith.constant 2 : index
    %c4_60 = arith.constant 4 : index
    %c0_61 = arith.constant 0 : index
    %49 = vector.load %arg1[%c0_58, %c2_59, %c4_60, %c0_61] : memref<1x20x20x32xbf16, #tpu.memory_space<vmem>>, vector<1x16x16x32xbf16>
    %50 = vector.shape_cast %49 : vector<1x16x16x32xbf16> to vector<16x16x32xbf16>
    %51 = vector.shape_cast %50 : vector<16x16x32xbf16> to vector<256x32xbf16>
    %c0_62 = arith.constant 0 : index
    %c0_63 = arith.constant 0 : index
    %52 = vector.load %arg5[%c0_62, %c0_63] : memref<256x128xf32, #tpu.memory_space<vmem>>, vector<256x128xf32>
    %c5 = arith.constant 5 : index
    %c0_64 = arith.constant 0 : index
    %c0_65 = arith.constant 0 : index
    %53 = vector.load %arg2[%c5, %c0_64, %c0_65] : memref<9x32x128xbf16, #tpu.memory_space<vmem>>, vector<1x32x128xbf16>
    %54 = vector.shape_cast %53 : vector<1x32x128xbf16> to vector<32x128xbf16>
    %cst_66 = arith.constant dense<0.000000e+00> : vector<256x128xf32>
    %55 = tpu.matmul %51, %54, %cst_66 {dimension_numbers = #tpu.dot_dimension_numbers<[1], [0], [0], [1], [0, 0, 1, 1], [], []>} : vector<256x32xbf16>, vector<32x128xbf16>, vector<256x128xf32> -> vector<256x128xf32>
    %56 = arith.addf %52, %55 : vector<256x128xf32>
    %c0_67 = arith.constant 0 : index
    %c0_68 = arith.constant 0 : index
    %57 = vector.load %arg5[%c0_67, %c0_68] : memref<256x128xf32, #tpu.memory_space<vmem>>, vector<256x128xf32>
    tpu.vector_store %arg5[%c0_67, %c0_68], %56 {strides = array<i32>} : memref<256x128xf32, #tpu.memory_space<vmem>>, vector<256x128xf32>,
    %c0_69 = arith.constant 0 : index
    %c4_70 = arith.constant 4 : index
    %c0_71 = arith.constant 0 : index
    %c0_72 = arith.constant 0 : index
    %58 = vector.load %arg1[%c0_69, %c4_70, %c0_71, %c0_72] : memref<1x20x20x32xbf16, #tpu.memory_space<vmem>>, vector<1x16x16x32xbf16>
    %59 = vector.shape_cast %58 : vector<1x16x16x32xbf16> to vector<16x16x32xbf16>
    %60 = vector.shape_cast %59 : vector<16x16x32xbf16> to vector<256x32xbf16>
    %c0_73 = arith.constant 0 : index
    %c0_74 = arith.constant 0 : index
    %61 = vector.load %arg5[%c0_73, %c0_74] : memref<256x128xf32, #tpu.memory_space<vmem>>, vector<256x128xf32>
    %c6 = arith.constant 6 : index
    %c0_75 = arith.constant 0 : index
    %c0_76 = arith.constant 0 : index
    %62 = vector.load %arg2[%c6, %c0_75, %c0_76] : memref<9x32x128xbf16, #tpu.memory_space<vmem>>, vector<1x32x128xbf16>
    %63 = vector.shape_cast %62 : vector<1x32x128xbf16> to vector<32x128xbf16>
    %cst_77 = arith.constant dense<0.000000e+00> : vector<256x128xf32>
    %64 = tpu.matmul %60, %63, %cst_77 {dimension_numbers = #tpu.dot_dimension_numbers<[1], [0], [0], [1], [0, 0, 1, 1], [], []>} : vector<256x32xbf16>, vector<32x128xbf16>, vector<256x128xf32> -> vector<256x128xf32>
    %65 = arith.addf %61, %64 : vector<256x128xf32>
    %c0_78 = arith.constant 0 : index
    %c0_79 = arith.constant 0 : index
    %66 = vector.load %arg5[%c0_78, %c0_79] : memref<256x128xf32, #tpu.memory_space<vmem>>, vector<256x128xf32>
    tpu.vector_store %arg5[%c0_78, %c0_79], %65 {strides = array<i32>} : memref<256x128xf32, #tpu.memory_space<vmem>>, vector<256x128xf32>,
    %c0_80 = arith.constant 0 : index
    %c4_81 = arith.constant 4 : index
    %c2_82 = arith.constant 2 : index
    %c0_83 = arith.constant 0 : index
    %67 = vector.load %arg1[%c0_80, %c4_81, %c2_82, %c0_83] : memref<1x20x20x32xbf16, #tpu.memory_space<vmem>>, vector<1x16x16x32xbf16>
    %68 = vector.shape_cast %67 : vector<1x16x16x32xbf16> to vector<16x16x32xbf16>
    %69 = vector.shape_cast %68 : vector<16x16x32xbf16> to vector<256x32xbf16>
    %c0_84 = arith.constant 0 : index
    %c0_85 = arith.constant 0 : index
    %70 = vector.load %arg5[%c0_84, %c0_85] : memref<256x128xf32, #tpu.memory_space<vmem>>, vector<256x128xf32>
    %c7 = arith.constant 7 : index
    %c0_86 = arith.constant 0 : index
    %c0_87 = arith.constant 0 : index
    %71 = vector.load %arg2[%c7, %c0_86, %c0_87] : memref<9x32x128xbf16, #tpu.memory_space<vmem>>, vector<1x32x128xbf16>
    %72 = vector.shape_cast %71 : vector<1x32x128xbf16> to vector<32x128xbf16>
    %cst_88 = arith.constant dense<0.000000e+00> : vector<256x128xf32>
    %73 = tpu.matmul %69, %72, %cst_88 {dimension_numbers = #tpu.dot_dimension_numbers<[1], [0], [0], [1], [0, 0, 1, 1], [], []>} : vector<256x32xbf16>, vector<32x128xbf16>, vector<256x128xf32> -> vector<256x128xf32>
    %74 = arith.addf %70, %73 : vector<256x128xf32>
    %c0_89 = arith.constant 0 : index
    %c0_90 = arith.constant 0 : index
    %75 = vector.load %arg5[%c0_89, %c0_90] : memref<256x128xf32, #tpu.memory_space<vmem>>, vector<256x128xf32>
    tpu.vector_store %arg5[%c0_89, %c0_90], %74 {strides = array<i32>} : memref<256x128xf32, #tpu.memory_space<vmem>>, vector<256x128xf32>,
    %c0_91 = arith.constant 0 : index
    %c4_92 = arith.constant 4 : index
    %c4_93 = arith.constant 4 : index
    %c0_94 = arith.constant 0 : index
    %76 = vector.load %arg1[%c0_91, %c4_92, %c4_93, %c0_94] : memref<1x20x20x32xbf16, #tpu.memory_space<vmem>>, vector<1x16x16x32xbf16>
    %77 = vector.shape_cast %76 : vector<1x16x16x32xbf16> to vector<16x16x32xbf16>
    %78 = vector.shape_cast %77 : vector<16x16x32xbf16> to vector<256x32xbf16>
    %c0_95 = arith.constant 0 : index
    %c0_96 = arith.constant 0 : index
    %79 = vector.load %arg5[%c0_95, %c0_96] : memref<256x128xf32, #tpu.memory_space<vmem>>, vector<256x128xf32>
    %c8 = arith.constant 8 : index
    %c0_97 = arith.constant 0 : index
    %c0_98 = arith.constant 0 : index
    %80 = vector.load %arg2[%c8, %c0_97, %c0_98] : memref<9x32x128xbf16, #tpu.memory_space<vmem>>, vector<1x32x128xbf16>
    %81 = vector.shape_cast %80 : vector<1x32x128xbf16> to vector<32x128xbf16>
    %cst_99 = arith.constant dense<0.000000e+00> : vector<256x128xf32>
    %82 = tpu.matmul %78, %81, %cst_99 {dimension_numbers = #tpu.dot_dimension_numbers<[1], [0], [0], [1], [0, 0, 1, 1], [], []>} : vector<256x32xbf16>, vector<32x128xbf16>, vector<256x128xf32> -> vector<256x128xf32>
    %83 = arith.addf %79, %82 : vector<256x128xf32>
    %c0_100 = arith.constant 0 : index
    %c0_101 = arith.constant 0 : index
    %84 = vector.load %arg5[%c0_100, %c0_101] : memref<256x128xf32, #tpu.memory_space<vmem>>, vector<256x128xf32>
    tpu.vector_store %arg5[%c0_100, %c0_101], %83 {strides = array<i32>} : memref<256x128xf32, #tpu.memory_space<vmem>>, vector<256x128xf32>,
    %c0_102 = arith.constant 0 : index
    %c0_103 = arith.constant 0 : index
    %85 = vector.load %arg5[%c0_102, %c0_103] : memref<256x128xf32, #tpu.memory_space<vmem>>, vector<256x128xf32>
    %86 = vector.extract_strided_slice %85 {offsets = [0, 0], sizes = [256, 64], strides = [1, 1]} : vector<256x128xf32> to vector<256x64xf32>
    %87 = vector.extract_strided_slice %85 {offsets = [0, 64], sizes = [256, 64], strides = [1, 1]} : vector<256x128xf32> to vector<256x64xf32>
    %88 = arith.negf %87 : vector<256x64xf32>
    %89 = math.exp %88 : vector<256x64xf32>
    %cst_104 = arith.constant 1.000000e+00 : f32
    %90 = vector.broadcast %cst_104 : f32 to vector<256x64xf32>
    %91 = arith.addf %90, %89 : vector<256x64xf32>
    %92 = arith.divf %90, %91 : vector<256x64xf32>
    %cst_105 = arith.constant 0.000000e+00 : f32
    %93 = vector.broadcast %cst_105 : f32 to vector<256x64xf32>
    %94 = arith.cmpf oge, %86, %93 : vector<256x64xf32>
    %cst_106 = arith.constant 2.000000e-01 : f32
    %95 = vector.broadcast %cst_106 : f32 to vector<256x64xf32>
    %96 = arith.mulf %95, %86 : vector<256x64xf32>
    %97 = arith.select %94, %86, %96 : vector<256x64xi1>, vector<256x64xf32>
    %98 = arith.mulf %97, %92 : vector<256x64xf32>
    %99 = vector.shape_cast %98 : vector<256x64xf32> to vector<16x16x64xf32>
    %c0_107 = arith.constant 0 : index
    %c0_108 = arith.constant 0 : index
    %c0_109 = arith.constant 0 : index
    %c0_110 = arith.constant 0 : index
    %100 = vector.load %arg4[%c0_107, %c0_108, %c0_109, %c0_110] : memref<1x16x16x64xf32, #tpu.memory_space<vmem>>, vector<1x16x16x64xf32>
    %101 = vector.shape_cast %100 : vector<1x16x16x64xf32> to vector<16x16x64xf32>
    %102 = vector.shape_cast %99 : vector<16x16x64xf32> to vector<1x16x16x64xf32>
    tpu.vector_store %arg4[%c0_107, %c0_108, %c0_109, %c0_110], %102 {strides = array<i32>} : memref<1x16x16x64xf32, #tpu.memory_space<vmem>>, vector<1x16x16x64xf32>,
    return
  }
  func.func @transform_0(%arg0: i32) -> (i32, i32, i32, i32) {
    %c0_i32 = arith.constant 0 : i32
    %c0_i32_0 = arith.constant 0 : i32
    %c0_i32_1 = arith.constant 0 : i32
    %c0_i32_2 = arith.constant 0 : i32
    return %arg0, %c0_i32, %c0_i32_0, %c0_i32_1 : i32, i32, i32, i32
  }
  func.func @transform_1(%arg0: i32) -> (i32, i32, i32) {
    %c0_i32 = arith.constant 0 : i32
    %c0_i32_0 = arith.constant 0 : i32
    %c0_i32_1 = arith.constant 0 : i32
    %c0_i32_2 = arith.constant 0 : i32
    return %c0_i32, %c0_i32_0, %c0_i32_1 : i32, i32, i32
  }
  func.func @transform_2(%arg0: i32) -> (i32, i32) {
    %c0_i32 = arith.constant 0 : i32
    %c0_i32_0 = arith.constant 0 : i32
    %c0_i32_1 = arith.constant 0 : i32
    return %c0_i32, %c0_i32_0 : i32, i32
  }
  func.func @transform_3(%arg0: i32) -> (i32, i32, i32, i32) {
    %c0_i32 = arith.constant 0 : i32
    %c0_i32_0 = arith.constant 0 : i32
    %c0_i32_1 = arith.constant 0 : i32
    %c0_i32_2 = arith.constant 0 : i32
    return %arg0, %c0_i32, %c0_i32_0, %c0_i32_1 : i32, i32, i32, i32
  }
}

</mosaic_0001>

<llo_original>
// kernel: _lambda_.1
$region0: #{_lambda_.1}
  #allocation0 [shape = 'u32[]', space=smem, size = 0x4, offset = 0x4, fixed_abs, tag = 'smem constant byte address 0x4 - core index']
  #allocation1 [shape = 'u32[144,128]{1,0:T(1,128)}', space=vmem, size = 0x12000, scoped, tag = 'internal scratch']
  #allocation2 [shape = 'f32[256,128]{1,0:T(8,128)}', space=vmem, size = 0x20000, scoped, tag = 'scratch operand']
  %s0 = inlined_call_operand.vmem [shape: bf16[2,20,20,32], index: 0, kind: input, shape index: {}]
  %s1 = inlined_call_operand.vmem [shape: bf16[9,32,128], index: 1, kind: input, shape index: {}]
  %s2 = inlined_call_operand.vmem [shape: f32[1,128], index: 2, kind: input, shape index: {}]
  %s3 = inlined_call_operand.hbm [shape: f32[2,16,16,64], index: 3, kind: output, shape index: {}]
  %s4 = sld [smem:[#allocation0]]
  $region45: #{_lambda_.1} parent=0
    _
  %s6 = ssub.s32 1, %s4
  %s7 = scalar_select 0, %s6, %s4
  $region1: #{_lambda_.1} parent=0
    #allocation3 [shape = 'u8[262144]{0}', space=vmem, size = 0x40000, scoped, tag = 'output window, operand 0']
    #allocation4 [shape = 's32[2]{0}', space=sflag, size = 0x8, scoped, tag = 'scoped memory for _lambda_.1']
    %8 = vsyncpa [#allocation4], 0
    %s9 = scalar_lea.sflag [#allocation4], 1
    %10 = vsyncpa %s9, 0
    loop: start=0, step=1, limit=4
    $region2: #{_lambda_.1} parent=1 // loop_pre_header
      _
    $region3: #{_lambda_.1} parent=1 // loop_header
      %s12 = sphi 0, %s16
      %p13 = scmp.ge.s32.totalorder %s12, 4
      %s22 = sphi 0, %s24
      %s25 = sphi 0, %s22
      %s26 = sphi 0, %s25
      %s42 = sphi 0, %s26
      %s46 = sphi 0, %s46
      %s48 = sphi 0, %s46
      %s49 = sphi 0, %s48
      %s63 = sphi 0, %s49
      %s67 = sphi 0, %s67
      %s69 = sphi 0, %s67
      %s70 = sphi 0, %s69
      %s84 = sphi 0, %s70
      %s90 = sphi 0, %s92
      %s93 = sphi 0, %s90
      %s94 = sphi 0, %s93
      %s110 = sphi 0, %s94
    $region4: #{_lambda_.1} parent=1 // loop_header_branch
      %15 = sbr.rel (%p13) target = $region8
    $region5: #{_lambda_.1} parent=1 // loop_body
      %s17 = ssub.s32 %s12, 1
      %s18 = ssub.s32 %s12, 2
      %s19 = sadd.s32 %s12, 1
      %s20 = ssub.s32 %s12, %s19
      %p21 = scmp.eq.s32.totalorder %s20, 0
      %s23 = sadd.s32 %s22, 1
      %s24 = scalar_select %p21, %s22, %s23
      %p27 = pneg %p21
      %p28 = scmp.eq.s32.totalorder %s12, 1
      %p29 = por %p27, %p28
      %p30 = scmp.ne.s32.totalorder %s22, %s25
      %p31 = scmp.eq.s32.totalorder %s12, 0
      %p32 = por %p30, %p31
      %p33 = scmp.ne.s32.totalorder %s22, %s25
      %p34 = scmp.eq.s32.totalorder %s17, 1
      %p35 = por %p33, %p34
      %p36 = scmp.ne.s32.totalorder %s25, %s26
      %p37 = scmp.eq.s32.totalorder %s17, 0
      %p38 = por %p36, %p37
      %p39 = scmp.ne.s32.totalorder %s25, %s26
      %p40 = scmp.eq.s32.totalorder %s18, 1
      %p41 = por %p39, %p40
      %p43 = scmp.ne.s32.totalorder %s26, %s42
      %p44 = scmp.eq.s32.totalorder %s18, 0
      %p45 = por %p43, %p44
      %s47 = sadd.s32 %s46, 1
      %p50 = scmp.eq.s32.totalorder %s12, 1
      %p51 = scmp.ne.s32.totalorder %s46, %s48
      %p52 = scmp.eq.s32.totalorder %s12, 0
      %p53 = por %p51, %p52
      %p54 = scmp.ne.s32.totalorder %s46, %s48
      %p55 = scmp.eq.s32.totalorder %s17, 1
      %p56 = por %p54, %p55
      %p57 = scmp.ne.s32.totalorder %s48, %s49
      %p58 = scmp.eq.s32.totalorder %s17, 0
      %p59 = por %p57, %p58
      %p60 = scmp.ne.s32.totalorder %s48, %s49
      %p61 = scmp.eq.s32.totalorder %s18, 1
      %p62 = por %p60, %p61
      %p64 = scmp.ne.s32.totalorder %s49, %s63
      %p65 = scmp.eq.s32.totalorder %s18, 0
      %p66 = por %p64, %p65
      %s68 = sadd.s32 %s67, 1
      %p71 = scmp.eq.s32.totalorder %s12, 1
      %p72 = scmp.ne.s32.totalorder %s67, %s69
      %p73 = scmp.eq.s32.totalorder %s12, 0
      %p74 = por %p72, %p73
      %p75 = scmp.ne.s32.totalorder %s67, %s69
      %p76 = scmp.eq.s32.totalorder %s17, 1
      %p77 = por %p75, %p76
      %p78 = scmp.ne.s32.totalorder %s69, %s70
      %p79 = scmp.eq.s32.totalorder %s17, 0
      %p80 = por %p78, %p79
      %p81 = scmp.ne.s32.totalorder %s69, %s70
      %p82 = scmp.eq.s32.totalorder %s18, 1
      %p83 = por %p81, %p82
      %p85 = scmp.ne.s32.totalorder %s70, %s84
      %p86 = scmp.eq.s32.totalorder %s18, 0
      %p87 = por %p85, %p86
      %s88 = ssub.s32 %s12, %s19
      %p89 = scmp.eq.s32.totalorder %s88, 0
      %s91 = sadd.s32 %s90, 1
      %s92 = scalar_select %p89, %s90, %s91
      %p95 = pneg %p89
      %p96 = scmp.eq.s32.totalorder %s12, 1
      %p97 = por %p95, %p96
      %p98 = scmp.ne.s32.totalorder %s90, %s93
      %p99 = scmp.eq.s32.totalorder %s12, 0
      %p100 = por %p98, %p99
      %p101 = scmp.ne.s32.totalorder %s90, %s93
      %p102 = scmp.eq.s32.totalorder %s17, 1
      %p103 = por %p101, %p102
      %p104 = scmp.ne.s32.totalorder %s93, %s94
      %p105 = scmp.eq.s32.totalorder %s17, 0
      %p106 = por %p104, %p105
      %p107 = scmp.ne.s32.totalorder %s93, %s94
      %p108 = scmp.eq.s32.totalorder %s18, 1
      %p109 = por %p107, %p108
      %p111 = scmp.ne.s32.totalorder %s94, %s110
      %p112 = scmp.eq.s32.totalorder %s18, 0
      %p113 = por %p111, %p112
      %p114 = scmp.le.s32.totalorder 1, %s12
      %p115 = scmp.lt.s32.totalorder %s12, 3
      %p116 = pnand %p114, %p115
      %p117 = pneg %p116
      // Predicated region
      $region9: #{_lambda_.1} parent=5 // pred_check
        _
      $region10: #{_lambda_.1} parent=5 // pred_check_branch
        %119 = sbr.rel (%p116) target = $region12
      $region11: #{_lambda_.1} parent=5 // pred_region
        %s120 = ssub.s32 %s12, 1
        // Predicated region
        $region13: #{_lambda_.1} parent=11 // pred_check
          %p121 = pneg %p59
        $region14: #{_lambda_.1} parent=11 // pred_check_branch
          %123 = sbr.rel (%p121) target = $region16
        $region15: #{_lambda_.1} parent=11 // pred_region
          _
        $region16: #{_lambda_.1} parent=11 // pred_fallthru
          _
        // Predicated region
        $region17: #{_lambda_.1} parent=11 // pred_check
          %p124 = pneg %p80
        $region18: #{_lambda_.1} parent=11 // pred_check_branch
          %126 = sbr.rel (%p124) target = $region20
        $region19: #{_lambda_.1} parent=11 // pred_region
          _
        $region20: #{_lambda_.1} parent=11 // pred_fallthru
          _
      $region12: #{_lambda_.1} parent=5 // pred_fallthru
        _
      %p127 = scmp.lt.s32.totalorder %s12, 2
      // Predicated region
      $region21: #{_lambda_.1} parent=5 // pred_check
        %p128 = pneg %p127
      $region22: #{_lambda_.1} parent=5 // pred_check_branch
        %130 = sbr.rel (%p128) target = $region24
      $region23: #{_lambda_.1} parent=5 // pred_region
        // Predicated region
        $region25: #{_lambda_.1} parent=23 // pred_check
          %p131 = pneg %p32
        $region26: #{_lambda_.1} parent=23 // pred_check_branch
          %133 = sbr.rel (%p131) target = $region28
        $region27: #{_lambda_.1} parent=23 // pred_region
          %p134 = scmp.lt.s32.totalorder %s12, 1
          %s135 = scalar_select %p134, %s12, 1
          %s136 = smul.addr %s135, 60
          %s137 = smul.addr %s136, 4
          %s138 = scalar_lea.vmem %s0, %s137
        $region28: #{_lambda_.1} parent=23 // pred_fallthru
          _
      $region24: #{_lambda_.1} parent=5 // pred_fallthru
        _
      %p139 = scmp.le.s32.totalorder 1, %s12
      %p140 = scmp.lt.s32.totalorder %s12, 3
      %p141 = pnand %p139, %p140
      %p142 = pneg %p141
      // Predicated region
      $region29: #{_lambda_.1} parent=5 // pred_check
        _
      $region30: #{_lambda_.1} parent=5 // pred_check_branch
        %144 = sbr.rel (%p141) target = $region32
      $region31: #{_lambda_.1} parent=5 // pred_region
        %s145 = ssub.s32 %s12, 1
        %p146 = scmp.lt.s32.totalorder %s17, 1
        %s147 = scalar_select %p146, %s17, 1
        %s148 = smul.addr %s147, 60
        %s149 = smul.addr %s148, 4
        %s150 = scalar_lea.vmem %s0, %s149
        %p151 = pneg %p38
        %p152 = pneg %p35
        %p153 = pneg %p59
        %p154 = pneg %p56
        %p155 = pneg %p80
        %p156 = pneg %p77
        %p157 = pneg %p106
        %p158 = pneg %p103
        %s159 = sand.u32 %s93, 1
        %s160 = scalar_lea.sflag [#allocation4], %s159
        %s161 = sand.u32 %s93, 1
        %s162 = smul.addr %s161, 256
        %s163 = scalar_lea.vmem [#allocation3], %s162
        %p164 = scmp.lt.s32.totalorder %s17, 1
        %s165 = scalar_select %p164, %s17, 1
        %s166 = smul.addr %s165, 60
        %s167 = smul.addr %s166, 4
        %s168 = scalar_lea.vmem %s0, %s167
        %v170 = vld [vmem:[%s2] sm:$0x1]
        %v172 = vlaneseq
        %v173 = vshrl.u32 %v172, 7
        %v174 = vsub.s32 0, %v173
        %v175 = vrot.slane %v170, %v174
        %177 = vst [vmem:[#allocation2] sm:$0xff] %v175
        %178 = vst [vmem:[#allocation2 + $0x8] sm:$0xff] %v175
        %179 = vst [vmem:[#allocation2 + $0x10] sm:$0xff] %v175
        %180 = vst [vmem:[#allocation2 + $0x18] sm:$0xff] %v175
        %181 = vst [vmem:[#allocation2 + $0x20] sm:$0xff] %v175
        %182 = vst [vmem:[#allocation2 + $0x28] sm:$0xff] %v175
        %183 = vst [vmem:[#allocation2 + $0x30] sm:$0xff] %v175
        %184 = vst [vmem:[#allocation2 + $0x38] sm:$0xff] %v175
        %185 = vst [vmem:[#allocation2 + $0x40] sm:$0xff] %v175
        %186 = vst [vmem:[#allocation2 + $0x48] sm:$0xff] %v175
        %187 = vst [vmem:[#allocation2 + $0x50] sm:$0xff] %v175
        %188 = vst [vmem:[#allocation2 + $0x58] sm:$0xff] %v175
        %189 = vst [vmem:[#allocation2 + $0x60] sm:$0xff] %v175
        %190 = vst [vmem:[#allocation2 + $0x68] sm:$0xff] %v175
        %191 = vst [vmem:[#allocation2 + $0x70] sm:$0xff] %v175
        %192 = vst [vmem:[#allocation2 + $0x78] sm:$0xff] %v175
        %193 = vst [vmem:[#allocation2 + $0x80] sm:$0xff] %v175
        %194 = vst [vmem:[#allocation2 + $0x88] sm:$0xff] %v175
        %195 = vst [vmem:[#allocation2 + $0x90] sm:$0xff] %v175
        %196 = vst [vmem:[#allocation2 + $0x98] sm:$0xff] %v175
        %197 = vst [vmem:[#allocation2 + $0xa0] sm:$0xff] %v175
        %198 = vst [vmem:[#allocation2 + $0xa8] sm:$0xff] %v175
        %199 = vst [vmem:[#allocation2 + $0xb0] sm:$0xff] %v175
        %200 = vst [vmem:[#allocation2 + $0xb8] sm:$0xff] %v175
        %201 = vst [vmem:[#allocation2 + $0xc0] sm:$0xff] %v175
        %202 = vst [vmem:[#allocation2 + $0xc8] sm:$0xff] %v175
        %203 = vst [vmem:[#allocation2 + $0xd0] sm:$0xff] %v175
        %204 = vst [vmem:[#allocation2 + $0xd8] sm:$0xff] %v175
        %205 = vst [vmem:[#allocation2 + $0xe0] sm:$0xff] %v175
        %206 = vst [vmem:[#allocation2 + $0xe8] sm:$0xff] %v175
        %207 = vst [vmem:[#allocation2 + $0xf0] sm:$0xff] %v175
        %208 = vst [vmem:[#allocation2 + $0xf8] sm:$0xff] %v175
        %v209 = vld [vmem:[%s168] sm:$0xf]
        %v210 = vld [vmem:[%s168 + $0x4] sm:$0xf]
        %v211 = vld [vmem:[%s168 + $0xc] sm:$0xf]
        %v212 = vld [vmem:[%s168 + $0x10] sm:$0xf]
        %v213 = vld [vmem:[%s168 + $0x18] sm:$0xf]
        %v214 = vld [vmem:[%s168 + $0x1c] sm:$0xf]
        %v215 = vld [vmem:[%s168 + $0x24] sm:$0xf]
        %v216 = vld [vmem:[%s168 + $0x28] sm:$0xf]
        %v217 = vld [vmem:[%s168 + $0x30] sm:$0xf]
        %v218 = vld [vmem:[%s168 + $0x34] sm:$0xf]
        %v219 = vld [vmem:[%s168 + $0x3c] sm:$0xf]
        %v220 = vld [vmem:[%s168 + $0x40] sm:$0xf]
        %v221 = vld [vmem:[%s168 + $0x48] sm:$0xf]
        %v222 = vld [vmem:[%s168 + $0x4c] sm:$0xf]
        %v223 = vld [vmem:[%s168 + $0x54] sm:$0xf]
        %v224 = vld [vmem:[%s168 + $0x58] sm:$0xf]
        %v225 = vld [vmem:[%s168 + $0x60] sm:$0xf]
        %v226 = vld [vmem:[%s168 + $0x64] sm:$0xf]
        %v227 = vld [vmem:[%s168 + $0x6c] sm:$0xf]
        %v228 = vld [vmem:[%s168 + $0x70] sm:$0xf]
        %v229 = vld [vmem:[%s168 + $0x78] sm:$0xf]
        %v230 = vld [vmem:[%s168 + $0x7c] sm:$0xf]
        %v231 = vld [vmem:[%s168 + $0x84] sm:$0xf]
        %v232 = vld [vmem:[%s168 + $0x88] sm:$0xf]
        %v233 = vld [vmem:[%s168 + $0x90] sm:$0xf]
        %v234 = vld [vmem:[%s168 + $0x94] sm:$0xf]
        %v235 = vld [vmem:[%s168 + $0x9c] sm:$0xf]
        %v236 = vld [vmem:[%s168 + $0xa0] sm:$0xf]
        %v237 = vld [vmem:[%s168 + $0xa8] sm:$0xf]
        %v238 = vld [vmem:[%s168 + $0xac] sm:$0xf]
        %v239 = vld [vmem:[%s168 + $0xb4] sm:$0xf]
        %v240 = vld [vmem:[%s168 + $0xb8] sm:$0xf]
        %v241 = vld [vmem:[#allocation2] sm:$0xff]
        %v242 = vld [vmem:[#allocation2 + $0x8] sm:$0xff]
        %v243 = vld [vmem:[#allocation2 + $0x10] sm:$0xff]
        %v244 = vld [vmem:[#allocation2 + $0x18] sm:$0xff]
        %v245 = vld [vmem:[#allocation2 + $0x20] sm:$0xff]
        %v246 = vld [vmem:[#allocation2 + $0x28] sm:$0xff]
        %v247 = vld [vmem:[#allocation2 + $0x30] sm:$0xff]
        %v248 = vld [vmem:[#allocation2 + $0x38] sm:$0xff]
        %v249 = vld [vmem:[#allocation2 + $0x40] sm:$0xff]
        %v250 = vld [vmem:[#allocation2 + $0x48] sm:$0xff]
        %v251 = vld [vmem:[#allocation2 + $0x50] sm:$0xff]
        %v252 = vld [vmem:[#allocation2 + $0x58] sm:$0xff]
        %v253 = vld [vmem:[#allocation2 + $0x60] sm:$0xff]
        %v254 = vld [vmem:[#allocation2 + $0x68] sm:$0xff]
        %v255 = vld [vmem:[#allocation2 + $0x70] sm:$0xff]
        %v256 = vld [vmem:[#allocation2 + $0x78] sm:$0xff]
        %v257 = vld [vmem:[#allocation2 + $0x80] sm:$0xff]
        %v258 = vld [vmem:[#allocation2 + $0x88] sm:$0xff]
        %v259 = vld [vmem:[#allocation2 + $0x90] sm:$0xff]
        %v260 = vld [vmem:[#allocation2 + $0x98] sm:$0xff]
        %v261 = vld [vmem:[#allocation2 + $0xa0] sm:$0xff]
        %v262 = vld [vmem:[#allocation2 + $0xa8] sm:$0xff]
        %v263 = vld [vmem:[#allocation2 + $0xb0] sm:$0xff]
        %v264 = vld [vmem:[#allocation2 + $0xb8] sm:$0xff]
        %v265 = vld [vmem:[#allocation2 + $0xc0] sm:$0xff]
        %v266 = vld [vmem:[#allocation2 + $0xc8] sm:$0xff]
        %v267 = vld [vmem:[#allocation2 + $0xd0] sm:$0xff]
        %v268 = vld [vmem:[#allocation2 + $0xd8] sm:$0xff]
        %v269 = vld [vmem:[#allocation2 + $0xe0] sm:$0xff]
        %v270 = vld [vmem:[#allocation2 + $0xe8] sm:$0xff]
        %v271 = vld [vmem:[#allocation2 + $0xf0] sm:$0xff]
        %v272 = vld [vmem:[#allocation2 + $0xf8] sm:$0xff]
        %v273 = vld [vmem:[%s1] sm:$0xf]
        %v274 = vld [vmem:[%s1 + $0x4] sm:$0xf]
        %v275 = vld [vmem:[%s1 + $0x8] sm:$0xf]
        %v276 = vld [vmem:[%s1 + $0xc] sm:$0xf]
        %v309 = vunpack.c.l.b16 %v209
        %v310 = vunpack.c.l.b16 %v210
        %v311 = vunpack.c.l.b16 %v211
        %v312 = vunpack.c.l.b16 %v212
        %v313 = vunpack.c.l.b16 %v213
        %v314 = vunpack.c.l.b16 %v214
        %v315 = vunpack.c.l.b16 %v215
        %v316 = vunpack.c.l.b16 %v216
        %v317 = vunpack.c.l.b16 %v217
        %v318 = vunpack.c.l.b16 %v218
        %v319 = vunpack.c.l.b16 %v219
        %v320 = vunpack.c.l.b16 %v220
        %v321 = vunpack.c.l.b16 %v221
        %v322 = vunpack.c.l.b16 %v222
        %v323 = vunpack.c.l.b16 %v223
        %v324 = vunpack.c.l.b16 %v224
        %v325 = vunpack.c.l.b16 %v225
        %v326 = vunpack.c.l.b16 %v226
        %v327 = vunpack.c.l.b16 %v227
        %v328 = vunpack.c.l.b16 %v228
        %v329 = vunpack.c.l.b16 %v229
        %v330 = vunpack.c.l.b16 %v230
        %v331 = vunpack.c.l.b16 %v231
        %v332 = vunpack.c.l.b16 %v232
        %v333 = vunpack.c.l.b16 %v233
        %v334 = vunpack.c.l.b16 %v234
        %v335 = vunpack.c.l.b16 %v235
        %v336 = vunpack.c.l.b16 %v236
        %v337 = vunpack.c.l.b16 %v237
        %v338 = vunpack.c.l.b16 %v238
        %v339 = vunpack.c.l.b16 %v239
        %v340 = vunpack.c.l.b16 %v240
        %v341 = vpack.c.b16 %v310, %v309
        %v342 = vpack.c.b16 %v312, %v311
        %v343 = vpack.c.b16 %v314, %v313
        %v344 = vpack.c.b16 %v316, %v315
        %v345 = vpack.c.b16 %v318, %v317
        %v346 = vpack.c.b16 %v320, %v319
        %v347 = vpack.c.b16 %v322, %v321
        %v348 = vpack.c.b16 %v324, %v323
        %v349 = vpack.c.b16 %v326, %v325
        %v350 = vpack.c.b16 %v328, %v327
        %v351 = vpack.c.b16 %v330, %v329
        %v352 = vpack.c.b16 %v332, %v331
        %v353 = vpack.c.b16 %v334, %v333
        %v354 = vpack.c.b16 %v336, %v335
        %v355 = vpack.c.b16 %v338, %v337
        %v356 = vpack.c.b16 %v340, %v339
        %v361 = vunpack.c.l.b16 %v273
        %v362 = vunpack.c.l.b16 %v274
        %v363 = vunpack.c.l.b16 %v275
        %v364 = vunpack.c.l.b16 %v276
        %v365 = vpack.c.b16 %v362, %v361
        %v366 = vpack.c.b16 %v364, %v363
        %vm369 = vcmask 261120
        %v371 = vsel %vm369, %v341, 0
        %v374 = vsel %vm369, %v342, 0
        %v377 = vsel %vm369, %v343, 0
        %v380 = vsel %vm369, %v344, 0
        %v383 = vsel %vm369, %v345, 0
        %v386 = vsel %vm369, %v346, 0
        %v389 = vsel %vm369, %v347, 0
        %v392 = vsel %vm369, %v348, 0
        %v395 = vsel %vm369, %v349, 0
        %v398 = vsel %vm369, %v350, 0
        %v401 = vsel %vm369, %v351, 0
        %v404 = vsel %vm369, %v352, 0
        %v407 = vsel %vm369, %v353, 0
        %v410 = vsel %vm369, %v354, 0
        %v413 = vsel %vm369, %v355, 0
        %v416 = vsel %vm369, %v356, 0
        %418 = vmatprep.subr.bf16.mxu0 0
        %419 = vmatpush1.bf16.msra.mxu0 %v365
        %420 = vmatprep.subr.bf16.mxu0 0
        %421 = vmatpush1.bf16.msra.mxu0 %v366
        %422 = vmatprep.subr.bf16.mxu0 0
        %423 = vmatpush1.bf16.msra.mxu0 0
        %424 = vmatprep.subr.bf16.mxu0 0
        %425 = vmatpush1.bf16.msra.mxu0 0
        %426 = vmatprep.subr.bf16.mxu0 0
        %427 = vmatpush1.bf16.msra.mxu0 0
        %428 = vmatprep.subr.bf16.mxu0 0
        %429 = vmatpush1.bf16.msra.mxu0 0
        %430 = vmatprep.subr.bf16.mxu0 0
        %431 = vmatpush1.bf16.msra.mxu0 0
        %432 = vmatprep.subr.bf16.mxu0 0
        %433 = vmatpush1.bf16.msra.mxu0 0
        %434 = vmatprep.subr.bf16.mxu0 0
        %435 = vmatpush1.bf16.msra.mxu0 0
        %436 = vmatprep.subr.bf16.mxu0 0
        %437 = vmatpush1.bf16.msra.mxu0 0
        %438 = vmatprep.subr.bf16.mxu0 0
        %439 = vmatpush1.bf16.msra.mxu0 0
        %440 = vmatprep.subr.bf16.mxu0 0
        %441 = vmatpush1.bf16.msra.mxu0 0
        %442 = vmatprep.subr.bf16.mxu0 0
        %443 = vmatpush1.bf16.msra.mxu0 0
        %444 = vmatprep.subr.bf16.mxu0 0
        %445 = vmatpush1.bf16.msra.mxu0 0
        %446 = vmatprep.subr.bf16.mxu0 0
        %447 = vmatpush1.bf16.msra.mxu0 0
        %448 = vmatprep.subr.bf16.mxu0 0
        %449 = vmatpush1.bf16.msra.mxu0 0
        %450 = vmatprep.mubr.bf16.mxu0 0
        %451 = vmatmul.mubr.bf16.gmra.mrb[0].mxu0 %v371
        %v452 = vpop.f32.mrb[0].mxu0
        %v453 = vadd.f32 0.0, %v452
        %v454 = vpop.f32.mrb[0].mxu0
        %v455 = vpop.f32.mrb[0].mxu0
        %v456 = vadd.f32 0.0, %v455
        %v457 = vpop.f32.mrb[0].mxu0
        %458 = vmatprep.mubr.bf16.mxu0 0
        %459 = vmatmul.mubr.bf16.gmra.mrb[0].mxu0 %v374
        %v460 = vpop.f32.mrb[0].mxu0
        %v461 = vadd.f32 0.0, %v460
        %v462 = vpop.f32.mrb[0].mxu0
        %v463 = vpop.f32.mrb[0].mxu0
        %v464 = vadd.f32 0.0, %v463
        %v465 = vpop.f32.mrb[0].mxu0
        %466 = vmatprep.mubr.bf16.mxu0 0
        %467 = vmatmul.mubr.bf16.gmra.mrb[0].mxu0 %v377
        %v468 = vpop.f32.mrb[0].mxu0
        %v469 = vadd.f32 0.0, %v468
        %v470 = vpop.f32.mrb[0].mxu0
        %v471 = vpop.f32.mrb[0].mxu0
        %v472 = vadd.f32 0.0, %v471
        %v473 = vpop.f32.mrb[0].mxu0
        %474 = vmatprep.mubr.bf16.mxu0 0
        %475 = vmatmul.mubr.bf16.gmra.mrb[0].mxu0 %v380
        %v476 = vpop.f32.mrb[0].mxu0
        %v477 = vadd.f32 0.0, %v476
        %v478 = vpop.f32.mrb[0].mxu0
        %v479 = vpop.f32.mrb[0].mxu0
        %v480 = vadd.f32 0.0, %v479
        %v481 = vpop.f32.mrb[0].mxu0
        %482 = vmatprep.mubr.bf16.mxu0 0
        %483 = vmatmul.mubr.bf16.gmra.mrb[0].mxu0 %v383
        %v484 = vpop.f32.mrb[0].mxu0
        %v485 = vadd.f32 0.0, %v484
        %v486 = vpop.f32.mrb[0].mxu0
        %v487 = vpop.f32.mrb[0].mxu0
        %v488 = vadd.f32 0.0, %v487
        %v489 = vpop.f32.mrb[0].mxu0
        %490 = vmatprep.mubr.bf16.mxu0 0
        %491 = vmatmul.mubr.bf16.gmra.mrb[0].mxu0 %v386
        %v492 = vpop.f32.mrb[0].mxu0
        %v493 = vadd.f32 0.0, %v492
        %v494 = vpop.f32.mrb[0].mxu0
        %v495 = vpop.f32.mrb[0].mxu0
        %v496 = vadd.f32 0.0, %v495
        %v497 = vpop.f32.mrb[0].mxu0
        %498 = vmatprep.mubr.bf16.mxu0 0
        %499 = vmatmul.mubr.bf16.gmra.mrb[0].mxu0 %v389
        %v500 = vpop.f32.mrb[0].mxu0
        %v501 = vadd.f32 0.0, %v500
        %v502 = vpop.f32.mrb[0].mxu0
        %v503 = vpop.f32.mrb[0].mxu0
        %v504 = vadd.f32 0.0, %v503
        %v505 = vpop.f32.mrb[0].mxu0
        %506 = vmatprep.mubr.bf16.mxu0 0
        %507 = vmatmul.mubr.bf16.gmra.mrb[0].mxu0 %v392
        %v508 = vpop.f32.mrb[0].mxu0
        %v509 = vadd.f32 0.0, %v508
        %v510 = vpop.f32.mrb[0].mxu0
        %v511 = vpop.f32.mrb[0].mxu0
        %v512 = vadd.f32 0.0, %v511
        %v513 = vpop.f32.mrb[0].mxu0
        %514 = vmatprep.mubr.bf16.mxu0 0
        %515 = vmatmul.mubr.bf16.gmra.mrb[0].mxu0 %v395
        %v516 = vpop.f32.mrb[0].mxu0
        %v517 = vadd.f32 0.0, %v516
        %v518 = vpop.f32.mrb[0].mxu0
        %v519 = vpop.f32.mrb[0].mxu0
        %v520 = vadd.f32 0.0, %v519
        %v521 = vpop.f32.mrb[0].mxu0
        %522 = vmatprep.mubr.bf16.mxu0 0
        %523 = vmatmul.mubr.bf16.gmra.mrb[0].mxu0 %v398
        %v524 = vpop.f32.mrb[0].mxu0
        %v525 = vadd.f32 0.0, %v524
        %v526 = vpop.f32.mrb[0].mxu0
        %v527 = vpop.f32.mrb[0].mxu0
        %v528 = vadd.f32 0.0, %v527
        %v529 = vpop.f32.mrb[0].mxu0
        %530 = vmatprep.mubr.bf16.mxu0 0
        %531 = vmatmul.mubr.bf16.gmra.mrb[0].mxu0 %v401
        %v532 = vpop.f32.mrb[0].mxu0
        %v533 = vadd.f32 0.0, %v532
        %v534 = vpop.f32.mrb[0].mxu0
        %v535 = vpop.f32.mrb[0].mxu0
        %v536 = vadd.f32 0.0, %v535
        %v537 = vpop.f32.mrb[0].mxu0
        %538 = vmatprep.mubr.bf16.mxu0 0
        %539 = vmatmul.mubr.bf16.gmra.mrb[0].mxu0 %v404
        %v540 = vpop.f32.mrb[0].mxu0
        %v541 = vadd.f32 0.0, %v540
        %v542 = vpop.f32.mrb[0].mxu0
        %v543 = vpop.f32.mrb[0].mxu0
        %v544 = vadd.f32 0.0, %v543
        %v545 = vpop.f32.mrb[0].mxu0
        %546 = vmatprep.mubr.bf16.mxu0 0
        %547 = vmatmul.mubr.bf16.gmra.mrb[0].mxu0 %v407
        %v548 = vpop.f32.mrb[0].mxu0
        %v549 = vadd.f32 0.0, %v548
        %v550 = vpop.f32.mrb[0].mxu0
        %v551 = vpop.f32.mrb[0].mxu0
        %v552 = vadd.f32 0.0, %v551
        %v553 = vpop.f32.mrb[0].mxu0
        %554 = vmatprep.mubr.bf16.mxu0 0
        %555 = vmatmul.mubr.bf16.gmra.mrb[0].mxu0 %v410
        %v556 = vpop.f32.mrb[0].mxu0
        %v557 = vadd.f32 0.0, %v556
        %v558 = vpop.f32.mrb[0].mxu0
        %v559 = vpop.f32.mrb[0].mxu0
        %v560 = vadd.f32 0.0, %v559
        %v561 = vpop.f32.mrb[0].mxu0
        %562 = vmatprep.mubr.bf16.mxu0 0
        %563 = vmatmul.mubr.bf16.gmra.mrb[0].mxu0 %v413
        %v564 = vpop.f32.mrb[0].mxu0
        %v565 = vadd.f32 0.0, %v564
        %v566 = vpop.f32.mrb[0].mxu0
        %v567 = vpop.f32.mrb[0].mxu0
        %v568 = vadd.f32 0.0, %v567
        %v569 = vpop.f32.mrb[0].mxu0
        %570 = vmatprep.mubr.bf16.mxu0 0
        %571 = vmatmul.mubr.bf16.gmra.mrb[0].mxu0 %v416
        %v572 = vpop.f32.mrb[0].mxu0
        %v573 = vadd.f32 0.0, %v572
        %v574 = vpop.f32.mrb[0].mxu0
        %v575 = vpop.f32.mrb[0].mxu0
        %v576 = vadd.f32 0.0, %v575
        %v577 = vpop.f32.mrb[0].mxu0
        %578 = vdwg.mxu0
        %v579 = vadd.f32 %v241, %v453
        %v580 = vadd.f32 %v242, %v456
        %v581 = vadd.f32 %v243, %v461
        %v582 = vadd.f32 %v244, %v464
        %v583 = vadd.f32 %v245, %v469
        %v584 = vadd.f32 %v246, %v472
        %v585 = vadd.f32 %v247, %v477
        %v586 = vadd.f32 %v248, %v480
        %v587 = vadd.f32 %v249, %v485
        %v588 = vadd.f32 %v250, %v488
        %v589 = vadd.f32 %v251, %v493
        %v590 = vadd.f32 %v252, %v496
        %v591 = vadd.f32 %v253, %v501
        %v592 = vadd.f32 %v254, %v504
        %v593 = vadd.f32 %v255, %v509
        %v594 = vadd.f32 %v256, %v512
        %v595 = vadd.f32 %v257, %v517
        %v596 = vadd.f32 %v258, %v520
        %v597 = vadd.f32 %v259, %v525
        %v598 = vadd.f32 %v260, %v528
        %v599 = vadd.f32 %v261, %v533
        %v600 = vadd.f32 %v262, %v536
        %v601 = vadd.f32 %v263, %v541
        %v602 = vadd.f32 %v264, %v544
        %v603 = vadd.f32 %v265, %v549
        %v604 = vadd.f32 %v266, %v552
        %v605 = vadd.f32 %v267, %v557
        %v606 = vadd.f32 %v268, %v560
        %v607 = vadd.f32 %v269, %v565
        %v608 = vadd.f32 %v270, %v568
        %v609 = vadd.f32 %v271, %v573
        %v610 = vadd.f32 %v272, %v576
        %611 = vst [vmem:[#allocation2] sm:$0xff] %v579
        %612 = vst [vmem:[#allocation2 + $0x8] sm:$0xff] %v580
        %613 = vst [vmem:[#allocation2 + $0x10] sm:$0xff] %v581
        %614 = vst [vmem:[#allocation2 + $0x18] sm:$0xff] %v582
        %615 = vst [vmem:[#allocation2 + $0x20] sm:$0xff] %v583
        %616 = vst [vmem:[#allocation2 + $0x28] sm:$0xff] %v584
        %617 = vst [vmem:[#allocation2 + $0x30] sm:$0xff] %v585
        %618 = vst [vmem:[#allocation2 + $0x38] sm:$0xff] %v586
        %619 = vst [vmem:[#allocation2 + $0x40] sm:$0xff] %v587
        %620 = vst [vmem:[#allocation2 + $0x48] sm:$0xff] %v588
        %621 = vst [vmem:[#allocation2 + $0x50] sm:$0xff] %v589
        %622 = vst [vmem:[#allocation2 + $0x58] sm:$0xff] %v590
        %623 = vst [vmem:[#allocation2 + $0x60] sm:$0xff] %v591
        %624 = vst [vmem:[#allocation2 + $0x68] sm:$0xff] %v592
        %625 = vst [vmem:[#allocation2 + $0x70] sm:$0xff] %v593
        %626 = vst [vmem:[#allocation2 + $0x78] sm:$0xff] %v594
        %627 = vst [vmem:[#allocation2 + $0x80] sm:$0xff] %v595
        %628 = vst [vmem:[#allocation2 + $0x88] sm:$0xff] %v596
        %629 = vst [vmem:[#allocation2 + $0x90] sm:$0xff] %v597
        %630 = vst [vmem:[#allocation2 + $0x98] sm:$0xff] %v598
        %631 = vst [vmem:[#allocation2 + $0xa0] sm:$0xff] %v599
        %632 = vst [vmem:[#allocation2 + $0xa8] sm:$0xff] %v600
        %633 = vst [vmem:[#allocation2 + $0xb0] sm:$0xff] %v601
        %634 = vst [vmem:[#allocation2 + $0xb8] sm:$0xff] %v602
        %635 = vst [vmem:[#allocation2 + $0xc0] sm:$0xff] %v603
        %636 = vst [vmem:[#allocation2 + $0xc8] sm:$0xff] %v604
        %637 = vst [vmem:[#allocation2 + $0xd0] sm:$0xff] %v605
        %638 = vst [vmem:[#allocation2 + $0xd8] sm:$0xff] %v606
        %639 = vst [vmem:[#allocation2 + $0xe0] sm:$0xff] %v607
        %640 = vst [vmem:[#allocation2 + $0xe8] sm:$0xff] %v608
        %641 = vst [vmem:[#allocation2 + $0xf0] sm:$0xff] %v609
        %642 = vst [vmem:[#allocation2 + $0xf8] sm:$0xff] %v610
        %v643 = vld [vmem:[%s168] sm:$0xe]
        %v644 = vld [vmem:[%s168 + $0x4] sm:$0xf]
        %v645 = vld [vmem:[%s168 + $0x8] sm:$0x1]
        %v646 = vld [vmem:[%s168 + $0xc] sm:$0xe]
        %v647 = vld [vmem:[%s168 + $0x10] sm:$0xf]
        %v648 = vld [vmem:[%s168 + $0x14] sm:$0x1]
        %v649 = vld [vmem:[%s168 + $0x18] sm:$0xe]
        %v650 = vld [vmem:[%s168 + $0x1c] sm:$0xf]
        %v651 = vld [vmem:[%s168 + $0x20] sm:$0x1]
        %v652 = vld [vmem:[%s168 + $0x24] sm:$0xe]
        %v653 = vld [vmem:[%s168 + $0x28] sm:$0xf]
        %v654 = vld [vmem:[%s168 + $0x2c] sm:$0x1]
        %v655 = vld [vmem:[%s168 + $0x30] sm:$0xe]
        %v656 = vld [vmem:[%s168 + $0x34] sm:$0xf]
        %v657 = vld [vmem:[%s168 + $0x38] sm:$0x1]
        %v658 = vld [vmem:[%s168 + $0x3c] sm:$0xe]
        %v659 = vld [vmem:[%s168 + $0x40] sm:$0xf]
        %v660 = vld [vmem:[%s168 + $0x44] sm:$0x1]
        %v661 = vld [vmem:[%s168 + $0x48] sm:$0xe]
        %v662 = vld [vmem:[%s168 + $0x4c] sm:$0xf]
        %v663 = vld [vmem:[%s168 + $0x50] sm:$0x1]
        %v664 = vld [vmem:[%s168 + $0x54] sm:$0xe]
        %v665 = vld [vmem:[%s168 + $0x58] sm:$0xf]
        %v666 = vld [vmem:[%s168 + $0x5c] sm:$0x1]
        %v667 = vld [vmem:[%s168 + $0x60] sm:$0xe]
        %v668 = vld [vmem:[%s168 + $0x64] sm:$0xf]
        %v669 = vld [vmem:[%s168 + $0x68] sm:$0x1]
        %v670 = vld [vmem:[%s168 + $0x6c] sm:$0xe]
        %v671 = vld [vmem:[%s168 + $0x70] sm:$0xf]
        %v672 = vld [vmem:[%s168 + $0x74] sm:$0x1]
        %v673 = vld [vmem:[%s168 + $0x78] sm:$0xe]
        %v674 = vld [vmem:[%s168 + $0x7c] sm:$0xf]
        %v675 = vld [vmem:[%s168 + $0x80] sm:$0x1]
        %v676 = vld [vmem:[%s168 + $0x84] sm:$0xe]
        %v677 = vld [vmem:[%s168 + $0x88] sm:$0xf]
        %v678 = vld [vmem:[%s168 + $0x8c] sm:$0x1]
        %v679 = vld [vmem:[%s168 + $0x90] sm:$0xe]
        %v680 = vld [vmem:[%s168 + $0x94] sm:$0xf]
        %v681 = vld [vmem:[%s168 + $0x98] sm:$0x1]
        %v682 = vld [vmem:[%s168 + $0x9c] sm:$0xe]
        %v683 = vld [vmem:[%s168 + $0xa0] sm:$0xf]
        %v684 = vld [vmem:[%s168 + $0xa4] sm:$0x1]
        %v685 = vld [vmem:[%s168 + $0xa8] sm:$0xe]
        %v686 = vld [vmem:[%s168 + $0xac] sm:$0xf]
        %v687 = vld [vmem:[%s168 + $0xb0] sm:$0x1]
        %v688 = vld [vmem:[%s168 + $0xb4] sm:$0xe]
        %v689 = vld [vmem:[%s168 + $0xb8] sm:$0xf]
        %v690 = vld [vmem:[%s168 + $0xbc] sm:$0x1]
        %vm739 = vcmask 1042432
        %vm740 = vcmask 1046532
        %vm741 = vmor %vm739, %vm740
        %v742 = vrot.slane %v643, 5
        %v743 = vrot.slane %v742, 4
        %v744 = vrot.slane %v644, 5
        %v745 = vsel %vm741, %v743, %v744
        %v746 = vrot.slane %v744, 4
        %v747 = vrot.slane %v645, 5
        %v748 = vsel %vm741, %v746, %v747
        %v749 = vrot.slane %v646, 5
        %v750 = vrot.slane %v749, 4
        %v751 = vrot.slane %v647, 5
        %v752 = vsel %vm741, %v750, %v751
        %v753 = vrot.slane %v751, 4
        %v754 = vrot.slane %v648, 5
        %v755 = vsel %vm741, %v753, %v754
        %v756 = vrot.slane %v649, 5
        %v757 = vrot.slane %v756, 4
        %v758 = vrot.slane %v650, 5
        %v759 = vsel %vm741, %v757, %v758
        %v760 = vrot.slane %v758, 4
        %v761 = vrot.slane %v651, 5
        %v762 = vsel %vm741, %v760, %v761
        %v763 = vrot.slane %v652, 5
        %v764 = vrot.slane %v763, 4
        %v765 = vrot.slane %v653, 5
        %v766 = vsel %vm741, %v764, %v765
        %v767 = vrot.slane %v765, 4
        %v768 = vrot.slane %v654, 5
        %v769 = vsel %vm741, %v767, %v768
        %v770 = vrot.slane %v655, 5
        %v771 = vrot.slane %v770, 4
        %v772 = vrot.slane %v656, 5
        %v773 = vsel %vm741, %v771, %v772
        %v774 = vrot.slane %v772, 4
        %v775 = vrot.slane %v657, 5
        %v776 = vsel %vm741, %v774, %v775
        %v777 = vrot.slane %v658, 5
        %v778 = vrot.slane %v777, 4
        %v779 = vrot.slane %v659, 5
        %v780 = vsel %vm741, %v778, %v779
        %v781 = vrot.slane %v779, 4
        %v782 = vrot.slane %v660, 5
        %v783 = vsel %vm741, %v781, %v782
        %v784 = vrot.slane %v661, 5
        %v785 = vrot.slane %v784, 4
        %v786 = vrot.slane %v662, 5
        %v787 = vsel %vm741, %v785, %v786
        %v788 = vrot.slane %v786, 4
        %v789 = vrot.slane %v663, 5
        %v790 = vsel %vm741, %v788, %v789
        %v791 = vrot.slane %v664, 5
        %v792 = vrot.slane %v791, 4
        %v793 = vrot.slane %v665, 5
        %v794 = vsel %vm741, %v792, %v793
        %v795 = vrot.slane %v793, 4
        %v796 = vrot.slane %v666, 5
        %v797 = vsel %vm741, %v795, %v796
        %v798 = vrot.slane %v667, 5
        %v799 = vrot.slane %v798, 4
        %v800 = vrot.slane %v668, 5
        %v801 = vsel %vm741, %v799, %v800
        %v802 = vrot.slane %v800, 4
        %v803 = vrot.slane %v669, 5
        %v804 = vsel %vm741, %v802, %v803
        %v805 = vrot.slane %v670, 5
        %v806 = vrot.slane %v805, 4
        %v807 = vrot.slane %v671, 5
        %v808 = vsel %vm741, %v806, %v807
        %v809 = vrot.slane %v807, 4
        %v810 = vrot.slane %v672, 5
        %v811 = vsel %vm741, %v809, %v810
        %v812 = vrot.slane %v673, 5
        %v813 = vrot.slane %v812, 4
        %v814 = vrot.slane %v674, 5
        %v815 = vsel %vm741, %v813, %v814
        %v816 = vrot.slane %v814, 4
        %v817 = vrot.slane %v675, 5
        %v818 = vsel %vm741, %v816, %v817
        %v819 = vrot.slane %v676, 5
        %v820 = vrot.slane %v819, 4
        %v821 = vrot.slane %v677, 5
        %v822 = vsel %vm741, %v820, %v821
        %v823 = vrot.slane %v821, 4
        %v824 = vrot.slane %v678, 5
        %v825 = vsel %vm741, %v823, %v824
        %v826 = vrot.slane %v679, 5
        %v827 = vrot.slane %v826, 4
        %v828 = vrot.slane %v680, 5
        %v829 = vsel %vm741, %v827, %v828
        %v830 = vrot.slane %v828, 4
        %v831 = vrot.slane %v681, 5
        %v832 = vsel %vm741, %v830, %v831
        %v833 = vrot.slane %v682, 5
        %v834 = vrot.slane %v833, 4
        %v835 = vrot.slane %v683, 5
        %v836 = vsel %vm741, %v834, %v835
        %v837 = vrot.slane %v835, 4
        %v838 = vrot.slane %v684, 5
        %v839 = vsel %vm741, %v837, %v838
        %v840 = vrot.slane %v685, 5
        %v841 = vrot.slane %v840, 4
        %v842 = vrot.slane %v686, 5
        %v843 = vsel %vm741, %v841, %v842
        %v844 = vrot.slane %v842, 4
        %v845 = vrot.slane %v687, 5
        %v846 = vsel %vm741, %v844, %v845
        %v847 = vrot.slane %v688, 5
        %v848 = vrot.slane %v847, 4
        %v849 = vrot.slane %v689, 5
        %v850 = vsel %vm741, %v848, %v849
        %v851 = vrot.slane %v849, 4
        %v852 = vrot.slane %v690, 5
        %v853 = vsel %vm741, %v851, %v852
        %v854 = vld [vmem:[#allocation2] sm:$0xff]
        %v855 = vld [vmem:[#allocation2 + $0x8] sm:$0xff]
        %v856 = vld [vmem:[#allocation2 + $0x10] sm:$0xff]
        %v857 = vld [vmem:[#allocation2 + $0x18] sm:$0xff]
        %v858 = vld [vmem:[#allocation2 + $0x20] sm:$0xff]
        %v859 = vld [vmem:[#allocation2 + $0x28] sm:$0xff]
        %v860 = vld [vmem:[#allocation2 + $0x30] sm:$0xff]
        %v861 = vld [vmem:[#allocation2 + $0x38] sm:$0xff]
        %v862 = vld [vmem:[#allocation2 + $0x40] sm:$0xff]
        %v863 = vld [vmem:[#allocation2 + $0x48] sm:$0xff]
        %v864 = vld [vmem:[#allocation2 + $0x50] sm:$0xff]
        %v865 = vld [vmem:[#allocation2 + $0x58] sm:$0xff]
        %v866 = vld [vmem:[#allocation2 + $0x60] sm:$0xff]
        %v867 = vld [vmem:[#allocation2 + $0x68] sm:$0xff]
        %v868 = vld [vmem:[#allocation2 + $0x70] sm:$0xff]
        %v869 = vld [vmem:[#allocation2 + $0x78] sm:$0xff]
        %v870 = vld [vmem:[#allocation2 + $0x80] sm:$0xff]
        %v871 = vld [vmem:[#allocation2 + $0x88] sm:$0xff]
        %v872 = vld [vmem:[#allocation2 + $0x90] sm:$0xff]
        %v873 = vld [vmem:[#allocation2 + $0x98] sm:$0xff]
        %v874 = vld [vmem:[#allocation2 + $0xa0] sm:$0xff]
        %v875 = vld [vmem:[#allocation2 + $0xa8] sm:$0xff]
        %v876 = vld [vmem:[#allocation2 + $0xb0] sm:$0xff]
        %v877 = vld [vmem:[#allocation2 + $0xb8] sm:$0xff]
        %v878 = vld [vmem:[#allocation2 + $0xc0] sm:$0xff]
        %v879 = vld [vmem:[#allocation2 + $0xc8] sm:$0xff]
        %v880 = vld [vmem:[#allocation2 + $0xd0] sm:$0xff]
        %v881 = vld [vmem:[#allocation2 + $0xd8] sm:$0xff]
        %v882 = vld [vmem:[#allocation2 + $0xe0] sm:$0xff]
        %v883 = vld [vmem:[#allocation2 + $0xe8] sm:$0xff]
        %v884 = vld [vmem:[#allocation2 + $0xf0] sm:$0xff]
        %v885 = vld [vmem:[#allocation2 + $0xf8] sm:$0xff]
        %s886 = scalar_lea.vmem %s1, 16
        %v887 = vld [vmem:[%s886] sm:$0xf]
        %v888 = vld [vmem:[%s886 + $0x4] sm:$0xf]
        %v889 = vld [vmem:[%s886 + $0x8] sm:$0xf]
        %v890 = vld [vmem:[%s886 + $0xc] sm:$0xf]
        %v891 = vunpack.c.l.b16 %v745
        %v892 = vunpack.c.l.b16 %v748
        %v893 = vunpack.c.l.b16 %v752
        %v894 = vunpack.c.l.b16 %v755
        %v895 = vunpack.c.l.b16 %v759
        %v896 = vunpack.c.l.b16 %v762
        %v897 = vunpack.c.l.b16 %v766
        %v898 = vunpack.c.l.b16 %v769
        %v899 = vunpack.c.l.b16 %v773
        %v900 = vunpack.c.l.b16 %v776
        %v901 = vunpack.c.l.b16 %v780
        %v902 = vunpack.c.l.b16 %v783
        %v903 = vunpack.c.l.b16 %v787
        %v904 = vunpack.c.l.b16 %v790
        %v905 = vunpack.c.l.b16 %v794
        %v906 = vunpack.c.l.b16 %v797
        %v907 = vunpack.c.l.b16 %v801
        %v908 = vunpack.c.l.b16 %v804
        %v909 = vunpack.c.l.b16 %v808
        %v910 = vunpack.c.l.b16 %v811
        %v911 = vunpack.c.l.b16 %v815
        %v912 = vunpack.c.l.b16 %v818
        %v913 = vunpack.c.l.b16 %v822
        %v914 = vunpack.c.l.b16 %v825
        %v915 = vunpack.c.l.b16 %v829
        %v916 = vunpack.c.l.b16 %v832
        %v917 = vunpack.c.l.b16 %v836
        %v918 = vunpack.c.l.b16 %v839
        %v919 = vunpack.c.l.b16 %v843
        %v920 = vunpack.c.l.b16 %v846
        %v921 = vunpack.c.l.b16 %v850
        %v922 = vunpack.c.l.b16 %v853
        %v923 = vpack.c.b16 %v892, %v891
        %v924 = vpack.c.b16 %v894, %v893
        %v925 = vpack.c.b16 %v896, %v895
        %v926 = vpack.c.b16 %v898, %v897
        %v927 = vpack.c.b16 %v900, %v899
        %v928 = vpack.c.b16 %v902, %v901
        %v929 = vpack.c.b16 %v904, %v903
        %v930 = vpack.c.b16 %v906, %v905
        %v931 = vpack.c.b16 %v908, %v907
        %v932 = vpack.c.b16 %v910, %v909
        %v933 = vpack.c.b16 %v912, %v911
        %v934 = vpack.c.b16 %v914, %v913
        %v935 = vpack.c.b16 %v916, %v915
        %v936 = vpack.c.b16 %v918, %v917
        %v937 = vpack.c.b16 %v920, %v919
        %v938 = vpack.c.b16 %v922, %v921
        %v943 = vunpack.c.l.b16 %v887
        %v944 = vunpack.c.l.b16 %v888
        %v945 = vunpack.c.l.b16 %v889
        %v946 = vunpack.c.l.b16 %v890
        %v947 = vpack.c.b16 %v944, %v943
        %v948 = vpack.c.b16 %v946, %v945
        %v952 = vsel %vm369, %v923, 0
        %v955 = vsel %vm369, %v924, 0
        %v958 = vsel %vm369, %v925, 0
        %v961 = vsel %vm369, %v926, 0
        %v964 = vsel %vm369, %v927, 0
        %v967 = vsel %vm369, %v928, 0
        %v970 = vsel %vm369, %v929, 0
        %v973 = vsel %vm369, %v930, 0
        %v976 = vsel %vm369, %v931, 0
        %v979 = vsel %vm369, %v932, 0
        %v982 = vsel %vm369, %v933, 0
        %v985 = vsel %vm369, %v934, 0
        %v988 = vsel %vm369, %v935, 0
        %v991 = vsel %vm369, %v936, 0
        %v994 = vsel %vm369, %v937, 0
        %v997 = vsel %vm369, %v938, 0
        %999 = vmatprep.subr.bf16.mxu0 0
        %1000 = vmatpush1.bf16.msra.mxu0 %v947
        %1001 = vmatprep.subr.bf16.mxu0 0
        %1002 = vmatpush1.bf16.msra.mxu0 %v948
        %1003 = vmatprep.subr.bf16.mxu0 0
        %1004 = vmatpush1.bf16.msra.mxu0 0
        %1005 = vmatprep.subr.bf16.mxu0 0
        %1006 = vmatpush1.bf16.msra.mxu0 0
        %1007 = vmatprep.subr.bf16.mxu0 0
        %1008 = vmatpush1.bf16.msra.mxu0 0
        %1009 = vmatprep.subr.bf16.mxu0 0
        %1010 = vmatpush1.bf16.msra.mxu0 0
        %1011 = vmatprep.subr.bf16.mxu0 0
        %1012 = vmatpush1.bf16.msra.mxu0 0
        %1013 = vmatprep.subr.bf16.mxu0 0
        %1014 = vmatpush1.bf16.msra.mxu0 0
        %1015 = vmatprep.subr.bf16.mxu0 0
        %1016 = vmatpush1.bf16.msra.mxu0 0
        %1017 = vmatprep.subr.bf16.mxu0 0
        %1018 = vmatpush1.bf16.msra.mxu0 0
        %1019 = vmatprep.subr.bf16.mxu0 0
        %1020 = vmatpush1.bf16.msra.mxu0 0
        %1021 = vmatprep.subr.bf16.mxu0 0
        %1022 = vmatpush1.bf16.msra.mxu0 0
        %1023 = vmatprep.subr.bf16.mxu0 0
        %1024 = vmatpush1.bf16.msra.mxu0 0
        %1025 = vmatprep.subr.bf16.mxu0 0
        %1026 = vmatpush1.bf16.msra.mxu0 0
        %1027 = vmatprep.subr.bf16.mxu0 0
        %1028 = vmatpush1.bf16.msra.mxu0 0
        %1029 = vmatprep.subr.bf16.mxu0 0
        %1030 = vmatpush1.bf16.msra.mxu0 0
        %1031 = vmatprep.mubr.bf16.mxu0 0
        %1032 = vmatmul.mubr.bf16.gmra.mrb[0].mxu0 %v952
        %v1033 = vpop.f32.mrb[0].mxu0
        %v1034 = vadd.f32 0.0, %v1033
        %v1035 = vpop.f32.mrb[0].mxu0
        %v1036 = vpop.f32.mrb[0].mxu0
        %v1037 = vadd.f32 0.0, %v1036
        %v1038 = vpop.f32.mrb[0].mxu0
        %1039 = vmatprep.mubr.bf16.mxu0 0
        %1040 = vmatmul.mubr.bf16.gmra.mrb[0].mxu0 %v955
        %v1041 = vpop.f32.mrb[0].mxu0
        %v1042 = vadd.f32 0.0, %v1041
        %v1043 = vpop.f32.mrb[0].mxu0
        %v1044 = vpop.f32.mrb[0].mxu0
        %v1045 = vadd.f32 0.0, %v1044
        %v1046 = vpop.f32.mrb[0].mxu0
        %1047 = vmatprep.mubr.bf16.mxu0 0
        %1048 = vmatmul.mubr.bf16.gmra.mrb[0].mxu0 %v958
        %v1049 = vpop.f32.mrb[0].mxu0
        %v1050 = vadd.f32 0.0, %v1049
        %v1051 = vpop.f32.mrb[0].mxu0
        %v1052 = vpop.f32.mrb[0].mxu0
        %v1053 = vadd.f32 0.0, %v1052
        %v1054 = vpop.f32.mrb[0].mxu0
        %1055 = vmatprep.mubr.bf16.mxu0 0
        %1056 = vmatmul.mubr.bf16.gmra.mrb[0].mxu0 %v961
        %v1057 = vpop.f32.mrb[0].mxu0
        %v1058 = vadd.f32 0.0, %v1057
        %v1059 = vpop.f32.mrb[0].mxu0
        %v1060 = vpop.f32.mrb[0].mxu0
        %v1061 = vadd.f32 0.0, %v1060
        %v1062 = vpop.f32.mrb[0].mxu0
        %1063 = vmatprep.mubr.bf16.mxu0 0
        %1064 = vmatmul.mubr.bf16.gmra.mrb[0].mxu0 %v964
        %v1065 = vpop.f32.mrb[0].mxu0
        %v1066 = vadd.f32 0.0, %v1065
        %v1067 = vpop.f32.mrb[0].mxu0
        %v1068 = vpop.f32.mrb[0].mxu0
        %v1069 = vadd.f32 0.0, %v1068
        %v1070 = vpop.f32.mrb[0].mxu0
        %1071 = vmatprep.mubr.bf16.mxu0 0
        %1072 = vmatmul.mubr.bf16.gmra.mrb[0].mxu0 %v967
        %v1073 = vpop.f32.mrb[0].mxu0
        %v1074 = vadd.f32 0.0, %v1073
        %v1075 = vpop.f32.mrb[0].mxu0
        %v1076 = vpop.f32.mrb[0].mxu0
        %v1077 = vadd.f32 0.0, %v1076
        %v1078 = vpop.f32.mrb[0].mxu0
        %1079 = vmatprep.mubr.bf16.mxu0 0
        %1080 = vmatmul.mubr.bf16.gmra.mrb[0].mxu0 %v970
        %v1081 = vpop.f32.mrb[0].mxu0
        %v1082 = vadd.f32 0.0, %v1081
        %v1083 = vpop.f32.mrb[0].mxu0
        %v1084 = vpop.f32.mrb[0].mxu0
        %v1085 = vadd.f32 0.0, %v1084
        %v1086 = vpop.f32.mrb[0].mxu0
        %1087 = vmatprep.mubr.bf16.mxu0 0
        %1088 = vmatmul.mubr.bf16.gmra.mrb[0].mxu0 %v973
        %v1089 = vpop.f32.mrb[0].mxu0
        %v1090 = vadd.f32 0.0, %v1089
        %v1091 = vpop.f32.mrb[0].mxu0
        %v1092 = vpop.f32.mrb[0].mxu0
        %v1093 = vadd.f32 0.0, %v1092
        %v1094 = vpop.f32.mrb[0].mxu0
        %1095 = vmatprep.mubr.bf16.mxu0 0
        %1096 = vmatmul.mubr.bf16.gmra.mrb[0].mxu0 %v976
        %v1097 = vpop.f32.mrb[0].mxu0
        %v1098 = vadd.f32 0.0, %v1097
        %v1099 = vpop.f32.mrb[0].mxu0
        %v1100 = vpop.f32.mrb[0].mxu0
        %v1101 = vadd.f32 0.0, %v1100
        %v1102 = vpop.f32.mrb[0].mxu0
        %1103 = vmatprep.mubr.bf16.mxu0 0
        %1104 = vmatmul.mubr.bf16.gmra.mrb[0].mxu0 %v979
        %v1105 = vpop.f32.mrb[0].mxu0
        %v1106 = vadd.f32 0.0, %v1105
        %v1107 = vpop.f32.mrb[0].mxu0
        %v1108 = vpop.f32.mrb[0].mxu0
        %v1109 = vadd.f32 0.0, %v1108
        %v1110 = vpop.f32.mrb[0].mxu0
        %1111 = vmatprep.mubr.bf16.mxu0 0
        %1112 = vmatmul.mubr.bf16.gmra.mrb[0].mxu0 %v982
        %v1113 = vpop.f32.mrb[0].mxu0
        %v1114 = vadd.f32 0.0, %v1113
        %v1115 = vpop.f32.mrb[0].mxu0
        %v1116 = vpop.f32.mrb[0].mxu0
        %v1117 = vadd.f32 0.0, %v1116
        %v1118 = vpop.f32.mrb[0].mxu0
        %1119 = vmatprep.mubr.bf16.mxu0 0
        %1120 = vmatmul.mubr.bf16.gmra.mrb[0].mxu0 %v985
        %v1121 = vpop.f32.mrb[0].mxu0
        %v1122 = vadd.f32 0.0, %v1121
        %v1123 = vpop.f32.mrb[0].mxu0
        %v1124 = vpop.f32.mrb[0].mxu0
        %v1125 = vadd.f32 0.0, %v1124
        %v1126 = vpop.f32.mrb[0].mxu0
        %1127 = vmatprep.mubr.bf16.mxu0 0
        %1128 = vmatmul.mubr.bf16.gmra.mrb[0].mxu0 %v988
        %v1129 = vpop.f32.mrb[0].mxu0
        %v1130 = vadd.f32 0.0, %v1129
        %v1131 = vpop.f32.mrb[0].mxu0
        %v1132 = vpop.f32.mrb[0].mxu0
        %v1133 = vadd.f32 0.0, %v1132
        %v1134 = vpop.f32.mrb[0].mxu0
        %1135 = vmatprep.mubr.bf16.mxu0 0
        %1136 = vmatmul.mubr.bf16.gmra.mrb[0].mxu0 %v991
        %v1137 = vpop.f32.mrb[0].mxu0
        %v1138 = vadd.f32 0.0, %v1137
        %v1139 = vpop.f32.mrb[0].mxu0
        %v1140 = vpop.f32.mrb[0].mxu0
        %v1141 = vadd.f32 0.0, %v1140
        %v1142 = vpop.f32.mrb[0].mxu0
        %1143 = vmatprep.mubr.bf16.mxu0 0
        %1144 = vmatmul.mubr.bf16.gmra.mrb[0].mxu0 %v994
        %v1145 = vpop.f32.mrb[0].mxu0
        %v1146 = vadd.f32 0.0, %v1145
        %v1147 = vpop.f32.mrb[0].mxu0
        %v1148 = vpop.f32.mrb[0].mxu0
        %v1149 = vadd.f32 0.0, %v1148
        %v1150 = vpop.f32.mrb[0].mxu0
        %1151 = vmatprep.mubr.bf16.mxu0 0
        %1152 = vmatmul.mubr.bf16.gmra.mrb[0].mxu0 %v997
        %v1153 = vpop.f32.mrb[0].mxu0
        %v1154 = vadd.f32 0.0, %v1153
        %v1155 = vpop.f32.mrb[0].mxu0
        %v1156 = vpop.f32.mrb[0].mxu0
        %v1157 = vadd.f32 0.0, %v1156
        %v1158 = vpop.f32.mrb[0].mxu0
        %1159 = vdwg.mxu0
        %v1160 = vadd.f32 %v854, %v1034
        %v1161 = vadd.f32 %v855, %v1037
        %v1162 = vadd.f32 %v856, %v1042
        %v1163 = vadd.f32 %v857, %v1045
        %v1164 = vadd.f32 %v858, %v1050
        %v1165 = vadd.f32 %v859, %v1053
        %v1166 = vadd.f32 %v860, %v1058
        %v1167 = vadd.f32 %v861, %v1061
        %v1168 = vadd.f32 %v862, %v1066
        %v1169 = vadd.f32 %v863, %v1069
        %v1170 = vadd.f32 %v864, %v1074
        %v1171 = vadd.f32 %v865, %v1077
        %v1172 = vadd.f32 %v866, %v1082
        %v1173 = vadd.f32 %v867, %v1085
        %v1174 = vadd.f32 %v868, %v1090
        %v1175 = vadd.f32 %v869, %v1093
        %v1176 = vadd.f32 %v870, %v1098
        %v1177 = vadd.f32 %v871, %v1101
        %v1178 = vadd.f32 %v872, %v1106
        %v1179 = vadd.f32 %v873, %v1109
        %v1180 = vadd.f32 %v874, %v1114
        %v1181 = vadd.f32 %v875, %v1117
        %v1182 = vadd.f32 %v876, %v1122
        %v1183 = vadd.f32 %v877, %v1125
        %v1184 = vadd.f32 %v878, %v1130
        %v1185 = vadd.f32 %v879, %v1133
        %v1186 = vadd.f32 %v880, %v1138
        %v1187 = vadd.f32 %v881, %v1141
        %v1188 = vadd.f32 %v882, %v1146
        %v1189 = vadd.f32 %v883, %v1149
        %v1190 = vadd.f32 %v884, %v1154
        %v1191 = vadd.f32 %v885, %v1157
        %1192 = vst [vmem:[#allocation2] sm:$0xff] %v1160
        %1193 = vst [vmem:[#allocation2 + $0x8] sm:$0xff] %v1161
        %1194 = vst [vmem:[#allocation2 + $0x10] sm:$0xff] %v1162
        %1195 = vst [vmem:[#allocation2 + $0x18] sm:$0xff] %v1163
        %1196 = vst [vmem:[#allocation2 + $0x20] sm:$0xff] %v1164
        %1197 = vst [vmem:[#allocation2 + $0x28] sm:$0xff] %v1165
        %1198 = vst [vmem:[#allocation2 + $0x30] sm:$0xff] %v1166
        %1199 = vst [vmem:[#allocation2 + $0x38] sm:$0xff] %v1167
        %1200 = vst [vmem:[#allocation2 + $0x40] sm:$0xff] %v1168
        %1201 = vst [vmem:[#allocation2 + $0x48] sm:$0xff] %v1169
        %1202 = vst [vmem:[#allocation2 + $0x50] sm:$0xff] %v1170
        %1203 = vst [vmem:[#allocation2 + $0x58] sm:$0xff] %v1171
        %1204 = vst [vmem:[#allocation2 + $0x60] sm:$0xff] %v1172
        %1205 = vst [vmem:[#allocation2 + $0x68] sm:$0xff] %v1173
        %1206 = vst [vmem:[#allocation2 + $0x70] sm:$0xff] %v1174
        %1207 = vst [vmem:[#allocation2 + $0x78] sm:$0xff] %v1175
        %1208 = vst [vmem:[#allocation2 + $0x80] sm:$0xff] %v1176
        %1209 = vst [vmem:[#allocation2 + $0x88] sm:$0xff] %v1177
        %1210 = vst [vmem:[#allocation2 + $0x90] sm:$0xff] %v1178
        %1211 = vst [vmem:[#allocation2 + $0x98] sm:$0xff] %v1179
        %1212 = vst [vmem:[#allocation2 + $0xa0] sm:$0xff] %v1180
        %1213 = vst [vmem:[#allocation2 + $0xa8] sm:$0xff] %v1181
        %1214 = vst [vmem:[#allocation2 + $0xb0] sm:$0xff] %v1182
        %1215 = vst [vmem:[#allocation2 + $0xb8] sm:$0xff] %v1183
        %1216 = vst [vmem:[#allocation2 + $0xc0] sm:$0xff] %v1184
        %1217 = vst [vmem:[#allocation2 + $0xc8] sm:$0xff] %v1185
        %1218 = vst [vmem:[#allocation2 + $0xd0] sm:$0xff] %v1186
        %1219 = vst [vmem:[#allocation2 + $0xd8] sm:$0xff] %v1187
        %1220 = vst [vmem:[#allocation2 + $0xe0] sm:$0xff] %v1188
        %1221 = vst [vmem:[#allocation2 + $0xe8] sm:$0xff] %v1189
        %1222 = vst [vmem:[#allocation2 + $0xf0] sm:$0xff] %v1190
        %1223 = vst [vmem:[#allocation2 + $0xf8] sm:$0xff] %v1191
        %v1224 = vld [vmem:[%s168] sm:$0xc]
        %v1225 = vld [vmem:[%s168 + $0x4] sm:$0xf]
        %v1226 = vld [vmem:[%s168 + $0x8] sm:$0x3]
        %v1227 = vld [vmem:[%s168 + $0xc] sm:$0xc]
        %v1228 = vld [vmem:[%s168 + $0x10] sm:$0xf]
        %v1229 = vld [vmem:[%s168 + $0x14] sm:$0x3]
        %v1230 = vld [vmem:[%s168 + $0x18] sm:$0xc]
        %v1231 = vld [vmem:[%s168 + $0x1c] sm:$0xf]
        %v1232 = vld [vmem:[%s168 + $0x20] sm:$0x3]
        %v1233 = vld [vmem:[%s168 + $0x24] sm:$0xc]
        %v1234 = vld [vmem:[%s168 + $0x28] sm:$0xf]
        %v1235 = vld [vmem:[%s168 + $0x2c] sm:$0x3]
        %v1236 = vld [vmem:[%s168 + $0x30] sm:$0xc]
        %v1237 = vld [vmem:[%s168 + $0x34] sm:$0xf]
        %v1238 = vld [vmem:[%s168 + $0x38] sm:$0x3]
        %v1239 = vld [vmem:[%s168 + $0x3c] sm:$0xc]
        %v1240 = vld [vmem:[%s168 + $0x40] sm:$0xf]
        %v1241 = vld [vmem:[%s168 + $0x44] sm:$0x3]
        %v1242 = vld [vmem:[%s168 + $0x48] sm:$0xc]
        %v1243 = vld [vmem:[%s168 + $0x4c] sm:$0xf]
        %v1244 = vld [vmem:[%s168 + $0x50] sm:$0x3]
        %v1245 = vld [vmem:[%s168 + $0x54] sm:$0xc]
        %v1246 = vld [vmem:[%s168 + $0x58] sm:$0xf]
        %v1247 = vld [vmem:[%s168 + $0x5c] sm:$0x3]
        %v1248 = vld [vmem:[%s168 + $0x60] sm:$0xc]
        %v1249 = vld [vmem:[%s168 + $0x64] sm:$0xf]
        %v1250 = vld [vmem:[%s168 + $0x68] sm:$0x3]
        %v1251 = vld [vmem:[%s168 + $0x6c] sm:$0xc]
        %v1252 = vld [vmem:[%s168 + $0x70] sm:$0xf]
        %v1253 = vld [vmem:[%s168 + $0x74] sm:$0x3]
        %v1254 = vld [vmem:[%s168 + $0x78] sm:$0xc]
        %v1255 = vld [vmem:[%s168 + $0x7c] sm:$0xf]
        %v1256 = vld [vmem:[%s168 + $0x80] sm:$0x3]
        %v1257 = vld [vmem:[%s168 + $0x84] sm:$0xc]
        %v1258 = vld [vmem:[%s168 + $0x88] sm:$0xf]
        %v1259 = vld [vmem:[%s168 + $0x8c] sm:$0x3]
        %v1260 = vld [vmem:[%s168 + $0x90] sm:$0xc]
        %v1261 = vld [vmem:[%s168 + $0x94] sm:$0xf]
        %v1262 = vld [vmem:[%s168 + $0x98] sm:$0x3]
        %v1263 = vld [vmem:[%s168 + $0x9c] sm:$0xc]
        %v1264 = vld [vmem:[%s168 + $0xa0] sm:$0xf]
        %v1265 = vld [vmem:[%s168 + $0xa4] sm:$0x3]
        %v1266 = vld [vmem:[%s168 + $0xa8] sm:$0xc]
        %v1267 = vld [vmem:[%s168 + $0xac] sm:$0xf]
        %v1268 = vld [vmem:[%s168 + $0xb0] sm:$0x3]
        %v1269 = vld [vmem:[%s168 + $0xb4] sm:$0xc]
        %v1270 = vld [vmem:[%s168 + $0xb8] sm:$0xf]
        %v1271 = vld [vmem:[%s168 + $0xbc] sm:$0x3]
        %vm1320 = vcmask 1041408
        %vm1321 = vcmask 1045508
        %vm1322 = vmor %vm1320, %vm1321
        %v1323 = vrot.slane %v1224, 6
        %v1324 = vrot.slane %v1323, 4
        %v1325 = vrot.slane %v1225, 6
        %v1326 = vsel %vm1322, %v1324, %v1325
        %v1327 = vrot.slane %v1325, 4
        %v1328 = vrot.slane %v1226, 6
        %v1329 = vsel %vm1322, %v1327, %v1328
        %v1330 = vrot.slane %v1227, 6
        %v1331 = vrot.slane %v1330, 4
        %v1332 = vrot.slane %v1228, 6
        %v1333 = vsel %vm1322, %v1331, %v1332
        %v1334 = vrot.slane %v1332, 4
        %v1335 = vrot.slane %v1229, 6
        %v1336 = vsel %vm1322, %v1334, %v1335
        %v1337 = vrot.slane %v1230, 6
        %v1338 = vrot.slane %v1337, 4
        %v1339 = vrot.slane %v1231, 6
        %v1340 = vsel %vm1322, %v1338, %v1339
        %v1341 = vrot.slane %v1339, 4
        %v1342 = vrot.slane %v1232, 6
        %v1343 = vsel %vm1322, %v1341, %v1342
        %v1344 = vrot.slane %v1233, 6
        %v1345 = vrot.slane %v1344, 4
        %v1346 = vrot.slane %v1234, 6
        %v1347 = vsel %vm1322, %v1345, %v1346
        %v1348 = vrot.slane %v1346, 4
        %v1349 = vrot.slane %v1235, 6
        %v1350 = vsel %vm1322, %v1348, %v1349
        %v1351 = vrot.slane %v1236, 6
        %v1352 = vrot.slane %v1351, 4
        %v1353 = vrot.slane %v1237, 6
        %v1354 = vsel %vm1322, %v1352, %v1353
        %v1355 = vrot.slane %v1353, 4
        %v1356 = vrot.slane %v1238, 6
        %v1357 = vsel %vm1322, %v1355, %v1356
        %v1358 = vrot.slane %v1239, 6
        %v1359 = vrot.slane %v1358, 4
        %v1360 = vrot.slane %v1240, 6
        %v1361 = vsel %vm1322, %v1359, %v1360
        %v1362 = vrot.slane %v1360, 4
        %v1363 = vrot.slane %v1241, 6
        %v1364 = vsel %vm1322, %v1362, %v1363
        %v1365 = vrot.slane %v1242, 6
        %v1366 = vrot.slane %v1365, 4
        %v1367 = vrot.slane %v1243, 6
        %v1368 = vsel %vm1322, %v1366, %v1367
        %v1369 = vrot.slane %v1367, 4
        %v1370 = vrot.slane %v1244, 6
        %v1371 = vsel %vm1322, %v1369, %v1370
        %v1372 = vrot.slane %v1245, 6
        %v1373 = vrot.slane %v1372, 4
        %v1374 = vrot.slane %v1246, 6
        %v1375 = vsel %vm1322, %v1373, %v1374
        %v1376 = vrot.slane %v1374, 4
        %v1377 = vrot.slane %v1247, 6
        %v1378 = vsel %vm1322, %v1376, %v1377
        %v1379 = vrot.slane %v1248, 6
        %v1380 = vrot.slane %v1379, 4
        %v1381 = vrot.slane %v1249, 6
        %v1382 = vsel %vm1322, %v1380, %v1381
        %v1383 = vrot.slane %v1381, 4
        %v1384 = vrot.slane %v1250, 6
        %v1385 = vsel %vm1322, %v1383, %v1384
        %v1386 = vrot.slane %v1251, 6
        %v1387 = vrot.slane %v1386, 4
        %v1388 = vrot.slane %v1252, 6
        %v1389 = vsel %vm1322, %v1387, %v1388
        %v1390 = vrot.slane %v1388, 4
        %v1391 = vrot.slane %v1253, 6
        %v1392 = vsel %vm1322, %v1390, %v1391
        %v1393 = vrot.slane %v1254, 6
        %v1394 = vrot.slane %v1393, 4
        %v1395 = vrot.slane %v1255, 6
        %v1396 = vsel %vm1322, %v1394, %v1395
        %v1397 = vrot.slane %v1395, 4
        %v1398 = vrot.slane %v1256, 6
        %v1399 = vsel %vm1322, %v1397, %v1398
        %v1400 = vrot.slane %v1257, 6
        %v1401 = vrot.slane %v1400, 4
        %v1402 = vrot.slane %v1258, 6
        %v1403 = vsel %vm1322, %v1401, %v1402
        %v1404 = vrot.slane %v1402, 4
        %v1405 = vrot.slane %v1259, 6
        %v1406 = vsel %vm1322, %v1404, %v1405
        %v1407 = vrot.slane %v1260, 6
        %v1408 = vrot.slane %v1407, 4
        %v1409 = vrot.slane %v1261, 6
        %v1410 = vsel %vm1322, %v1408, %v1409
        %v1411 = vrot.slane %v1409, 4
        %v1412 = vrot.slane %v1262, 6
        %v1413 = vsel %vm1322, %v1411, %v1412
        %v1414 = vrot.slane %v1263, 6
        %v1415 = vrot.slane %v1414, 4
        %v1416 = vrot.slane %v1264, 6
        %v1417 = vsel %vm1322, %v1415, %v1416
        %v1418 = vrot.slane %v1416, 4
        %v1419 = vrot.slane %v1265, 6
        %v1420 = vsel %vm1322, %v1418, %v1419
        %v1421 = vrot.slane %v1266, 6
        %v1422 = vrot.slane %v1421, 4
        %v1423 = vrot.slane %v1267, 6
        %v1424 = vsel %vm1322, %v1422, %v1423
        %v1425 = vrot.slane %v1423, 4
        %v1426 = vrot.slane %v1268, 6
        %v1427 = vsel %vm1322, %v1425, %v1426
        %v1428 = vrot.slane %v1269, 6
        %v1429 = vrot.slane %v1428, 4
        %v1430 = vrot.slane %v1270, 6
        %v1431 = vsel %vm1322, %v1429, %v1430
        %v1432 = vrot.slane %v1430, 4
        %v1433 = vrot.slane %v1271, 6
        %v1434 = vsel %vm1322, %v1432, %v1433
        %v1435 = vld [vmem:[#allocation2] sm:$0xff]
        %v1436 = vld [vmem:[#allocation2 + $0x8] sm:$0xff]
        %v1437 = vld [vmem:[#allocation2 + $0x10] sm:$0xff]
        %v1438 = vld [vmem:[#allocation2 + $0x18] sm:$0xff]
        %v1439 = vld [vmem:[#allocation2 + $0x20] sm:$0xff]
        %v1440 = vld [vmem:[#allocation2 + $0x28] sm:$0xff]
        %v1441 = vld [vmem:[#allocation2 + $0x30] sm:$0xff]
        %v1442 = vld [vmem:[#allocation2 + $0x38] sm:$0xff]
        %v1443 = vld [vmem:[#allocation2 + $0x40] sm:$0xff]
        %v1444 = vld [vmem:[#allocation2 + $0x48] sm:$0xff]
        %v1445 = vld [vmem:[#allocation2 + $0x50] sm:$0xff]
        %v1446 = vld [vmem:[#allocation2 + $0x58] sm:$0xff]
        %v1447 = vld [vmem:[#allocation2 + $0x60] sm:$0xff]
        %v1448 = vld [vmem:[#allocation2 + $0x68] sm:$0xff]
        %v1449 = vld [vmem:[#allocation2 + $0x70] sm:$0xff]
        %v1450 = vld [vmem:[#allocation2 + $0x78] sm:$0xff]
        %v1451 = vld [vmem:[#allocation2 + $0x80] sm:$0xff]
        %v1452 = vld [vmem:[#allocation2 + $0x88] sm:$0xff]
        %v1453 = vld [vmem:[#allocation2 + $0x90] sm:$0xff]
        %v1454 = vld [vmem:[#allocation2 + $0x98] sm:$0xff]
        %v1455 = vld [vmem:[#allocation2 + $0xa0] sm:$0xff]
        %v1456 = vld [vmem:[#allocation2 + $0xa8] sm:$0xff]
        %v1457 = vld [vmem:[#allocation2 + $0xb0] sm:$0xff]
        %v1458 = vld [vmem:[#allocation2 + $0xb8] sm:$0xff]
        %v1459 = vld [vmem:[#allocation2 + $0xc0] sm:$0xff]
        %v1460 = vld [vmem:[#allocation2 + $0xc8] sm:$0xff]
        %v1461 = vld [vmem:[#allocation2 + $0xd0] sm:$0xff]
        %v1462 = vld [vmem:[#allocation2 + $0xd8] sm:$0xff]
        %v1463 = vld [vmem:[#allocation2 + $0xe0] sm:$0xff]
        %v1464 = vld [vmem:[#allocation2 + $0xe8] sm:$0xff]
        %v1465 = vld [vmem:[#allocation2 + $0xf0] sm:$0xff]
        %v1466 = vld [vmem:[#allocation2 + $0xf8] sm:$0xff]
        %s1467 = scalar_lea.vmem %s1, 32
        %v1468 = vld [vmem:[%s1467] sm:$0xf]
        %v1469 = vld [vmem:[%s1467 + $0x4] sm:$0xf]
        %v1470 = vld [vmem:[%s1467 + $0x8] sm:$0xf]
        %v1471 = vld [vmem:[%s1467 + $0xc] sm:$0xf]
        %v1472 = vunpack.c.l.b16 %v1326
        %v1473 = vunpack.c.l.b16 %v1329
        %v1474 = vunpack.c.l.b16 %v1333
        %v1475 = vunpack.c.l.b16 %v1336
        %v1476 = vunpack.c.l.b16 %v1340
        %v1477 = vunpack.c.l.b16 %v1343
        %v1478 = vunpack.c.l.b16 %v1347
        %v1479 = vunpack.c.l.b16 %v1350
        %v1480 = vunpack.c.l.b16 %v1354
        %v1481 = vunpack.c.l.b16 %v1357
        %v1482 = vunpack.c.l.b16 %v1361
        %v1483 = vunpack.c.l.b16 %v1364
        %v1484 = vunpack.c.l.b16 %v1368
        %v1485 = vunpack.c.l.b16 %v1371
        %v1486 = vunpack.c.l.b16 %v1375
        %v1487 = vunpack.c.l.b16 %v1378
        %v1488 = vunpack.c.l.b16 %v1382
        %v1489 = vunpack.c.l.b16 %v1385
        %v1490 = vunpack.c.l.b16 %v1389
        %v1491 = vunpack.c.l.b16 %v1392
        %v1492 = vunpack.c.l.b16 %v1396
        %v1493 = vunpack.c.l.b16 %v1399
        %v1494 = vunpack.c.l.b16 %v1403
        %v1495 = vunpack.c.l.b16 %v1406
        %v1496 = vunpack.c.l.b16 %v1410
        %v1497 = vunpack.c.l.b16 %v1413
        %v1498 = vunpack.c.l.b16 %v1417
        %v1499 = vunpack.c.l.b16 %v1420
        %v1500 = vunpack.c.l.b16 %v1424
        %v1501 = vunpack.c.l.b16 %v1427
        %v1502 = vunpack.c.l.b16 %v1431
        %v1503 = vunpack.c.l.b16 %v1434
        %v1504 = vpack.c.b16 %v1473, %v1472
        %v1505 = vpack.c.b16 %v1475, %v1474
        %v1506 = vpack.c.b16 %v1477, %v1476
        %v1507 = vpack.c.b16 %v1479, %v1478
        %v1508 = vpack.c.b16 %v1481, %v1480
        %v1509 = vpack.c.b16 %v1483, %v1482
        %v1510 = vpack.c.b16 %v1485, %v1484
        %v1511 = vpack.c.b16 %v1487, %v1486
        %v1512 = vpack.c.b16 %v1489, %v1488
        %v1513 = vpack.c.b16 %v1491, %v1490
        %v1514 = vpack.c.b16 %v1493, %v1492
        %v1515 = vpack.c.b16 %v1495, %v1494
        %v1516 = vpack.c.b16 %v1497, %v1496
        %v1517 = vpack.c.b16 %v1499, %v1498
        %v1518 = vpack.c.b16 %v1501, %v1500
        %v1519 = vpack.c.b16 %v1503, %v1502
        %v1524 = vunpack.c.l.b16 %v1468
        %v1525 = vunpack.c.l.b16 %v1469
        %v1526 = vunpack.c.l.b16 %v1470
        %v1527 = vunpack.c.l.b16 %v1471
        %v1528 = vpack.c.b16 %v1525, %v1524
        %v1529 = vpack.c.b16 %v1527, %v1526
        %v1533 = vsel %vm369, %v1504, 0
        %v1536 = vsel %vm369, %v1505, 0
        %v1539 = vsel %vm369, %v1506, 0
        %v1542 = vsel %vm369, %v1507, 0
        %v1545 = vsel %vm369, %v1508, 0
        %v1548 = vsel %vm369, %v1509, 0
        %v1551 = vsel %vm369, %v1510, 0
        %v1554 = vsel %vm369, %v1511, 0
        %v1557 = vsel %vm369, %v1512, 0
        %v1560 = vsel %vm369, %v1513, 0
        %v1563 = vsel %vm369, %v1514, 0
        %v1566 = vsel %vm369, %v1515, 0
        %v1569 = vsel %vm369, %v1516, 0
        %v1572 = vsel %vm369, %v1517, 0
        %v1575 = vsel %vm369, %v1518, 0
        %v1578 = vsel %vm369, %v1519, 0
        %1580 = vmatprep.subr.bf16.mxu0 0
        %1581 = vmatpush1.bf16.msra.mxu0 %v1528
        %1582 = vmatprep.subr.bf16.mxu0 0
        %1583 = vmatpush1.bf16.msra.mxu0 %v1529
        %1584 = vmatprep.subr.bf16.mxu0 0
        %1585 = vmatpush1.bf16.msra.mxu0 0
        %1586 = vmatprep.subr.bf16.mxu0 0
        %1587 = vmatpush1.bf16.msra.mxu0 0
        %1588 = vmatprep.subr.bf16.mxu0 0
        %1589 = vmatpush1.bf16.msra.mxu0 0
        %1590 = vmatprep.subr.bf16.mxu0 0
        %1591 = vmatpush1.bf16.msra.mxu0 0
        %1592 = vmatprep.subr.bf16.mxu0 0
        %1593 = vmatpush1.bf16.msra.mxu0 0
        %1594 = vmatprep.subr.bf16.mxu0 0
        %1595 = vmatpush1.bf16.msra.mxu0 0
        %1596 = vmatprep.subr.bf16.mxu0 0
        %1597 = vmatpush1.bf16.msra.mxu0 0
        %1598 = vmatprep.subr.bf16.mxu0 0
        %1599 = vmatpush1.bf16.msra.mxu0 0
        %1600 = vmatprep.subr.bf16.mxu0 0
        %1601 = vmatpush1.bf16.msra.mxu0 0
        %1602 = vmatprep.subr.bf16.mxu0 0
        %1603 = vmatpush1.bf16.msra.mxu0 0
        %1604 = vmatprep.subr.bf16.mxu0 0
        %1605 = vmatpush1.bf16.msra.mxu0 0
        %1606 = vmatprep.subr.bf16.mxu0 0
        %1607 = vmatpush1.bf16.msra.mxu0 0
        %1608 = vmatprep.subr.bf16.mxu0 0
        %1609 = vmatpush1.bf16.msra.mxu0 0
        %1610 = vmatprep.subr.bf16.mxu0 0
        %1611 = vmatpush1.bf16.msra.mxu0 0
        %1612 = vmatprep.mubr.bf16.mxu0 0
        %1613 = vmatmul.mubr.bf16.gmra.mrb[0].mxu0 %v1533
        %v1614 = vpop.f32.mrb[0].mxu0
        %v1615 = vadd.f32 0.0, %v1614
        %v1616 = vpop.f32.mrb[0].mxu0
        %v1617 = vpop.f32.mrb[0].mxu0
        %v1618 = vadd.f32 0.0, %v1617
        %v1619 = vpop.f32.mrb[0].mxu0
        %1620 = vmatprep.mubr.bf16.mxu0 0
        %1621 = vmatmul.mubr.bf16.gmra.mrb[0].mxu0 %v1536
        %v1622 = vpop.f32.mrb[0].mxu0
        %v1623 = vadd.f32 0.0, %v1622
        %v1624 = vpop.f32.mrb[0].mxu0
        %v1625 = vpop.f32.mrb[0].mxu0
        %v1626 = vadd.f32 0.0, %v1625
        %v1627 = vpop.f32.mrb[0].mxu0
        %1628 = vmatprep.mubr.bf16.mxu0 0
        %1629 = vmatmul.mubr.bf16.gmra.mrb[0].mxu0 %v1539
        %v1630 = vpop.f32.mrb[0].mxu0
        %v1631 = vadd.f32 0.0, %v1630
        %v1632 = vpop.f32.mrb[0].mxu0
        %v1633 = vpop.f32.mrb[0].mxu0
        %v1634 = vadd.f32 0.0, %v1633
        %v1635 = vpop.f32.mrb[0].mxu0
        %1636 = vmatprep.mubr.bf16.mxu0 0
        %1637 = vmatmul.mubr.bf16.gmra.mrb[0].mxu0 %v1542
        %v1638 = vpop.f32.mrb[0].mxu0
        %v1639 = vadd.f32 0.0, %v1638
        %v1640 = vpop.f32.mrb[0].mxu0
        %v1641 = vpop.f32.mrb[0].mxu0
        %v1642 = vadd.f32 0.0, %v1641
        %v1643 = vpop.f32.mrb[0].mxu0
        %1644 = vmatprep.mubr.bf16.mxu0 0
        %1645 = vmatmul.mubr.bf16.gmra.mrb[0].mxu0 %v1545
        %v1646 = vpop.f32.mrb[0].mxu0
        %v1647 = vadd.f32 0.0, %v1646
        %v1648 = vpop.f32.mrb[0].mxu0
        %v1649 = vpop.f32.mrb[0].mxu0
        %v1650 = vadd.f32 0.0, %v1649
        %v1651 = vpop.f32.mrb[0].mxu0
        %1652 = vmatprep.mubr.bf16.mxu0 0
        %1653 = vmatmul.mubr.bf16.gmra.mrb[0].mxu0 %v1548
        %v1654 = vpop.f32.mrb[0].mxu0
        %v1655 = vadd.f32 0.0, %v1654
        %v1656 = vpop.f32.mrb[0].mxu0
        %v1657 = vpop.f32.mrb[0].mxu0
        %v1658 = vadd.f32 0.0, %v1657
        %v1659 = vpop.f32.mrb[0].mxu0
        %1660 = vmatprep.mubr.bf16.mxu0 0
        %1661 = vmatmul.mubr.bf16.gmra.mrb[0].mxu0 %v1551
        %v1662 = vpop.f32.mrb[0].mxu0
        %v1663 = vadd.f32 0.0, %v1662
        %v1664 = vpop.f32.mrb[0].mxu0
        %v1665 = vpop.f32.mrb[0].mxu0
        %v1666 = vadd.f32 0.0, %v1665
        %v1667 = vpop.f32.mrb[0].mxu0
        %1668 = vmatprep.mubr.bf16.mxu0 0
        %1669 = vmatmul.mubr.bf16.gmra.mrb[0].mxu0 %v1554
        %v1670 = vpop.f32.mrb[0].mxu0
        %v1671 = vadd.f32 0.0, %v1670
        %v1672 = vpop.f32.mrb[0].mxu0
        %v1673 = vpop.f32.mrb[0].mxu0
        %v1674 = vadd.f32 0.0, %v1673
        %v1675 = vpop.f32.mrb[0].mxu0
        %1676 = vmatprep.mubr.bf16.mxu0 0
        %1677 = vmatmul.mubr.bf16.gmra.mrb[0].mxu0 %v1557
        %v1678 = vpop.f32.mrb[0].mxu0
        %v1679 = vadd.f32 0.0, %v1678
        %v1680 = vpop.f32.mrb[0].mxu0
        %v1681 = vpop.f32.mrb[0].mxu0
        %v1682 = vadd.f32 0.0, %v1681
        %v1683 = vpop.f32.mrb[0].mxu0
        %1684 = vmatprep.mubr.bf16.mxu0 0
        %1685 = vmatmul.mubr.bf16.gmra.mrb[0].mxu0 %v1560
        %v1686 = vpop.f32.mrb[0].mxu0
        %v1687 = vadd.f32 0.0, %v1686
        %v1688 = vpop.f32.mrb[0].mxu0
        %v1689 = vpop.f32.mrb[0].mxu0
        %v1690 = vadd.f32 0.0, %v1689
        %v1691 = vpop.f32.mrb[0].mxu0
        %1692 = vmatprep.mubr.bf16.mxu0 0
        %1693 = vmatmul.mubr.bf16.gmra.mrb[0].mxu0 %v1563
        %v1694 = vpop.f32.mrb[0].mxu0
        %v1695 = vadd.f32 0.0, %v1694
        %v1696 = vpop.f32.mrb[0].mxu0
        %v1697 = vpop.f32.mrb[0].mxu0
        %v1698 = vadd.f32 0.0, %v1697
        %v1699 = vpop.f32.mrb[0].mxu0
        %1700 = vmatprep.mubr.bf16.mxu0 0
        %1701 = vmatmul.mubr.bf16.gmra.mrb[0].mxu0 %v1566
        %v1702 = vpop.f32.mrb[0].mxu0
        %v1703 = vadd.f32 0.0, %v1702
        %v1704 = vpop.f32.mrb[0].mxu0
        %v1705 = vpop.f32.mrb[0].mxu0
        %v1706 = vadd.f32 0.0, %v1705
        %v1707 = vpop.f32.mrb[0].mxu0
        %1708 = vmatprep.mubr.bf16.mxu0 0
        %1709 = vmatmul.mubr.bf16.gmra.mrb[0].mxu0 %v1569
        %v1710 = vpop.f32.mrb[0].mxu0
        %v1711 = vadd.f32 0.0, %v1710
        %v1712 = vpop.f32.mrb[0].mxu0
        %v1713 = vpop.f32.mrb[0].mxu0
        %v1714 = vadd.f32 0.0, %v1713
        %v1715 = vpop.f32.mrb[0].mxu0
        %1716 = vmatprep.mubr.bf16.mxu0 0
        %1717 = vmatmul.mubr.bf16.gmra.mrb[0].mxu0 %v1572
        %v1718 = vpop.f32.mrb[0].mxu0
        %v1719 = vadd.f32 0.0, %v1718
        %v1720 = vpop.f32.mrb[0].mxu0
        %v1721 = vpop.f32.mrb[0].mxu0
        %v1722 = vadd.f32 0.0, %v1721
        %v1723 = vpop.f32.mrb[0].mxu0
        %1724 = vmatprep.mubr.bf16.mxu0 0
        %1725 = vmatmul.mubr.bf16.gmra.mrb[0].mxu0 %v1575
        %v1726 = vpop.f32.mrb[0].mxu0
        %v1727 = vadd.f32 0.0, %v1726
        %v1728 = vpop.f32.mrb[0].mxu0
        %v1729 = vpop.f32.mrb[0].mxu0
        %v1730 = vadd.f32 0.0, %v1729
        %v1731 = vpop.f32.mrb[0].mxu0
        %1732 = vmatprep.mubr.bf16.mxu0 0
        %1733 = vmatmul.mubr.bf16.gmra.mrb[0].mxu0 %v1578
        %v1734 = vpop.f32.mrb[0].mxu0
        %v1735 = vadd.f32 0.0, %v1734
        %v1736 = vpop.f32.mrb[0].mxu0
        %v1737 = vpop.f32.mrb[0].mxu0
        %v1738 = vadd.f32 0.0, %v1737
        %v1739 = vpop.f32.mrb[0].mxu0
        %1740 = vdwg.mxu0
        %v1741 = vadd.f32 %v1435, %v1615
        %v1742 = vadd.f32 %v1436, %v1618
        %v1743 = vadd.f32 %v1437, %v1623
        %v1744 = vadd.f32 %v1438, %v1626
        %v1745 = vadd.f32 %v1439, %v1631
        %v1746 = vadd.f32 %v1440, %v1634
        %v1747 = vadd.f32 %v1441, %v1639
        %v1748 = vadd.f32 %v1442, %v1642
        %v1749 = vadd.f32 %v1443, %v1647
        %v1750 = vadd.f32 %v1444, %v1650
        %v1751 = vadd.f32 %v1445, %v1655
        %v1752 = vadd.f32 %v1446, %v1658
        %v1753 = vadd.f32 %v1447, %v1663
        %v1754 = vadd.f32 %v1448, %v1666
        %v1755 = vadd.f32 %v1449, %v1671
        %v1756 = vadd.f32 %v1450, %v1674
        %v1757 = vadd.f32 %v1451, %v1679
        %v1758 = vadd.f32 %v1452, %v1682
        %v1759 = vadd.f32 %v1453, %v1687
        %v1760 = vadd.f32 %v1454, %v1690
        %v1761 = vadd.f32 %v1455, %v1695
        %v1762 = vadd.f32 %v1456, %v1698
        %v1763 = vadd.f32 %v1457, %v1703
        %v1764 = vadd.f32 %v1458, %v1706
        %v1765 = vadd.f32 %v1459, %v1711
        %v1766 = vadd.f32 %v1460, %v1714
        %v1767 = vadd.f32 %v1461, %v1719
        %v1768 = vadd.f32 %v1462, %v1722
        %v1769 = vadd.f32 %v1463, %v1727
        %v1770 = vadd.f32 %v1464, %v1730
        %v1771 = vadd.f32 %v1465, %v1735
        %v1772 = vadd.f32 %v1466, %v1738
        %1773 = vst [vmem:[#allocation2] sm:$0xff] %v1741
        %1774 = vst [vmem:[#allocation2 + $0x8] sm:$0xff] %v1742
        %1775 = vst [vmem:[#allocation2 + $0x10] sm:$0xff] %v1743
        %1776 = vst [vmem:[#allocation2 + $0x18] sm:$0xff] %v1744
        %1777 = vst [vmem:[#allocation2 + $0x20] sm:$0xff] %v1745
        %1778 = vst [vmem:[#allocation2 + $0x28] sm:$0xff] %v1746
        %1779 = vst [vmem:[#allocation2 + $0x30] sm:$0xff] %v1747
        %1780 = vst [vmem:[#allocation2 + $0x38] sm:$0xff] %v1748
        %1781 = vst [vmem:[#allocation2 + $0x40] sm:$0xff] %v1749
        %1782 = vst [vmem:[#allocation2 + $0x48] sm:$0xff] %v1750
        %1783 = vst [vmem:[#allocation2 + $0x50] sm:$0xff] %v1751
        %1784 = vst [vmem:[#allocation2 + $0x58] sm:$0xff] %v1752
        %1785 = vst [vmem:[#allocation2 + $0x60] sm:$0xff] %v1753
        %1786 = vst [vmem:[#allocation2 + $0x68] sm:$0xff] %v1754
        %1787 = vst [vmem:[#allocation2 + $0x70] sm:$0xff] %v1755
        %1788 = vst [vmem:[#allocation2 + $0x78] sm:$0xff] %v1756
        %1789 = vst [vmem:[#allocation2 + $0x80] sm:$0xff] %v1757
        %1790 = vst [vmem:[#allocation2 + $0x88] sm:$0xff] %v1758
        %1791 = vst [vmem:[#allocation2 + $0x90] sm:$0xff] %v1759
        %1792 = vst [vmem:[#allocation2 + $0x98] sm:$0xff] %v1760
        %1793 = vst [vmem:[#allocation2 + $0xa0] sm:$0xff] %v1761
        %1794 = vst [vmem:[#allocation2 + $0xa8] sm:$0xff] %v1762
        %1795 = vst [vmem:[#allocation2 + $0xb0] sm:$0xff] %v1763
        %1796 = vst [vmem:[#allocation2 + $0xb8] sm:$0xff] %v1764
        %1797 = vst [vmem:[#allocation2 + $0xc0] sm:$0xff] %v1765
        %1798 = vst [vmem:[#allocation2 + $0xc8] sm:$0xff] %v1766
        %1799 = vst [vmem:[#allocation2 + $0xd0] sm:$0xff] %v1767
        %1800 = vst [vmem:[#allocation2 + $0xd8] sm:$0xff] %v1768
        %1801 = vst [vmem:[#allocation2 + $0xe0] sm:$0xff] %v1769
        %1802 = vst [vmem:[#allocation2 + $0xe8] sm:$0xff] %v1770
        %1803 = vst [vmem:[#allocation2 + $0xf0] sm:$0xff] %v1771
        %1804 = vst [vmem:[#allocation2 + $0xf8] sm:$0xff] %v1772
        %s1805 = scalar_lea.vmem %s168, 24
        %v1806 = vld [vmem:[%s1805] sm:$0xf]
        %v1807 = vld [vmem:[%s1805 + $0x4] sm:$0xf]
        %v1808 = vld [vmem:[%s1805 + $0xc] sm:$0xf]
        %v1809 = vld [vmem:[%s1805 + $0x10] sm:$0xf]
        %v1810 = vld [vmem:[%s1805 + $0x18] sm:$0xf]
        %v1811 = vld [vmem:[%s1805 + $0x1c] sm:$0xf]
        %v1812 = vld [vmem:[%s1805 + $0x24] sm:$0xf]
        %v1813 = vld [vmem:[%s1805 + $0x28] sm:$0xf]
        %v1814 = vld [vmem:[%s1805 + $0x30] sm:$0xf]
        %v1815 = vld [vmem:[%s1805 + $0x34] sm:$0xf]
        %v1816 = vld [vmem:[%s1805 + $0x3c] sm:$0xf]
        %v1817 = vld [vmem:[%s1805 + $0x40] sm:$0xf]
        %v1818 = vld [vmem:[%s1805 + $0x48] sm:$0xf]
        %v1819 = vld [vmem:[%s1805 + $0x4c] sm:$0xf]
        %v1820 = vld [vmem:[%s1805 + $0x54] sm:$0xf]
        %v1821 = vld [vmem:[%s1805 + $0x58] sm:$0xf]
        %v1822 = vld [vmem:[%s1805 + $0x60] sm:$0xf]
        %v1823 = vld [vmem:[%s1805 + $0x64] sm:$0xf]
        %v1824 = vld [vmem:[%s1805 + $0x6c] sm:$0xf]
        %v1825 = vld [vmem:[%s1805 + $0x70] sm:$0xf]
        %v1826 = vld [vmem:[%s1805 + $0x78] sm:$0xf]
        %v1827 = vld [vmem:[%s1805 + $0x7c] sm:$0xf]
        %v1828 = vld [vmem:[%s1805 + $0x84] sm:$0xf]
        %v1829 = vld [vmem:[%s1805 + $0x88] sm:$0xf]
        %v1830 = vld [vmem:[%s1805 + $0x90] sm:$0xf]
        %v1831 = vld [vmem:[%s1805 + $0x94] sm:$0xf]
        %v1832 = vld [vmem:[%s1805 + $0x9c] sm:$0xf]
        %v1833 = vld [vmem:[%s1805 + $0xa0] sm:$0xf]
        %v1834 = vld [vmem:[%s1805 + $0xa8] sm:$0xf]
        %v1835 = vld [vmem:[%s1805 + $0xac] sm:$0xf]
        %v1836 = vld [vmem:[%s1805 + $0xb4] sm:$0xf]
        %v1837 = vld [vmem:[%s1805 + $0xb8] sm:$0xf]
        %v1838 = vld [vmem:[#allocation2] sm:$0xff]
        %v1839 = vld [vmem:[#allocation2 + $0x8] sm:$0xff]
        %v1840 = vld [vmem:[#allocation2 + $0x10] sm:$0xff]
        %v1841 = vld [vmem:[#allocation2 + $0x18] sm:$0xff]
        %v1842 = vld [vmem:[#allocation2 + $0x20] sm:$0xff]
        %v1843 = vld [vmem:[#allocation2 + $0x28] sm:$0xff]
        %v1844 = vld [vmem:[#allocation2 + $0x30] sm:$0xff]
        %v1845 = vld [vmem:[#allocation2 + $0x38] sm:$0xff]
        %v1846 = vld [vmem:[#allocation2 + $0x40] sm:$0xff]
        %v1847 = vld [vmem:[#allocation2 + $0x48] sm:$0xff]
        %v1848 = vld [vmem:[#allocation2 + $0x50] sm:$0xff]
        %v1849 = vld [vmem:[#allocation2 + $0x58] sm:$0xff]
        %v1850 = vld [vmem:[#allocation2 + $0x60] sm:$0xff]
        %v1851 = vld [vmem:[#allocation2 + $0x68] sm:$0xff]
        %v1852 = vld [vmem:[#allocation2 + $0x70] sm:$0xff]
        %v1853 = vld [vmem:[#allocation2 + $0x78] sm:$0xff]
        %v1854 = vld [vmem:[#allocation2 + $0x80] sm:$0xff]
        %v1855 = vld [vmem:[#allocation2 + $0x88] sm:$0xff]
        %v1856 = vld [vmem:[#allocation2 + $0x90] sm:$0xff]
        %v1857 = vld [vmem:[#allocation2 + $0x98] sm:$0xff]
        %v1858 = vld [vmem:[#allocation2 + $0xa0] sm:$0xff]
        %v1859 = vld [vmem:[#allocation2 + $0xa8] sm:$0xff]
        %v1860 = vld [vmem:[#allocation2 + $0xb0] sm:$0xff]
        %v1861 = vld [vmem:[#allocation2 + $0xb8] sm:$0xff]
        %v1862 = vld [vmem:[#allocation2 + $0xc0] sm:$0xff]
        %v1863 = vld [vmem:[#allocation2 + $0xc8] sm:$0xff]
        %v1864 = vld [vmem:[#allocation2 + $0xd0] sm:$0xff]
        %v1865 = vld [vmem:[#allocation2 + $0xd8] sm:$0xff]
        %v1866 = vld [vmem:[#allocation2 + $0xe0] sm:$0xff]
        %v1867 = vld [vmem:[#allocation2 + $0xe8] sm:$0xff]
        %v1868 = vld [vmem:[#allocation2 + $0xf0] sm:$0xff]
        %v1869 = vld [vmem:[#allocation2 + $0xf8] sm:$0xff]
        %s1870 = scalar_lea.vmem %s1, 48
        %v1871 = vld [vmem:[%s1870] sm:$0xf]
        %v1872 = vld [vmem:[%s1870 + $0x4] sm:$0xf]
        %v1873 = vld [vmem:[%s1870 + $0x8] sm:$0xf]
        %v1874 = vld [vmem:[%s1870 + $0xc] sm:$0xf]
        %v1907 = vunpack.c.l.b16 %v1806
        %v1908 = vunpack.c.l.b16 %v1807
        %v1909 = vunpack.c.l.b16 %v1808
        %v1910 = vunpack.c.l.b16 %v1809
        %v1911 = vunpack.c.l.b16 %v1810
        %v1912 = vunpack.c.l.b16 %v1811
        %v1913 = vunpack.c.l.b16 %v1812
        %v1914 = vunpack.c.l.b16 %v1813
        %v1915 = vunpack.c.l.b16 %v1814
        %v1916 = vunpack.c.l.b16 %v1815
        %v1917 = vunpack.c.l.b16 %v1816
        %v1918 = vunpack.c.l.b16 %v1817
        %v1919 = vunpack.c.l.b16 %v1818
        %v1920 = vunpack.c.l.b16 %v1819
        %v1921 = vunpack.c.l.b16 %v1820
        %v1922 = vunpack.c.l.b16 %v1821
        %v1923 = vunpack.c.l.b16 %v1822
        %v1924 = vunpack.c.l.b16 %v1823
        %v1925 = vunpack.c.l.b16 %v1824
        %v1926 = vunpack.c.l.b16 %v1825
        %v1927 = vunpack.c.l.b16 %v1826
        %v1928 = vunpack.c.l.b16 %v1827
        %v1929 = vunpack.c.l.b16 %v1828
        %v1930 = vunpack.c.l.b16 %v1829
        %v1931 = vunpack.c.l.b16 %v1830
        %v1932 = vunpack.c.l.b16 %v1831
        %v1933 = vunpack.c.l.b16 %v1832
        %v1934 = vunpack.c.l.b16 %v1833
        %v1935 = vunpack.c.l.b16 %v1834
        %v1936 = vunpack.c.l.b16 %v1835
        %v1937 = vunpack.c.l.b16 %v1836
        %v1938 = vunpack.c.l.b16 %v1837
        %v1939 = vpack.c.b16 %v1908, %v1907
        %v1940 = vpack.c.b16 %v1910, %v1909
        %v1941 = vpack.c.b16 %v1912, %v1911
        %v1942 = vpack.c.b16 %v1914, %v1913
        %v1943 = vpack.c.b16 %v1916, %v1915
        %v1944 = vpack.c.b16 %v1918, %v1917
        %v1945 = vpack.c.b16 %v1920, %v1919
        %v1946 = vpack.c.b16 %v1922, %v1921
        %v1947 = vpack.c.b16 %v1924, %v1923
        %v1948 = vpack.c.b16 %v1926, %v1925
        %v1949 = vpack.c.b16 %v1928, %v1927
        %v1950 = vpack.c.b16 %v1930, %v1929
        %v1951 = vpack.c.b16 %v1932, %v1931
        %v1952 = vpack.c.b16 %v1934, %v1933
        %v1953 = vpack.c.b16 %v1936, %v1935
        %v1954 = vpack.c.b16 %v1938, %v1937
        %v1959 = vunpack.c.l.b16 %v1871
        %v1960 = vunpack.c.l.b16 %v1872
        %v1961 = vunpack.c.l.b16 %v1873
        %v1962 = vunpack.c.l.b16 %v1874
        %v1963 = vpack.c.b16 %v1960, %v1959
        %v1964 = vpack.c.b16 %v1962, %v1961
        %v1968 = vsel %vm369, %v1939, 0
        %v1971 = vsel %vm369, %v1940, 0
        %v1974 = vsel %vm369, %v1941, 0
        %v1977 = vsel %vm369, %v1942, 0
        %v1980 = vsel %vm369, %v1943, 0
        %v1983 = vsel %vm369, %v1944, 0
        %v1986 = vsel %vm369, %v1945, 0
        %v1989 = vsel %vm369, %v1946, 0
        %v1992 = vsel %vm369, %v1947, 0
        %v1995 = vsel %vm369, %v1948, 0
        %v1998 = vsel %vm369, %v1949, 0
        %v2001 = vsel %vm369, %v1950, 0
        %v2004 = vsel %vm369, %v1951, 0
        %v2007 = vsel %vm369, %v1952, 0
        %v2010 = vsel %vm369, %v1953, 0
        %v2013 = vsel %vm369, %v1954, 0
        %2015 = vmatprep.subr.bf16.mxu0 0
        %2016 = vmatpush1.bf16.msra.mxu0 %v1963
        %2017 = vmatprep.subr.bf16.mxu0 0
        %2018 = vmatpush1.bf16.msra.mxu0 %v1964
        %2019 = vmatprep.subr.bf16.mxu0 0
        %2020 = vmatpush1.bf16.msra.mxu0 0
        %2021 = vmatprep.subr.bf16.mxu0 0
        %2022 = vmatpush1.bf16.msra.mxu0 0
        %2023 = vmatprep.subr.bf16.mxu0 0
        %2024 = vmatpush1.bf16.msra.mxu0 0
        %2025 = vmatprep.subr.bf16.mxu0 0
        %2026 = vmatpush1.bf16.msra.mxu0 0
        %2027 = vmatprep.subr.bf16.mxu0 0
        %2028 = vmatpush1.bf16.msra.mxu0 0
        %2029 = vmatprep.subr.bf16.mxu0 0
        %2030 = vmatpush1.bf16.msra.mxu0 0
        %2031 = vmatprep.subr.bf16.mxu0 0
        %2032 = vmatpush1.bf16.msra.mxu0 0
        %2033 = vmatprep.subr.bf16.mxu0 0
        %2034 = vmatpush1.bf16.msra.mxu0 0
        %2035 = vmatprep.subr.bf16.mxu0 0
        %2036 = vmatpush1.bf16.msra.mxu0 0
        %2037 = vmatprep.subr.bf16.mxu0 0
        %2038 = vmatpush1.bf16.msra.mxu0 0
        %2039 = vmatprep.subr.bf16.mxu0 0
        %2040 = vmatpush1.bf16.msra.mxu0 0
        %2041 = vmatprep.subr.bf16.mxu0 0
        %2042 = vmatpush1.bf16.msra.mxu0 0
        %2043 = vmatprep.subr.bf16.mxu0 0
        %2044 = vmatpush1.bf16.msra.mxu0 0
        %2045 = vmatprep.subr.bf16.mxu0 0
        %2046 = vmatpush1.bf16.msra.mxu0 0
        %2047 = vmatprep.mubr.bf16.mxu0 0
        %2048 = vmatmul.mubr.bf16.gmra.mrb[0].mxu0 %v1968
        %v2049 = vpop.f32.mrb[0].mxu0
        %v2050 = vadd.f32 0.0, %v2049
        %v2051 = vpop.f32.mrb[0].mxu0
        %v2052 = vpop.f32.mrb[0].mxu0
        %v2053 = vadd.f32 0.0, %v2052
        %v2054 = vpop.f32.mrb[0].mxu0
        %2055 = vmatprep.mubr.bf16.mxu0 0
        %2056 = vmatmul.mubr.bf16.gmra.mrb[0].mxu0 %v1971
        %v2057 = vpop.f32.mrb[0].mxu0
        %v2058 = vadd.f32 0.0, %v2057
        %v2059 = vpop.f32.mrb[0].mxu0
        %v2060 = vpop.f32.mrb[0].mxu0
        %v2061 = vadd.f32 0.0, %v2060
        %v2062 = vpop.f32.mrb[0].mxu0
        %2063 = vmatprep.mubr.bf16.mxu0 0
        %2064 = vmatmul.mubr.bf16.gmra.mrb[0].mxu0 %v1974
        %v2065 = vpop.f32.mrb[0].mxu0
        %v2066 = vadd.f32 0.0, %v2065
        %v2067 = vpop.f32.mrb[0].mxu0
        %v2068 = vpop.f32.mrb[0].mxu0
        %v2069 = vadd.f32 0.0, %v2068
        %v2070 = vpop.f32.mrb[0].mxu0
        %2071 = vmatprep.mubr.bf16.mxu0 0
        %2072 = vmatmul.mubr.bf16.gmra.mrb[0].mxu0 %v1977
        %v2073 = vpop.f32.mrb[0].mxu0
        %v2074 = vadd.f32 0.0, %v2073
        %v2075 = vpop.f32.mrb[0].mxu0
        %v2076 = vpop.f32.mrb[0].mxu0
        %v2077 = vadd.f32 0.0, %v2076
        %v2078 = vpop.f32.mrb[0].mxu0
        %2079 = vmatprep.mubr.bf16.mxu0 0
        %2080 = vmatmul.mubr.bf16.gmra.mrb[0].mxu0 %v1980
        %v2081 = vpop.f32.mrb[0].mxu0
        %v2082 = vadd.f32 0.0, %v2081
        %v2083 = vpop.f32.mrb[0].mxu0
        %v2084 = vpop.f32.mrb[0].mxu0
        %v2085 = vadd.f32 0.0, %v2084
        %v2086 = vpop.f32.mrb[0].mxu0
        %2087 = vmatprep.mubr.bf16.mxu0 0
        %2088 = vmatmul.mubr.bf16.gmra.mrb[0].mxu0 %v1983
        %v2089 = vpop.f32.mrb[0].mxu0
        %v2090 = vadd.f32 0.0, %v2089
        %v2091 = vpop.f32.mrb[0].mxu0
        %v2092 = vpop.f32.mrb[0].mxu0
        %v2093 = vadd.f32 0.0, %v2092
        %v2094 = vpop.f32.mrb[0].mxu0
        %2095 = vmatprep.mubr.bf16.mxu0 0
        %2096 = vmatmul.mubr.bf16.gmra.mrb[0].mxu0 %v1986
        %v2097 = vpop.f32.mrb[0].mxu0
        %v2098 = vadd.f32 0.0, %v2097
        %v2099 = vpop.f32.mrb[0].mxu0
        %v2100 = vpop.f32.mrb[0].mxu0
        %v2101 = vadd.f32 0.0, %v2100
        %v2102 = vpop.f32.mrb[0].mxu0
        %2103 = vmatprep.mubr.bf16.mxu0 0
        %2104 = vmatmul.mubr.bf16.gmra.mrb[0].mxu0 %v1989
        %v2105 = vpop.f32.mrb[0].mxu0
        %v2106 = vadd.f32 0.0, %v2105
        %v2107 = vpop.f32.mrb[0].mxu0
        %v2108 = vpop.f32.mrb[0].mxu0
        %v2109 = vadd.f32 0.0, %v2108
        %v2110 = vpop.f32.mrb[0].mxu0
        %2111 = vmatprep.mubr.bf16.mxu0 0
        %2112 = vmatmul.mubr.bf16.gmra.mrb[0].mxu0 %v1992
        %v2113 = vpop.f32.mrb[0].mxu0
        %v2114 = vadd.f32 0.0, %v2113
        %v2115 = vpop.f32.mrb[0].mxu0
        %v2116 = vpop.f32.mrb[0].mxu0
        %v2117 = vadd.f32 0.0, %v2116
        %v2118 = vpop.f32.mrb[0].mxu0
        %2119 = vmatprep.mubr.bf16.mxu0 0
        %2120 = vmatmul.mubr.bf16.gmra.mrb[0].mxu0 %v1995
        %v2121 = vpop.f32.mrb[0].mxu0
        %v2122 = vadd.f32 0.0, %v2121
        %v2123 = vpop.f32.mrb[0].mxu0
        %v2124 = vpop.f32.mrb[0].mxu0
        %v2125 = vadd.f32 0.0, %v2124
        %v2126 = vpop.f32.mrb[0].mxu0
        %2127 = vmatprep.mubr.bf16.mxu0 0
        %2128 = vmatmul.mubr.bf16.gmra.mrb[0].mxu0 %v1998
        %v2129 = vpop.f32.mrb[0].mxu0
        %v2130 = vadd.f32 0.0, %v2129
        %v2131 = vpop.f32.mrb[0].mxu0
        %v2132 = vpop.f32.mrb[0].mxu0
        %v2133 = vadd.f32 0.0, %v2132
        %v2134 = vpop.f32.mrb[0].mxu0
        %2135 = vmatprep.mubr.bf16.mxu0 0
        %2136 = vmatmul.mubr.bf16.gmra.mrb[0].mxu0 %v2001
        %v2137 = vpop.f32.mrb[0].mxu0
        %v2138 = vadd.f32 0.0, %v2137
        %v2139 = vpop.f32.mrb[0].mxu0
        %v2140 = vpop.f32.mrb[0].mxu0
        %v2141 = vadd.f32 0.0, %v2140
        %v2142 = vpop.f32.mrb[0].mxu0
        %2143 = vmatprep.mubr.bf16.mxu0 0
        %2144 = vmatmul.mubr.bf16.gmra.mrb[0].mxu0 %v2004
        %v2145 = vpop.f32.mrb[0].mxu0
        %v2146 = vadd.f32 0.0, %v2145
        %v2147 = vpop.f32.mrb[0].mxu0
        %v2148 = vpop.f32.mrb[0].mxu0
        %v2149 = vadd.f32 0.0, %v2148
        %v2150 = vpop.f32.mrb[0].mxu0
        %2151 = vmatprep.mubr.bf16.mxu0 0
        %2152 = vmatmul.mubr.bf16.gmra.mrb[0].mxu0 %v2007
        %v2153 = vpop.f32.mrb[0].mxu0
        %v2154 = vadd.f32 0.0, %v2153
        %v2155 = vpop.f32.mrb[0].mxu0
        %v2156 = vpop.f32.mrb[0].mxu0
        %v2157 = vadd.f32 0.0, %v2156
        %v2158 = vpop.f32.mrb[0].mxu0
        %2159 = vmatprep.mubr.bf16.mxu0 0
        %2160 = vmatmul.mubr.bf16.gmra.mrb[0].mxu0 %v2010
        %v2161 = vpop.f32.mrb[0].mxu0
        %v2162 = vadd.f32 0.0, %v2161
        %v2163 = vpop.f32.mrb[0].mxu0
        %v2164 = vpop.f32.mrb[0].mxu0
        %v2165 = vadd.f32 0.0, %v2164
        %v2166 = vpop.f32.mrb[0].mxu0
        %2167 = vmatprep.mubr.bf16.mxu0 0
        %2168 = vmatmul.mubr.bf16.gmra.mrb[0].mxu0 %v2013
        %v2169 = vpop.f32.mrb[0].mxu0
        %v2170 = vadd.f32 0.0, %v2169
        %v2171 = vpop.f32.mrb[0].mxu0
        %v2172 = vpop.f32.mrb[0].mxu0
        %v2173 = vadd.f32 0.0, %v2172
        %v2174 = vpop.f32.mrb[0].mxu0
        %2175 = vdwg.mxu0
        %v2176 = vadd.f32 %v1838, %v2050
        %v2177 = vadd.f32 %v1839, %v2053
        %v2178 = vadd.f32 %v1840, %v2058
        %v2179 = vadd.f32 %v1841, %v2061
        %v2180 = vadd.f32 %v1842, %v2066
        %v2181 = vadd.f32 %v1843, %v2069
        %v2182 = vadd.f32 %v1844, %v2074
        %v2183 = vadd.f32 %v1845, %v2077
        %v2184 = vadd.f32 %v1846, %v2082
        %v2185 = vadd.f32 %v1847, %v2085
        %v2186 = vadd.f32 %v1848, %v2090
        %v2187 = vadd.f32 %v1849, %v2093
        %v2188 = vadd.f32 %v1850, %v2098
        %v2189 = vadd.f32 %v1851, %v2101
        %v2190 = vadd.f32 %v1852, %v2106
        %v2191 = vadd.f32 %v1853, %v2109
        %v2192 = vadd.f32 %v1854, %v2114
        %v2193 = vadd.f32 %v1855, %v2117
        %v2194 = vadd.f32 %v1856, %v2122
        %v2195 = vadd.f32 %v1857, %v2125
        %v2196 = vadd.f32 %v1858, %v2130
        %v2197 = vadd.f32 %v1859, %v2133
        %v2198 = vadd.f32 %v1860, %v2138
        %v2199 = vadd.f32 %v1861, %v2141
        %v2200 = vadd.f32 %v1862, %v2146
        %v2201 = vadd.f32 %v1863, %v2149
        %v2202 = vadd.f32 %v1864, %v2154
        %v2203 = vadd.f32 %v1865, %v2157
        %v2204 = vadd.f32 %v1866, %v2162
        %v2205 = vadd.f32 %v1867, %v2165
        %v2206 = vadd.f32 %v1868, %v2170
        %v2207 = vadd.f32 %v1869, %v2173
        %2208 = vst [vmem:[#allocation2] sm:$0xff] %v2176
        %2209 = vst [vmem:[#allocation2 + $0x8] sm:$0xff] %v2177
        %2210 = vst [vmem:[#allocation2 + $0x10] sm:$0xff] %v2178
        %2211 = vst [vmem:[#allocation2 + $0x18] sm:$0xff] %v2179
        %2212 = vst [vmem:[#allocation2 + $0x20] sm:$0xff] %v2180
        %2213 = vst [vmem:[#allocation2 + $0x28] sm:$0xff] %v2181
        %2214 = vst [vmem:[#allocation2 + $0x30] sm:$0xff] %v2182
        %2215 = vst [vmem:[#allocation2 + $0x38] sm:$0xff] %v2183
        %2216 = vst [vmem:[#allocation2 + $0x40] sm:$0xff] %v2184
        %2217 = vst [vmem:[#allocation2 + $0x48] sm:$0xff] %v2185
        %2218 = vst [vmem:[#allocation2 + $0x50] sm:$0xff] %v2186
        %2219 = vst [vmem:[#allocation2 + $0x58] sm:$0xff] %v2187
        %2220 = vst [vmem:[#allocation2 + $0x60] sm:$0xff] %v2188
        %2221 = vst [vmem:[#allocation2 + $0x68] sm:$0xff] %v2189
        %2222 = vst [vmem:[#allocation2 + $0x70] sm:$0xff] %v2190
        %2223 = vst [vmem:[#allocation2 + $0x78] sm:$0xff] %v2191
        %2224 = vst [vmem:[#allocation2 + $0x80] sm:$0xff] %v2192
        %2225 = vst [vmem:[#allocation2 + $0x88] sm:$0xff] %v2193
        %2226 = vst [vmem:[#allocation2 + $0x90] sm:$0xff] %v2194
        %2227 = vst [vmem:[#allocation2 + $0x98] sm:$0xff] %v2195
        %2228 = vst [vmem:[#allocation2 + $0xa0] sm:$0xff] %v2196
        %2229 = vst [vmem:[#allocation2 + $0xa8] sm:$0xff] %v2197
        %2230 = vst [vmem:[#allocation2 + $0xb0] sm:$0xff] %v2198
        %2231 = vst [vmem:[#allocation2 + $0xb8] sm:$0xff] %v2199
        %2232 = vst [vmem:[#allocation2 + $0xc0] sm:$0xff] %v2200
        %2233 = vst [vmem:[#allocation2 + $0xc8] sm:$0xff] %v2201
        %2234 = vst [vmem:[#allocation2 + $0xd0] sm:$0xff] %v2202
        %2235 = vst [vmem:[#allocation2 + $0xd8] sm:$0xff] %v2203
        %2236 = vst [vmem:[#allocation2 + $0xe0] sm:$0xff] %v2204
        %2237 = vst [vmem:[#allocation2 + $0xe8] sm:$0xff] %v2205
        %2238 = vst [vmem:[#allocation2 + $0xf0] sm:$0xff] %v2206
        %2239 = vst [vmem:[#allocation2 + $0xf8] sm:$0xff] %v2207
        %v2240 = vld [vmem:[%s1805] sm:$0xe]
        %v2241 = vld [vmem:[%s1805 + $0x4] sm:$0xf]
        %v2242 = vld [vmem:[%s1805 + $0x8] sm:$0x1]
        %v2243 = vld [vmem:[%s1805 + $0xc] sm:$0xe]
        %v2244 = vld [vmem:[%s1805 + $0x10] sm:$0xf]
        %v2245 = vld [vmem:[%s1805 + $0x14] sm:$0x1]
        %v2246 = vld [vmem:[%s1805 + $0x18] sm:$0xe]
        %v2247 = vld [vmem:[%s1805 + $0x1c] sm:$0xf]
        %v2248 = vld [vmem:[%s1805 + $0x20] sm:$0x1]
        %v2249 = vld [vmem:[%s1805 + $0x24] sm:$0xe]
        %v2250 = vld [vmem:[%s1805 + $0x28] sm:$0xf]
        %v2251 = vld [vmem:[%s1805 + $0x2c] sm:$0x1]
        %v2252 = vld [vmem:[%s1805 + $0x30] sm:$0xe]
        %v2253 = vld [vmem:[%s1805 + $0x34] sm:$0xf]
        %v2254 = vld [vmem:[%s1805 + $0x38] sm:$0x1]
        %v2255 = vld [vmem:[%s1805 + $0x3c] sm:$0xe]
        %v2256 = vld [vmem:[%s1805 + $0x40] sm:$0xf]
        %v2257 = vld [vmem:[%s1805 + $0x44] sm:$0x1]
        %v2258 = vld [vmem:[%s1805 + $0x48] sm:$0xe]
        %v2259 = vld [vmem:[%s1805 + $0x4c] sm:$0xf]
        %v2260 = vld [vmem:[%s1805 + $0x50] sm:$0x1]
        %v2261 = vld [vmem:[%s1805 + $0x54] sm:$0xe]
        %v2262 = vld [vmem:[%s1805 + $0x58] sm:$0xf]
        %v2263 = vld [vmem:[%s1805 + $0x5c] sm:$0x1]
        %v2264 = vld [vmem:[%s1805 + $0x60] sm:$0xe]
        %v2265 = vld [vmem:[%s1805 + $0x64] sm:$0xf]
        %v2266 = vld [vmem:[%s1805 + $0x68] sm:$0x1]
        %v2267 = vld [vmem:[%s1805 + $0x6c] sm:$0xe]
        %v2268 = vld [vmem:[%s1805 + $0x70] sm:$0xf]
        %v2269 = vld [vmem:[%s1805 + $0x74] sm:$0x1]
        %v2270 = vld [vmem:[%s1805 + $0x78] sm:$0xe]
        %v2271 = vld [vmem:[%s1805 + $0x7c] sm:$0xf]
        %v2272 = vld [vmem:[%s1805 + $0x80] sm:$0x1]
        %v2273 = vld [vmem:[%s1805 + $0x84] sm:$0xe]
        %v2274 = vld [vmem:[%s1805 + $0x88] sm:$0xf]
        %v2275 = vld [vmem:[%s1805 + $0x8c] sm:$0x1]
        %v2276 = vld [vmem:[%s1805 + $0x90] sm:$0xe]
        %v2277 = vld [vmem:[%s1805 + $0x94] sm:$0xf]
        %v2278 = vld [vmem:[%s1805 + $0x98] sm:$0x1]
        %v2279 = vld [vmem:[%s1805 + $0x9c] sm:$0xe]
        %v2280 = vld [vmem:[%s1805 + $0xa0] sm:$0xf]
        %v2281 = vld [vmem:[%s1805 + $0xa4] sm:$0x1]
        %v2282 = vld [vmem:[%s1805 + $0xa8] sm:$0xe]
        %v2283 = vld [vmem:[%s1805 + $0xac] sm:$0xf]
        %v2284 = vld [vmem:[%s1805 + $0xb0] sm:$0x1]
        %v2285 = vld [vmem:[%s1805 + $0xb4] sm:$0xe]
        %v2286 = vld [vmem:[%s1805 + $0xb8] sm:$0xf]
        %v2287 = vld [vmem:[%s1805 + $0xbc] sm:$0x1]
        %v2336 = vrot.slane %v2240, 5
        %v2337 = vrot.slane %v2336, 4
        %v2338 = vrot.slane %v2241, 5
        %v2339 = vsel %vm741, %v2337, %v2338
        %v2340 = vrot.slane %v2338, 4
        %v2341 = vrot.slane %v2242, 5
        %v2342 = vsel %vm741, %v2340, %v2341
        %v2343 = vrot.slane %v2243, 5
        %v2344 = vrot.slane %v2343, 4
        %v2345 = vrot.slane %v2244, 5
        %v2346 = vsel %vm741, %v2344, %v2345
        %v2347 = vrot.slane %v2345, 4
        %v2348 = vrot.slane %v2245, 5
        %v2349 = vsel %vm741, %v2347, %v2348
        %v2350 = vrot.slane %v2246, 5
        %v2351 = vrot.slane %v2350, 4
        %v2352 = vrot.slane %v2247, 5
        %v2353 = vsel %vm741, %v2351, %v2352
        %v2354 = vrot.slane %v2352, 4
        %v2355 = vrot.slane %v2248, 5
        %v2356 = vsel %vm741, %v2354, %v2355
        %v2357 = vrot.slane %v2249, 5
        %v2358 = vrot.slane %v2357, 4
        %v2359 = vrot.slane %v2250, 5
        %v2360 = vsel %vm741, %v2358, %v2359
        %v2361 = vrot.slane %v2359, 4
        %v2362 = vrot.slane %v2251, 5
        %v2363 = vsel %vm741, %v2361, %v2362
        %v2364 = vrot.slane %v2252, 5
        %v2365 = vrot.slane %v2364, 4
        %v2366 = vrot.slane %v2253, 5
        %v2367 = vsel %vm741, %v2365, %v2366
        %v2368 = vrot.slane %v2366, 4
        %v2369 = vrot.slane %v2254, 5
        %v2370 = vsel %vm741, %v2368, %v2369
        %v2371 = vrot.slane %v2255, 5
        %v2372 = vrot.slane %v2371, 4
        %v2373 = vrot.slane %v2256, 5
        %v2374 = vsel %vm741, %v2372, %v2373
        %v2375 = vrot.slane %v2373, 4
        %v2376 = vrot.slane %v2257, 5
        %v2377 = vsel %vm741, %v2375, %v2376
        %v2378 = vrot.slane %v2258, 5
        %v2379 = vrot.slane %v2378, 4
        %v2380 = vrot.slane %v2259, 5
        %v2381 = vsel %vm741, %v2379, %v2380
        %v2382 = vrot.slane %v2380, 4
        %v2383 = vrot.slane %v2260, 5
        %v2384 = vsel %vm741, %v2382, %v2383
        %v2385 = vrot.slane %v2261, 5
        %v2386 = vrot.slane %v2385, 4
        %v2387 = vrot.slane %v2262, 5
        %v2388 = vsel %vm741, %v2386, %v2387
        %v2389 = vrot.slane %v2387, 4
        %v2390 = vrot.slane %v2263, 5
        %v2391 = vsel %vm741, %v2389, %v2390
        %v2392 = vrot.slane %v2264, 5
        %v2393 = vrot.slane %v2392, 4
        %v2394 = vrot.slane %v2265, 5
        %v2395 = vsel %vm741, %v2393, %v2394
        %v2396 = vrot.slane %v2394, 4
        %v2397 = vrot.slane %v2266, 5
        %v2398 = vsel %vm741, %v2396, %v2397
        %v2399 = vrot.slane %v2267, 5
        %v2400 = vrot.slane %v2399, 4
        %v2401 = vrot.slane %v2268, 5
        %v2402 = vsel %vm741, %v2400, %v2401
        %v2403 = vrot.slane %v2401, 4
        %v2404 = vrot.slane %v2269, 5
        %v2405 = vsel %vm741, %v2403, %v2404
        %v2406 = vrot.slane %v2270, 5
        %v2407 = vrot.slane %v2406, 4
        %v2408 = vrot.slane %v2271, 5
        %v2409 = vsel %vm741, %v2407, %v2408
        %v2410 = vrot.slane %v2408, 4
        %v2411 = vrot.slane %v2272, 5
        %v2412 = vsel %vm741, %v2410, %v2411
        %v2413 = vrot.slane %v2273, 5
        %v2414 = vrot.slane %v2413, 4
        %v2415 = vrot.slane %v2274, 5
        %v2416 = vsel %vm741, %v2414, %v2415
        %v2417 = vrot.slane %v2415, 4
        %v2418 = vrot.slane %v2275, 5
        %v2419 = vsel %vm741, %v2417, %v2418
        %v2420 = vrot.slane %v2276, 5
        %v2421 = vrot.slane %v2420, 4
        %v2422 = vrot.slane %v2277, 5
        %v2423 = vsel %vm741, %v2421, %v2422
        %v2424 = vrot.slane %v2422, 4
        %v2425 = vrot.slane %v2278, 5
        %v2426 = vsel %vm741, %v2424, %v2425
        %v2427 = vrot.slane %v2279, 5
        %v2428 = vrot.slane %v2427, 4
        %v2429 = vrot.slane %v2280, 5
        %v2430 = vsel %vm741, %v2428, %v2429
        %v2431 = vrot.slane %v2429, 4
        %v2432 = vrot.slane %v2281, 5
        %v2433 = vsel %vm741, %v2431, %v2432
        %v2434 = vrot.slane %v2282, 5
        %v2435 = vrot.slane %v2434, 4
        %v2436 = vrot.slane %v2283, 5
        %v2437 = vsel %vm741, %v2435, %v2436
        %v2438 = vrot.slane %v2436, 4
        %v2439 = vrot.slane %v2284, 5
        %v2440 = vsel %vm741, %v2438, %v2439
        %v2441 = vrot.slane %v2285, 5
        %v2442 = vrot.slane %v2441, 4
        %v2443 = vrot.slane %v2286, 5
        %v2444 = vsel %vm741, %v2442, %v2443
        %v2445 = vrot.slane %v2443, 4
        %v2446 = vrot.slane %v2287, 5
        %v2447 = vsel %vm741, %v2445, %v2446
        %v2448 = vld [vmem:[#allocation2] sm:$0xff]
        %v2449 = vld [vmem:[#allocation2 + $0x8] sm:$0xff]
        %v2450 = vld [vmem:[#allocation2 + $0x10] sm:$0xff]
        %v2451 = vld [vmem:[#allocation2 + $0x18] sm:$0xff]
        %v2452 = vld [vmem:[#allocation2 + $0x20] sm:$0xff]
        %v2453 = vld [vmem:[#allocation2 + $0x28] sm:$0xff]
        %v2454 = vld [vmem:[#allocation2 + $0x30] sm:$0xff]
        %v2455 = vld [vmem:[#allocation2 + $0x38] sm:$0xff]
        %v2456 = vld [vmem:[#allocation2 + $0x40] sm:$0xff]
        %v2457 = vld [vmem:[#allocation2 + $0x48] sm:$0xff]
        %v2458 = vld [vmem:[#allocation2 + $0x50] sm:$0xff]
        %v2459 = vld [vmem:[#allocation2 + $0x58] sm:$0xff]
        %v2460 = vld [vmem:[#allocation2 + $0x60] sm:$0xff]
        %v2461 = vld [vmem:[#allocation2 + $0x68] sm:$0xff]
        %v2462 = vld [vmem:[#allocation2 + $0x70] sm:$0xff]
        %v2463 = vld [vmem:[#allocation2 + $0x78] sm:$0xff]
        %v2464 = vld [vmem:[#allocation2 + $0x80] sm:$0xff]
        %v2465 = vld [vmem:[#allocation2 + $0x88] sm:$0xff]
        %v2466 = vld [vmem:[#allocation2 + $0x90] sm:$0xff]
        %v2467 = vld [vmem:[#allocation2 + $0x98] sm:$0xff]
        %v2468 = vld [vmem:[#allocation2 + $0xa0] sm:$0xff]
        %v2469 = vld [vmem:[#allocation2 + $0xa8] sm:$0xff]
        %v2470 = vld [vmem:[#allocation2 + $0xb0] sm:$0xff]
        %v2471 = vld [vmem:[#allocation2 + $0xb8] sm:$0xff]
        %v2472 = vld [vmem:[#allocation2 + $0xc0] sm:$0xff]
        %v2473 = vld [vmem:[#allocation2 + $0xc8] sm:$0xff]
        %v2474 = vld [vmem:[#allocation2 + $0xd0] sm:$0xff]
        %v2475 = vld [vmem:[#allocation2 + $0xd8] sm:$0xff]
        %v2476 = vld [vmem:[#allocation2 + $0xe0] sm:$0xff]
        %v2477 = vld [vmem:[#allocation2 + $0xe8] sm:$0xff]
        %v2478 = vld [vmem:[#allocation2 + $0xf0] sm:$0xff]
        %v2479 = vld [vmem:[#allocation2 + $0xf8] sm:$0xff]
        %s2480 = scalar_lea.vmem %s1, 64
        %v2481 = vld [vmem:[%s2480] sm:$0xf]
        %v2482 = vld [vmem:[%s2480 + $0x4] sm:$0xf]
        %v2483 = vld [vmem:[%s2480 + $0x8] sm:$0xf]
        %v2484 = vld [vmem:[%s2480 + $0xc] sm:$0xf]
        %v2485 = vunpack.c.l.b16 %v2339
        %v2486 = vunpack.c.l.b16 %v2342
        %v2487 = vunpack.c.l.b16 %v2346
        %v2488 = vunpack.c.l.b16 %v2349
        %v2489 = vunpack.c.l.b16 %v2353
        %v2490 = vunpack.c.l.b16 %v2356
        %v2491 = vunpack.c.l.b16 %v2360
        %v2492 = vunpack.c.l.b16 %v2363
        %v2493 = vunpack.c.l.b16 %v2367
        %v2494 = vunpack.c.l.b16 %v2370
        %v2495 = vunpack.c.l.b16 %v2374
        %v2496 = vunpack.c.l.b16 %v2377
        %v2497 = vunpack.c.l.b16 %v2381
        %v2498 = vunpack.c.l.b16 %v2384
        %v2499 = vunpack.c.l.b16 %v2388
        %v2500 = vunpack.c.l.b16 %v2391
        %v2501 = vunpack.c.l.b16 %v2395
        %v2502 = vunpack.c.l.b16 %v2398
        %v2503 = vunpack.c.l.b16 %v2402
        %v2504 = vunpack.c.l.b16 %v2405
        %v2505 = vunpack.c.l.b16 %v2409
        %v2506 = vunpack.c.l.b16 %v2412
        %v2507 = vunpack.c.l.b16 %v2416
        %v2508 = vunpack.c.l.b16 %v2419
        %v2509 = vunpack.c.l.b16 %v2423
        %v2510 = vunpack.c.l.b16 %v2426
        %v2511 = vunpack.c.l.b16 %v2430
        %v2512 = vunpack.c.l.b16 %v2433
        %v2513 = vunpack.c.l.b16 %v2437
        %v2514 = vunpack.c.l.b16 %v2440
        %v2515 = vunpack.c.l.b16 %v2444
        %v2516 = vunpack.c.l.b16 %v2447
        %v2517 = vpack.c.b16 %v2486, %v2485
        %v2518 = vpack.c.b16 %v2488, %v2487
        %v2519 = vpack.c.b16 %v2490, %v2489
        %v2520 = vpack.c.b16 %v2492, %v2491
        %v2521 = vpack.c.b16 %v2494, %v2493
        %v2522 = vpack.c.b16 %v2496, %v2495
        %v2523 = vpack.c.b16 %v2498, %v2497
        %v2524 = vpack.c.b16 %v2500, %v2499
        %v2525 = vpack.c.b16 %v2502, %v2501
        %v2526 = vpack.c.b16 %v2504, %v2503
        %v2527 = vpack.c.b16 %v2506, %v2505
        %v2528 = vpack.c.b16 %v2508, %v2507
        %v2529 = vpack.c.b16 %v2510, %v2509
        %v2530 = vpack.c.b16 %v2512, %v2511
        %v2531 = vpack.c.b16 %v2514, %v2513
        %v2532 = vpack.c.b16 %v2516, %v2515
        %v2537 = vunpack.c.l.b16 %v2481
        %v2538 = vunpack.c.l.b16 %v2482
        %v2539 = vunpack.c.l.b16 %v2483
        %v2540 = vunpack.c.l.b16 %v2484
        %v2541 = vpack.c.b16 %v2538, %v2537
        %v2542 = vpack.c.b16 %v2540, %v2539
        %v2546 = vsel %vm369, %v2517, 0
        %v2549 = vsel %vm369, %v2518, 0
        %v2552 = vsel %vm369, %v2519, 0
        %v2555 = vsel %vm369, %v2520, 0
        %v2558 = vsel %vm369, %v2521, 0
        %v2561 = vsel %vm369, %v2522, 0
        %v2564 = vsel %vm369, %v2523, 0
        %v2567 = vsel %vm369, %v2524, 0
        %v2570 = vsel %vm369, %v2525, 0
        %v2573 = vsel %vm369, %v2526, 0
        %v2576 = vsel %vm369, %v2527, 0
        %v2579 = vsel %vm369, %v2528, 0
        %v2582 = vsel %vm369, %v2529, 0
        %v2585 = vsel %vm369, %v2530, 0
        %v2588 = vsel %vm369, %v2531, 0
        %v2591 = vsel %vm369, %v2532, 0
        %2593 = vmatprep.subr.bf16.mxu0 0
        %2594 = vmatpush1.bf16.msra.mxu0 %v2541
        %2595 = vmatprep.subr.bf16.mxu0 0
        %2596 = vmatpush1.bf16.msra.mxu0 %v2542
        %2597 = vmatprep.subr.bf16.mxu0 0
        %2598 = vmatpush1.bf16.msra.mxu0 0
        %2599 = vmatprep.subr.bf16.mxu0 0
        %2600 = vmatpush1.bf16.msra.mxu0 0
        %2601 = vmatprep.subr.bf16.mxu0 0
        %2602 = vmatpush1.bf16.msra.mxu0 0
        %2603 = vmatprep.subr.bf16.mxu0 0
        %2604 = vmatpush1.bf16.msra.mxu0 0
        %2605 = vmatprep.subr.bf16.mxu0 0
        %2606 = vmatpush1.bf16.msra.mxu0 0
        %2607 = vmatprep.subr.bf16.mxu0 0
        %2608 = vmatpush1.bf16.msra.mxu0 0
        %2609 = vmatprep.subr.bf16.mxu0 0
        %2610 = vmatpush1.bf16.msra.mxu0 0
        %2611 = vmatprep.subr.bf16.mxu0 0
        %2612 = vmatpush1.bf16.msra.mxu0 0
        %2613 = vmatprep.subr.bf16.mxu0 0
        %2614 = vmatpush1.bf16.msra.mxu0 0
        %2615 = vmatprep.subr.bf16.mxu0 0
        %2616 = vmatpush1.bf16.msra.mxu0 0
        %2617 = vmatprep.subr.bf16.mxu0 0
        %2618 = vmatpush1.bf16.msra.mxu0 0
        %2619 = vmatprep.subr.bf16.mxu0 0
        %2620 = vmatpush1.bf16.msra.mxu0 0
        %2621 = vmatprep.subr.bf16.mxu0 0
        %2622 = vmatpush1.bf16.msra.mxu0 0
        %2623 = vmatprep.subr.bf16.mxu0 0
        %2624 = vmatpush1.bf16.msra.mxu0 0
        %2625 = vmatprep.mubr.bf16.mxu0 0
        %2626 = vmatmul.mubr.bf16.gmra.mrb[0].mxu0 %v2546
        %v2627 = vpop.f32.mrb[0].mxu0
        %v2628 = vadd.f32 0.0, %v2627
        %v2629 = vpop.f32.mrb[0].mxu0
        %v2630 = vpop.f32.mrb[0].mxu0
        %v2631 = vadd.f32 0.0, %v2630
        %v2632 = vpop.f32.mrb[0].mxu0
        %2633 = vmatprep.mubr.bf16.mxu0 0
        %2634 = vmatmul.mubr.bf16.gmra.mrb[0].mxu0 %v2549
        %v2635 = vpop.f32.mrb[0].mxu0
        %v2636 = vadd.f32 0.0, %v2635
        %v2637 = vpop.f32.mrb[0].mxu0
        %v2638 = vpop.f32.mrb[0].mxu0
        %v2639 = vadd.f32 0.0, %v2638
        %v2640 = vpop.f32.mrb[0].mxu0
        %2641 = vmatprep.mubr.bf16.mxu0 0
        %2642 = vmatmul.mubr.bf16.gmra.mrb[0].mxu0 %v2552
        %v2643 = vpop.f32.mrb[0].mxu0
        %v2644 = vadd.f32 0.0, %v2643
        %v2645 = vpop.f32.mrb[0].mxu0
        %v2646 = vpop.f32.mrb[0].mxu0
        %v2647 = vadd.f32 0.0, %v2646
        %v2648 = vpop.f32.mrb[0].mxu0
        %2649 = vmatprep.mubr.bf16.mxu0 0
        %2650 = vmatmul.mubr.bf16.gmra.mrb[0].mxu0 %v2555
        %v2651 = vpop.f32.mrb[0].mxu0
        %v2652 = vadd.f32 0.0, %v2651
        %v2653 = vpop.f32.mrb[0].mxu0
        %v2654 = vpop.f32.mrb[0].mxu0
        %v2655 = vadd.f32 0.0, %v2654
        %v2656 = vpop.f32.mrb[0].mxu0
        %2657 = vmatprep.mubr.bf16.mxu0 0
        %2658 = vmatmul.mubr.bf16.gmra.mrb[0].mxu0 %v2558
        %v2659 = vpop.f32.mrb[0].mxu0
        %v2660 = vadd.f32 0.0, %v2659
        %v2661 = vpop.f32.mrb[0].mxu0
        %v2662 = vpop.f32.mrb[0].mxu0
        %v2663 = vadd.f32 0.0, %v2662
        %v2664 = vpop.f32.mrb[0].mxu0
        %2665 = vmatprep.mubr.bf16.mxu0 0
        %2666 = vmatmul.mubr.bf16.gmra.mrb[0].mxu0 %v2561
        %v2667 = vpop.f32.mrb[0].mxu0
        %v2668 = vadd.f32 0.0, %v2667
        %v2669 = vpop.f32.mrb[0].mxu0
        %v2670 = vpop.f32.mrb[0].mxu0
        %v2671 = vadd.f32 0.0, %v2670
        %v2672 = vpop.f32.mrb[0].mxu0
        %2673 = vmatprep.mubr.bf16.mxu0 0
        %2674 = vmatmul.mubr.bf16.gmra.mrb[0].mxu0 %v2564
        %v2675 = vpop.f32.mrb[0].mxu0
        %v2676 = vadd.f32 0.0, %v2675
        %v2677 = vpop.f32.mrb[0].mxu0
        %v2678 = vpop.f32.mrb[0].mxu0
        %v2679 = vadd.f32 0.0, %v2678
        %v2680 = vpop.f32.mrb[0].mxu0
        %2681 = vmatprep.mubr.bf16.mxu0 0
        %2682 = vmatmul.mubr.bf16.gmra.mrb[0].mxu0 %v2567
        %v2683 = vpop.f32.mrb[0].mxu0
        %v2684 = vadd.f32 0.0, %v2683
        %v2685 = vpop.f32.mrb[0].mxu0
        %v2686 = vpop.f32.mrb[0].mxu0
        %v2687 = vadd.f32 0.0, %v2686
        %v2688 = vpop.f32.mrb[0].mxu0
        %2689 = vmatprep.mubr.bf16.mxu0 0
        %2690 = vmatmul.mubr.bf16.gmra.mrb[0].mxu0 %v2570
        %v2691 = vpop.f32.mrb[0].mxu0
        %v2692 = vadd.f32 0.0, %v2691
        %v2693 = vpop.f32.mrb[0].mxu0
        %v2694 = vpop.f32.mrb[0].mxu0
        %v2695 = vadd.f32 0.0, %v2694
        %v2696 = vpop.f32.mrb[0].mxu0
        %2697 = vmatprep.mubr.bf16.mxu0 0
        %2698 = vmatmul.mubr.bf16.gmra.mrb[0].mxu0 %v2573
        %v2699 = vpop.f32.mrb[0].mxu0
        %v2700 = vadd.f32 0.0, %v2699
        %v2701 = vpop.f32.mrb[0].mxu0
        %v2702 = vpop.f32.mrb[0].mxu0
        %v2703 = vadd.f32 0.0, %v2702
        %v2704 = vpop.f32.mrb[0].mxu0
        %2705 = vmatprep.mubr.bf16.mxu0 0
        %2706 = vmatmul.mubr.bf16.gmra.mrb[0].mxu0 %v2576
        %v2707 = vpop.f32.mrb[0].mxu0
        %v2708 = vadd.f32 0.0, %v2707
        %v2709 = vpop.f32.mrb[0].mxu0
        %v2710 = vpop.f32.mrb[0].mxu0
        %v2711 = vadd.f32 0.0, %v2710
        %v2712 = vpop.f32.mrb[0].mxu0
        %2713 = vmatprep.mubr.bf16.mxu0 0
        %2714 = vmatmul.mubr.bf16.gmra.mrb[0].mxu0 %v2579
        %v2715 = vpop.f32.mrb[0].mxu0
        %v2716 = vadd.f32 0.0, %v2715
        %v2717 = vpop.f32.mrb[0].mxu0
        %v2718 = vpop.f32.mrb[0].mxu0
        %v2719 = vadd.f32 0.0, %v2718
        %v2720 = vpop.f32.mrb[0].mxu0
        %2721 = vmatprep.mubr.bf16.mxu0 0
        %2722 = vmatmul.mubr.bf16.gmra.mrb[0].mxu0 %v2582
        %v2723 = vpop.f32.mrb[0].mxu0
        %v2724 = vadd.f32 0.0, %v2723
        %v2725 = vpop.f32.mrb[0].mxu0
        %v2726 = vpop.f32.mrb[0].mxu0
        %v2727 = vadd.f32 0.0, %v2726
        %v2728 = vpop.f32.mrb[0].mxu0
        %2729 = vmatprep.mubr.bf16.mxu0 0
        %2730 = vmatmul.mubr.bf16.gmra.mrb[0].mxu0 %v2585
        %v2731 = vpop.f32.mrb[0].mxu0
        %v2732 = vadd.f32 0.0, %v2731
        %v2733 = vpop.f32.mrb[0].mxu0
        %v2734 = vpop.f32.mrb[0].mxu0
        %v2735 = vadd.f32 0.0, %v2734
        %v2736 = vpop.f32.mrb[0].mxu0
        %2737 = vmatprep.mubr.bf16.mxu0 0
        %2738 = vmatmul.mubr.bf16.gmra.mrb[0].mxu0 %v2588
        %v2739 = vpop.f32.mrb[0].mxu0
        %v2740 = vadd.f32 0.0, %v2739
        %v2741 = vpop.f32.mrb[0].mxu0
        %v2742 = vpop.f32.mrb[0].mxu0
        %v2743 = vadd.f32 0.0, %v2742
        %v2744 = vpop.f32.mrb[0].mxu0
        %2745 = vmatprep.mubr.bf16.mxu0 0
        %2746 = vmatmul.mubr.bf16.gmra.mrb[0].mxu0 %v2591
        %v2747 = vpop.f32.mrb[0].mxu0
        %v2748 = vadd.f32 0.0, %v2747
        %v2749 = vpop.f32.mrb[0].mxu0
        %v2750 = vpop.f32.mrb[0].mxu0
        %v2751 = vadd.f32 0.0, %v2750
        %v2752 = vpop.f32.mrb[0].mxu0
        %2753 = vdwg.mxu0
        %v2754 = vadd.f32 %v2448, %v2628
        %v2755 = vadd.f32 %v2449, %v2631
        %v2756 = vadd.f32 %v2450, %v2636
        %v2757 = vadd.f32 %v2451, %v2639
        %v2758 = vadd.f32 %v2452, %v2644
        %v2759 = vadd.f32 %v2453, %v2647
        %v2760 = vadd.f32 %v2454, %v2652
        %v2761 = vadd.f32 %v2455, %v2655
        %v2762 = vadd.f32 %v2456, %v2660
        %v2763 = vadd.f32 %v2457, %v2663
        %v2764 = vadd.f32 %v2458, %v2668
        %v2765 = vadd.f32 %v2459, %v2671
        %v2766 = vadd.f32 %v2460, %v2676
        %v2767 = vadd.f32 %v2461, %v2679
        %v2768 = vadd.f32 %v2462, %v2684
        %v2769 = vadd.f32 %v2463, %v2687
        %v2770 = vadd.f32 %v2464, %v2692
        %v2771 = vadd.f32 %v2465, %v2695
        %v2772 = vadd.f32 %v2466, %v2700
        %v2773 = vadd.f32 %v2467, %v2703
        %v2774 = vadd.f32 %v2468, %v2708
        %v2775 = vadd.f32 %v2469, %v2711
        %v2776 = vadd.f32 %v2470, %v2716
        %v2777 = vadd.f32 %v2471, %v2719
        %v2778 = vadd.f32 %v2472, %v2724
        %v2779 = vadd.f32 %v2473, %v2727
        %v2780 = vadd.f32 %v2474, %v2732
        %v2781 = vadd.f32 %v2475, %v2735
        %v2782 = vadd.f32 %v2476, %v2740
        %v2783 = vadd.f32 %v2477, %v2743
        %v2784 = vadd.f32 %v2478, %v2748
        %v2785 = vadd.f32 %v2479, %v2751
        %2786 = vst [vmem:[#allocation2] sm:$0xff] %v2754
        %2787 = vst [vmem:[#allocation2 + $0x8] sm:$0xff] %v2755
        %2788 = vst [vmem:[#allocation2 + $0x10] sm:$0xff] %v2756
        %2789 = vst [vmem:[#allocation2 + $0x18] sm:$0xff] %v2757
        %2790 = vst [vmem:[#allocation2 + $0x20] sm:$0xff] %v2758
        %2791 = vst [vmem:[#allocation2 + $0x28] sm:$0xff] %v2759
        %2792 = vst [vmem:[#allocation2 + $0x30] sm:$0xff] %v2760
        %2793 = vst [vmem:[#allocation2 + $0x38] sm:$0xff] %v2761
        %2794 = vst [vmem:[#allocation2 + $0x40] sm:$0xff] %v2762
        %2795 = vst [vmem:[#allocation2 + $0x48] sm:$0xff] %v2763
        %2796 = vst [vmem:[#allocation2 + $0x50] sm:$0xff] %v2764
        %2797 = vst [vmem:[#allocation2 + $0x58] sm:$0xff] %v2765
        %2798 = vst [vmem:[#allocation2 + $0x60] sm:$0xff] %v2766
        %2799 = vst [vmem:[#allocation2 + $0x68] sm:$0xff] %v2767
        %2800 = vst [vmem:[#allocation2 + $0x70] sm:$0xff] %v2768
        %2801 = vst [vmem:[#allocation2 + $0x78] sm:$0xff] %v2769
        %2802 = vst [vmem:[#allocation2 + $0x80] sm:$0xff] %v2770
        %2803 = vst [vmem:[#allocation2 + $0x88] sm:$0xff] %v2771
        %2804 = vst [vmem:[#allocation2 + $0x90] sm:$0xff] %v2772
        %2805 = vst [vmem:[#allocation2 + $0x98] sm:$0xff] %v2773
        %2806 = vst [vmem:[#allocation2 + $0xa0] sm:$0xff] %v2774
        %2807 = vst [vmem:[#allocation2 + $0xa8] sm:$0xff] %v2775
        %2808 = vst [vmem:[#allocation2 + $0xb0] sm:$0xff] %v2776
        %2809 = vst [vmem:[#allocation2 + $0xb8] sm:$0xff] %v2777
        %2810 = vst [vmem:[#allocation2 + $0xc0] sm:$0xff] %v2778
        %2811 = vst [vmem:[#allocation2 + $0xc8] sm:$0xff] %v2779
        %2812 = vst [vmem:[#allocation2 + $0xd0] sm:$0xff] %v2780
        %2813 = vst [vmem:[#allocation2 + $0xd8] sm:$0xff] %v2781
        %2814 = vst [vmem:[#allocation2 + $0xe0] sm:$0xff] %v2782
        %2815 = vst [vmem:[#allocation2 + $0xe8] sm:$0xff] %v2783
        %2816 = vst [vmem:[#allocation2 + $0xf0] sm:$0xff] %v2784
        %2817 = vst [vmem:[#allocation2 + $0xf8] sm:$0xff] %v2785
        %v2818 = vld [vmem:[%s1805] sm:$0xc]
        %v2819 = vld [vmem:[%s1805 + $0x4] sm:$0xf]
        %v2820 = vld [vmem:[%s1805 + $0x8] sm:$0x3]
        %v2821 = vld [vmem:[%s1805 + $0xc] sm:$0xc]
        %v2822 = vld [vmem:[%s1805 + $0x10] sm:$0xf]
        %v2823 = vld [vmem:[%s1805 + $0x14] sm:$0x3]
        %v2824 = vld [vmem:[%s1805 + $0x18] sm:$0xc]
        %v2825 = vld [vmem:[%s1805 + $0x1c] sm:$0xf]
        %v2826 = vld [vmem:[%s1805 + $0x20] sm:$0x3]
        %v2827 = vld [vmem:[%s1805 + $0x24] sm:$0xc]
        %v2828 = vld [vmem:[%s1805 + $0x28] sm:$0xf]
        %v2829 = vld [vmem:[%s1805 + $0x2c] sm:$0x3]
        %v2830 = vld [vmem:[%s1805 + $0x30] sm:$0xc]
        %v2831 = vld [vmem:[%s1805 + $0x34] sm:$0xf]
        %v2832 = vld [vmem:[%s1805 + $0x38] sm:$0x3]
        %v2833 = vld [vmem:[%s1805 + $0x3c] sm:$0xc]
        %v2834 = vld [vmem:[%s1805 + $0x40] sm:$0xf]
        %v2835 = vld [vmem:[%s1805 + $0x44] sm:$0x3]
        %v2836 = vld [vmem:[%s1805 + $0x48] sm:$0xc]
        %v2837 = vld [vmem:[%s1805 + $0x4c] sm:$0xf]
        %v2838 = vld [vmem:[%s1805 + $0x50] sm:$0x3]
        %v2839 = vld [vmem:[%s1805 + $0x54] sm:$0xc]
        %v2840 = vld [vmem:[%s1805 + $0x58] sm:$0xf]
        %v2841 = vld [vmem:[%s1805 + $0x5c] sm:$0x3]
        %v2842 = vld [vmem:[%s1805 + $0x60] sm:$0xc]
        %v2843 = vld [vmem:[%s1805 + $0x64] sm:$0xf]
        %v2844 = vld [vmem:[%s1805 + $0x68] sm:$0x3]
        %v2845 = vld [vmem:[%s1805 + $0x6c] sm:$0xc]
        %v2846 = vld [vmem:[%s1805 + $0x70] sm:$0xf]
        %v2847 = vld [vmem:[%s1805 + $0x74] sm:$0x3]
        %v2848 = vld [vmem:[%s1805 + $0x78] sm:$0xc]
        %v2849 = vld [vmem:[%s1805 + $0x7c] sm:$0xf]
        %v2850 = vld [vmem:[%s1805 + $0x80] sm:$0x3]
        %v2851 = vld [vmem:[%s1805 + $0x84] sm:$0xc]
        %v2852 = vld [vmem:[%s1805 + $0x88] sm:$0xf]
        %v2853 = vld [vmem:[%s1805 + $0x8c] sm:$0x3]
        %v2854 = vld [vmem:[%s1805 + $0x90] sm:$0xc]
        %v2855 = vld [vmem:[%s1805 + $0x94] sm:$0xf]
        %v2856 = vld [vmem:[%s1805 + $0x98] sm:$0x3]
        %v2857 = vld [vmem:[%s1805 + $0x9c] sm:$0xc]
        %v2858 = vld [vmem:[%s1805 + $0xa0] sm:$0xf]
        %v2859 = vld [vmem:[%s1805 + $0xa4] sm:$0x3]
        %v2860 = vld [vmem:[%s1805 + $0xa8] sm:$0xc]
        %v2861 = vld [vmem:[%s1805 + $0xac] sm:$0xf]
        %v2862 = vld [vmem:[%s1805 + $0xb0] sm:$0x3]
        %v2863 = vld [vmem:[%s1805 + $0xb4] sm:$0xc]
        %v2864 = vld [vmem:[%s1805 + $0xb8] sm:$0xf]
        %v2865 = vld [vmem:[%s1805 + $0xbc] sm:$0x3]
        %v2914 = vrot.slane %v2818, 6
        %v2915 = vrot.slane %v2914, 4
        %v2916 = vrot.slane %v2819, 6
        %v2917 = vsel %vm1322, %v2915, %v2916
        %v2918 = vrot.slane %v2916, 4
        %v2919 = vrot.slane %v2820, 6
        %v2920 = vsel %vm1322, %v2918, %v2919
        %v2921 = vrot.slane %v2821, 6
        %v2922 = vrot.slane %v2921, 4
        %v2923 = vrot.slane %v2822, 6
        %v2924 = vsel %vm1322, %v2922, %v2923
        %v2925 = vrot.slane %v2923, 4
        %v2926 = vrot.slane %v2823, 6
        %v2927 = vsel %vm1322, %v2925, %v2926
        %v2928 = vrot.slane %v2824, 6
        %v2929 = vrot.slane %v2928, 4
        %v2930 = vrot.slane %v2825, 6
        %v2931 = vsel %vm1322, %v2929, %v2930
        %v2932 = vrot.slane %v2930, 4
        %v2933 = vrot.slane %v2826, 6
        %v2934 = vsel %vm1322, %v2932, %v2933
        %v2935 = vrot.slane %v2827, 6
        %v2936 = vrot.slane %v2935, 4
        %v2937 = vrot.slane %v2828, 6
        %v2938 = vsel %vm1322, %v2936, %v2937
        %v2939 = vrot.slane %v2937, 4
        %v2940 = vrot.slane %v2829, 6
        %v2941 = vsel %vm1322, %v2939, %v2940
        %v2942 = vrot.slane %v2830, 6
        %v2943 = vrot.slane %v2942, 4
        %v2944 = vrot.slane %v2831, 6
        %v2945 = vsel %vm1322, %v2943, %v2944
        %v2946 = vrot.slane %v2944, 4
        %v2947 = vrot.slane %v2832, 6
        %v2948 = vsel %vm1322, %v2946, %v2947
        %v2949 = vrot.slane %v2833, 6
        %v2950 = vrot.slane %v2949, 4
        %v2951 = vrot.slane %v2834, 6
        %v2952 = vsel %vm1322, %v2950, %v2951
        %v2953 = vrot.slane %v2951, 4
        %v2954 = vrot.slane %v2835, 6
        %v2955 = vsel %vm1322, %v2953, %v2954
        %v2956 = vrot.slane %v2836, 6
        %v2957 = vrot.slane %v2956, 4
        %v2958 = vrot.slane %v2837, 6
        %v2959 = vsel %vm1322, %v2957, %v2958
        %v2960 = vrot.slane %v2958, 4
        %v2961 = vrot.slane %v2838, 6
        %v2962 = vsel %vm1322, %v2960, %v2961
        %v2963 = vrot.slane %v2839, 6
        %v2964 = vrot.slane %v2963, 4
        %v2965 = vrot.slane %v2840, 6
        %v2966 = vsel %vm1322, %v2964, %v2965
        %v2967 = vrot.slane %v2965, 4
        %v2968 = vrot.slane %v2841, 6
        %v2969 = vsel %vm1322, %v2967, %v2968
        %v2970 = vrot.slane %v2842, 6
        %v2971 = vrot.slane %v2970, 4
        %v2972 = vrot.slane %v2843, 6
        %v2973 = vsel %vm1322, %v2971, %v2972
        %v2974 = vrot.slane %v2972, 4
        %v2975 = vrot.slane %v2844, 6
        %v2976 = vsel %vm1322, %v2974, %v2975
        %v2977 = vrot.slane %v2845, 6
        %v2978 = vrot.slane %v2977, 4
        %v2979 = vrot.slane %v2846, 6
        %v2980 = vsel %vm1322, %v2978, %v2979
        %v2981 = vrot.slane %v2979, 4
        %v2982 = vrot.slane %v2847, 6
        %v2983 = vsel %vm1322, %v2981, %v2982
        %v2984 = vrot.slane %v2848, 6
        %v2985 = vrot.slane %v2984, 4
        %v2986 = vrot.slane %v2849, 6
        %v2987 = vsel %vm1322, %v2985, %v2986
        %v2988 = vrot.slane %v2986, 4
        %v2989 = vrot.slane %v2850, 6
        %v2990 = vsel %vm1322, %v2988, %v2989
        %v2991 = vrot.slane %v2851, 6
        %v2992 = vrot.slane %v2991, 4
        %v2993 = vrot.slane %v2852, 6
        %v2994 = vsel %vm1322, %v2992, %v2993
        %v2995 = vrot.slane %v2993, 4
        %v2996 = vrot.slane %v2853, 6
        %v2997 = vsel %vm1322, %v2995, %v2996
        %v2998 = vrot.slane %v2854, 6
        %v2999 = vrot.slane %v2998, 4
        %v3000 = vrot.slane %v2855, 6
        %v3001 = vsel %vm1322, %v2999, %v3000
        %v3002 = vrot.slane %v3000, 4
        %v3003 = vrot.slane %v2856, 6
        %v3004 = vsel %vm1322, %v3002, %v3003
        %v3005 = vrot.slane %v2857, 6
        %v3006 = vrot.slane %v3005, 4
        %v3007 = vrot.slane %v2858, 6
        %v3008 = vsel %vm1322, %v3006, %v3007
        %v3009 = vrot.slane %v3007, 4
        %v3010 = vrot.slane %v2859, 6
        %v3011 = vsel %vm1322, %v3009, %v3010
        %v3012 = vrot.slane %v2860, 6
        %v3013 = vrot.slane %v3012, 4
        %v3014 = vrot.slane %v2861, 6
        %v3015 = vsel %vm1322, %v3013, %v3014
        %v3016 = vrot.slane %v3014, 4
        %v3017 = vrot.slane %v2862, 6
        %v3018 = vsel %vm1322, %v3016, %v3017
        %v3019 = vrot.slane %v2863, 6
        %v3020 = vrot.slane %v3019, 4
        %v3021 = vrot.slane %v2864, 6
        %v3022 = vsel %vm1322, %v3020, %v3021
        %v3023 = vrot.slane %v3021, 4
        %v3024 = vrot.slane %v2865, 6
        %v3025 = vsel %vm1322, %v3023, %v3024
        %v3026 = vld [vmem:[#allocation2] sm:$0xff]
        %v3027 = vld [vmem:[#allocation2 + $0x8] sm:$0xff]
        %v3028 = vld [vmem:[#allocation2 + $0x10] sm:$0xff]
        %v3029 = vld [vmem:[#allocation2 + $0x18] sm:$0xff]
        %v3030 = vld [vmem:[#allocation2 + $0x20] sm:$0xff]
        %v3031 = vld [vmem:[#allocation2 + $0x28] sm:$0xff]
        %v3032 = vld [vmem:[#allocation2 + $0x30] sm:$0xff]
        %v3033 = vld [vmem:[#allocation2 + $0x38] sm:$0xff]
        %v3034 = vld [vmem:[#allocation2 + $0x40] sm:$0xff]
        %v3035 = vld [vmem:[#allocation2 + $0x48] sm:$0xff]
        %v3036 = vld [vmem:[#allocation2 + $0x50] sm:$0xff]
        %v3037 = vld [vmem:[#allocation2 + $0x58] sm:$0xff]
        %v3038 = vld [vmem:[#allocation2 + $0x60] sm:$0xff]
        %v3039 = vld [vmem:[#allocation2 + $0x68] sm:$0xff]
        %v3040 = vld [vmem:[#allocation2 + $0x70] sm:$0xff]
        %v3041 = vld [vmem:[#allocation2 + $0x78] sm:$0xff]
        %v3042 = vld [vmem:[#allocation2 + $0x80] sm:$0xff]
        %v3043 = vld [vmem:[#allocation2 + $0x88] sm:$0xff]
        %v3044 = vld [vmem:[#allocation2 + $0x90] sm:$0xff]
        %v3045 = vld [vmem:[#allocation2 + $0x98] sm:$0xff]
        %v3046 = vld [vmem:[#allocation2 + $0xa0] sm:$0xff]
        %v3047 = vld [vmem:[#allocation2 + $0xa8] sm:$0xff]
        %v3048 = vld [vmem:[#allocation2 + $0xb0] sm:$0xff]
        %v3049 = vld [vmem:[#allocation2 + $0xb8] sm:$0xff]
        %v3050 = vld [vmem:[#allocation2 + $0xc0] sm:$0xff]
        %v3051 = vld [vmem:[#allocation2 + $0xc8] sm:$0xff]
        %v3052 = vld [vmem:[#allocation2 + $0xd0] sm:$0xff]
        %v3053 = vld [vmem:[#allocation2 + $0xd8] sm:$0xff]
        %v3054 = vld [vmem:[#allocation2 + $0xe0] sm:$0xff]
        %v3055 = vld [vmem:[#allocation2 + $0xe8] sm:$0xff]
        %v3056 = vld [vmem:[#allocation2 + $0xf0] sm:$0xff]
        %v3057 = vld [vmem:[#allocation2 + $0xf8] sm:$0xff]
        %s3058 = scalar_lea.vmem %s1, 80
        %v3059 = vld [vmem:[%s3058] sm:$0xf]
        %v3060 = vld [vmem:[%s3058 + $0x4] sm:$0xf]
        %v3061 = vld [vmem:[%s3058 + $0x8] sm:$0xf]
        %v3062 = vld [vmem:[%s3058 + $0xc] sm:$0xf]
        %v3063 = vunpack.c.l.b16 %v2917
        %v3064 = vunpack.c.l.b16 %v2920
        %v3065 = vunpack.c.l.b16 %v2924
        %v3066 = vunpack.c.l.b16 %v2927
        %v3067 = vunpack.c.l.b16 %v2931
        %v3068 = vunpack.c.l.b16 %v2934
        %v3069 = vunpack.c.l.b16 %v2938
        %v3070 = vunpack.c.l.b16 %v2941
        %v3071 = vunpack.c.l.b16 %v2945
        %v3072 = vunpack.c.l.b16 %v2948
        %v3073 = vunpack.c.l.b16 %v2952
        %v3074 = vunpack.c.l.b16 %v2955
        %v3075 = vunpack.c.l.b16 %v2959
        %v3076 = vunpack.c.l.b16 %v2962
        %v3077 = vunpack.c.l.b16 %v2966
        %v3078 = vunpack.c.l.b16 %v2969
        %v3079 = vunpack.c.l.b16 %v2973
        %v3080 = vunpack.c.l.b16 %v2976
        %v3081 = vunpack.c.l.b16 %v2980
        %v3082 = vunpack.c.l.b16 %v2983
        %v3083 = vunpack.c.l.b16 %v2987
        %v3084 = vunpack.c.l.b16 %v2990
        %v3085 = vunpack.c.l.b16 %v2994
        %v3086 = vunpack.c.l.b16 %v2997
        %v3087 = vunpack.c.l.b16 %v3001
        %v3088 = vunpack.c.l.b16 %v3004
        %v3089 = vunpack.c.l.b16 %v3008
        %v3090 = vunpack.c.l.b16 %v3011
        %v3091 = vunpack.c.l.b16 %v3015
        %v3092 = vunpack.c.l.b16 %v3018
        %v3093 = vunpack.c.l.b16 %v3022
        %v3094 = vunpack.c.l.b16 %v3025
        %v3095 = vpack.c.b16 %v3064, %v3063
        %v3096 = vpack.c.b16 %v3066, %v3065
        %v3097 = vpack.c.b16 %v3068, %v3067
        %v3098 = vpack.c.b16 %v3070, %v3069
        %v3099 = vpack.c.b16 %v3072, %v3071
        %v3100 = vpack.c.b16 %v3074, %v3073
        %v3101 = vpack.c.b16 %v3076, %v3075
        %v3102 = vpack.c.b16 %v3078, %v3077
        %v3103 = vpack.c.b16 %v3080, %v3079
        %v3104 = vpack.c.b16 %v3082, %v3081
        %v3105 = vpack.c.b16 %v3084, %v3083
        %v3106 = vpack.c.b16 %v3086, %v3085
        %v3107 = vpack.c.b16 %v3088, %v3087
        %v3108 = vpack.c.b16 %v3090, %v3089
        %v3109 = vpack.c.b16 %v3092, %v3091
        %v3110 = vpack.c.b16 %v3094, %v3093
        %v3115 = vunpack.c.l.b16 %v3059
        %v3116 = vunpack.c.l.b16 %v3060
        %v3117 = vunpack.c.l.b16 %v3061
        %v3118 = vunpack.c.l.b16 %v3062
        %v3119 = vpack.c.b16 %v3116, %v3115
        %v3120 = vpack.c.b16 %v3118, %v3117
        %v3124 = vsel %vm369, %v3095, 0
        %v3127 = vsel %vm369, %v3096, 0
        %v3130 = vsel %vm369, %v3097, 0
        %v3133 = vsel %vm369, %v3098, 0
        %v3136 = vsel %vm369, %v3099, 0
        %v3139 = vsel %vm369, %v3100, 0
        %v3142 = vsel %vm369, %v3101, 0
        %v3145 = vsel %vm369, %v3102, 0
        %v3148 = vsel %vm369, %v3103, 0
        %v3151 = vsel %vm369, %v3104, 0
        %v3154 = vsel %vm369, %v3105, 0
        %v3157 = vsel %vm369, %v3106, 0
        %v3160 = vsel %vm369, %v3107, 0
        %v3163 = vsel %vm369, %v3108, 0
        %v3166 = vsel %vm369, %v3109, 0
        %v3169 = vsel %vm369, %v3110, 0
        %3171 = vmatprep.subr.bf16.mxu0 0
        %3172 = vmatpush1.bf16.msra.mxu0 %v3119
        %3173 = vmatprep.subr.bf16.mxu0 0
        %3174 = vmatpush1.bf16.msra.mxu0 %v3120
        %3175 = vmatprep.subr.bf16.mxu0 0
        %3176 = vmatpush1.bf16.msra.mxu0 0
        %3177 = vmatprep.subr.bf16.mxu0 0
        %3178 = vmatpush1.bf16.msra.mxu0 0
        %3179 = vmatprep.subr.bf16.mxu0 0
        %3180 = vmatpush1.bf16.msra.mxu0 0
        %3181 = vmatprep.subr.bf16.mxu0 0
        %3182 = vmatpush1.bf16.msra.mxu0 0
        %3183 = vmatprep.subr.bf16.mxu0 0
        %3184 = vmatpush1.bf16.msra.mxu0 0
        %3185 = vmatprep.subr.bf16.mxu0 0
        %3186 = vmatpush1.bf16.msra.mxu0 0
        %3187 = vmatprep.subr.bf16.mxu0 0
        %3188 = vmatpush1.bf16.msra.mxu0 0
        %3189 = vmatprep.subr.bf16.mxu0 0
        %3190 = vmatpush1.bf16.msra.mxu0 0
        %3191 = vmatprep.subr.bf16.mxu0 0
        %3192 = vmatpush1.bf16.msra.mxu0 0
        %3193 = vmatprep.subr.bf16.mxu0 0
        %3194 = vmatpush1.bf16.msra.mxu0 0
        %3195 = vmatprep.subr.bf16.mxu0 0
        %3196 = vmatpush1.bf16.msra.mxu0 0
        %3197 = vmatprep.subr.bf16.mxu0 0
        %3198 = vmatpush1.bf16.msra.mxu0 0
        %3199 = vmatprep.subr.bf16.mxu0 0
        %3200 = vmatpush1.bf16.msra.mxu0 0
        %3201 = vmatprep.subr.bf16.mxu0 0
        %3202 = vmatpush1.bf16.msra.mxu0 0
        %3203 = vmatprep.mubr.bf16.mxu0 0
        %3204 = vmatmul.mubr.bf16.gmra.mrb[0].mxu0 %v3124
        %v3205 = vpop.f32.mrb[0].mxu0
        %v3206 = vadd.f32 0.0, %v3205
        %v3207 = vpop.f32.mrb[0].mxu0
        %v3208 = vpop.f32.mrb[0].mxu0
        %v3209 = vadd.f32 0.0, %v3208
        %v3210 = vpop.f32.mrb[0].mxu0
        %3211 = vmatprep.mubr.bf16.mxu0 0
        %3212 = vmatmul.mubr.bf16.gmra.mrb[0].mxu0 %v3127
        %v3213 = vpop.f32.mrb[0].mxu0
        %v3214 = vadd.f32 0.0, %v3213
        %v3215 = vpop.f32.mrb[0].mxu0
        %v3216 = vpop.f32.mrb[0].mxu0
        %v3217 = vadd.f32 0.0, %v3216
        %v3218 = vpop.f32.mrb[0].mxu0
        %3219 = vmatprep.mubr.bf16.mxu0 0
        %3220 = vmatmul.mubr.bf16.gmra.mrb[0].mxu0 %v3130
        %v3221 = vpop.f32.mrb[0].mxu0
        %v3222 = vadd.f32 0.0, %v3221
        %v3223 = vpop.f32.mrb[0].mxu0
        %v3224 = vpop.f32.mrb[0].mxu0
        %v3225 = vadd.f32 0.0, %v3224
        %v3226 = vpop.f32.mrb[0].mxu0
        %3227 = vmatprep.mubr.bf16.mxu0 0
        %3228 = vmatmul.mubr.bf16.gmra.mrb[0].mxu0 %v3133
        %v3229 = vpop.f32.mrb[0].mxu0
        %v3230 = vadd.f32 0.0, %v3229
        %v3231 = vpop.f32.mrb[0].mxu0
        %v3232 = vpop.f32.mrb[0].mxu0
        %v3233 = vadd.f32 0.0, %v3232
        %v3234 = vpop.f32.mrb[0].mxu0
        %3235 = vmatprep.mubr.bf16.mxu0 0
        %3236 = vmatmul.mubr.bf16.gmra.mrb[0].mxu0 %v3136
        %v3237 = vpop.f32.mrb[0].mxu0
        %v3238 = vadd.f32 0.0, %v3237
        %v3239 = vpop.f32.mrb[0].mxu0
        %v3240 = vpop.f32.mrb[0].mxu0
        %v3241 = vadd.f32 0.0, %v3240
        %v3242 = vpop.f32.mrb[0].mxu0
        %3243 = vmatprep.mubr.bf16.mxu0 0
        %3244 = vmatmul.mubr.bf16.gmra.mrb[0].mxu0 %v3139
        %v3245 = vpop.f32.mrb[0].mxu0
        %v3246 = vadd.f32 0.0, %v3245
        %v3247 = vpop.f32.mrb[0].mxu0
        %v3248 = vpop.f32.mrb[0].mxu0
        %v3249 = vadd.f32 0.0, %v3248
        %v3250 = vpop.f32.mrb[0].mxu0
        %3251 = vmatprep.mubr.bf16.mxu0 0
        %3252 = vmatmul.mubr.bf16.gmra.mrb[0].mxu0 %v3142
        %v3253 = vpop.f32.mrb[0].mxu0
        %v3254 = vadd.f32 0.0, %v3253
        %v3255 = vpop.f32.mrb[0].mxu0
        %v3256 = vpop.f32.mrb[0].mxu0
        %v3257 = vadd.f32 0.0, %v3256
        %v3258 = vpop.f32.mrb[0].mxu0
        %3259 = vmatprep.mubr.bf16.mxu0 0
        %3260 = vmatmul.mubr.bf16.gmra.mrb[0].mxu0 %v3145
        %v3261 = vpop.f32.mrb[0].mxu0
        %v3262 = vadd.f32 0.0, %v3261
        %v3263 = vpop.f32.mrb[0].mxu0
        %v3264 = vpop.f32.mrb[0].mxu0
        %v3265 = vadd.f32 0.0, %v3264
        %v3266 = vpop.f32.mrb[0].mxu0
        %3267 = vmatprep.mubr.bf16.mxu0 0
        %3268 = vmatmul.mubr.bf16.gmra.mrb[0].mxu0 %v3148
        %v3269 = vpop.f32.mrb[0].mxu0
        %v3270 = vadd.f32 0.0, %v3269
        %v3271 = vpop.f32.mrb[0].mxu0
        %v3272 = vpop.f32.mrb[0].mxu0
        %v3273 = vadd.f32 0.0, %v3272
        %v3274 = vpop.f32.mrb[0].mxu0
        %3275 = vmatprep.mubr.bf16.mxu0 0
        %3276 = vmatmul.mubr.bf16.gmra.mrb[0].mxu0 %v3151
        %v3277 = vpop.f32.mrb[0].mxu0
        %v3278 = vadd.f32 0.0, %v3277
        %v3279 = vpop.f32.mrb[0].mxu0
        %v3280 = vpop.f32.mrb[0].mxu0
        %v3281 = vadd.f32 0.0, %v3280
        %v3282 = vpop.f32.mrb[0].mxu0
        %3283 = vmatprep.mubr.bf16.mxu0 0
        %3284 = vmatmul.mubr.bf16.gmra.mrb[0].mxu0 %v3154
        %v3285 = vpop.f32.mrb[0].mxu0
        %v3286 = vadd.f32 0.0, %v3285
        %v3287 = vpop.f32.mrb[0].mxu0
        %v3288 = vpop.f32.mrb[0].mxu0
        %v3289 = vadd.f32 0.0, %v3288
        %v3290 = vpop.f32.mrb[0].mxu0
        %3291 = vmatprep.mubr.bf16.mxu0 0
        %3292 = vmatmul.mubr.bf16.gmra.mrb[0].mxu0 %v3157
        %v3293 = vpop.f32.mrb[0].mxu0
        %v3294 = vadd.f32 0.0, %v3293
        %v3295 = vpop.f32.mrb[0].mxu0
        %v3296 = vpop.f32.mrb[0].mxu0
        %v3297 = vadd.f32 0.0, %v3296
        %v3298 = vpop.f32.mrb[0].mxu0
        %3299 = vmatprep.mubr.bf16.mxu0 0
        %3300 = vmatmul.mubr.bf16.gmra.mrb[0].mxu0 %v3160
        %v3301 = vpop.f32.mrb[0].mxu0
        %v3302 = vadd.f32 0.0, %v3301
        %v3303 = vpop.f32.mrb[0].mxu0
        %v3304 = vpop.f32.mrb[0].mxu0
        %v3305 = vadd.f32 0.0, %v3304
        %v3306 = vpop.f32.mrb[0].mxu0
        %3307 = vmatprep.mubr.bf16.mxu0 0
        %3308 = vmatmul.mubr.bf16.gmra.mrb[0].mxu0 %v3163
        %v3309 = vpop.f32.mrb[0].mxu0
        %v3310 = vadd.f32 0.0, %v3309
        %v3311 = vpop.f32.mrb[0].mxu0
        %v3312 = vpop.f32.mrb[0].mxu0
        %v3313 = vadd.f32 0.0, %v3312
        %v3314 = vpop.f32.mrb[0].mxu0
        %3315 = vmatprep.mubr.bf16.mxu0 0
        %3316 = vmatmul.mubr.bf16.gmra.mrb[0].mxu0 %v3166
        %v3317 = vpop.f32.mrb[0].mxu0
        %v3318 = vadd.f32 0.0, %v3317
        %v3319 = vpop.f32.mrb[0].mxu0
        %v3320 = vpop.f32.mrb[0].mxu0
        %v3321 = vadd.f32 0.0, %v3320
        %v3322 = vpop.f32.mrb[0].mxu0
        %3323 = vmatprep.mubr.bf16.mxu0 0
        %3324 = vmatmul.mubr.bf16.gmra.mrb[0].mxu0 %v3169
        %v3325 = vpop.f32.mrb[0].mxu0
        %v3326 = vadd.f32 0.0, %v3325
        %v3327 = vpop.f32.mrb[0].mxu0
        %v3328 = vpop.f32.mrb[0].mxu0
        %v3329 = vadd.f32 0.0, %v3328
        %v3330 = vpop.f32.mrb[0].mxu0
        %3331 = vdwg.mxu0
        %v3332 = vadd.f32 %v3026, %v3206
        %v3333 = vadd.f32 %v3027, %v3209
        %v3334 = vadd.f32 %v3028, %v3214
        %v3335 = vadd.f32 %v3029, %v3217
        %v3336 = vadd.f32 %v3030, %v3222
        %v3337 = vadd.f32 %v3031, %v3225
        %v3338 = vadd.f32 %v3032, %v3230
        %v3339 = vadd.f32 %v3033, %v3233
        %v3340 = vadd.f32 %v3034, %v3238
        %v3341 = vadd.f32 %v3035, %v3241
        %v3342 = vadd.f32 %v3036, %v3246
        %v3343 = vadd.f32 %v3037, %v3249
        %v3344 = vadd.f32 %v3038, %v3254
        %v3345 = vadd.f32 %v3039, %v3257
        %v3346 = vadd.f32 %v3040, %v3262
        %v3347 = vadd.f32 %v3041, %v3265
        %v3348 = vadd.f32 %v3042, %v3270
        %v3349 = vadd.f32 %v3043, %v3273
        %v3350 = vadd.f32 %v3044, %v3278
        %v3351 = vadd.f32 %v3045, %v3281
        %v3352 = vadd.f32 %v3046, %v3286
        %v3353 = vadd.f32 %v3047, %v3289
        %v3354 = vadd.f32 %v3048, %v3294
        %v3355 = vadd.f32 %v3049, %v3297
        %v3356 = vadd.f32 %v3050, %v3302
        %v3357 = vadd.f32 %v3051, %v3305
        %v3358 = vadd.f32 %v3052, %v3310
        %v3359 = vadd.f32 %v3053, %v3313
        %v3360 = vadd.f32 %v3054, %v3318
        %v3361 = vadd.f32 %v3055, %v3321
        %v3362 = vadd.f32 %v3056, %v3326
        %v3363 = vadd.f32 %v3057, %v3329
        %3364 = vst [vmem:[#allocation2] sm:$0xff] %v3332
        %3365 = vst [vmem:[#allocation2 + $0x8] sm:$0xff] %v3333
        %3366 = vst [vmem:[#allocation2 + $0x10] sm:$0xff] %v3334
        %3367 = vst [vmem:[#allocation2 + $0x18] sm:$0xff] %v3335
        %3368 = vst [vmem:[#allocation2 + $0x20] sm:$0xff] %v3336
        %3369 = vst [vmem:[#allocation2 + $0x28] sm:$0xff] %v3337
        %3370 = vst [vmem:[#allocation2 + $0x30] sm:$0xff] %v3338
        %3371 = vst [vmem:[#allocation2 + $0x38] sm:$0xff] %v3339
        %3372 = vst [vmem:[#allocation2 + $0x40] sm:$0xff] %v3340
        %3373 = vst [vmem:[#allocation2 + $0x48] sm:$0xff] %v3341
        %3374 = vst [vmem:[#allocation2 + $0x50] sm:$0xff] %v3342
        %3375 = vst [vmem:[#allocation2 + $0x58] sm:$0xff] %v3343
        %3376 = vst [vmem:[#allocation2 + $0x60] sm:$0xff] %v3344
        %3377 = vst [vmem:[#allocation2 + $0x68] sm:$0xff] %v3345
        %3378 = vst [vmem:[#allocation2 + $0x70] sm:$0xff] %v3346
        %3379 = vst [vmem:[#allocation2 + $0x78] sm:$0xff] %v3347
        %3380 = vst [vmem:[#allocation2 + $0x80] sm:$0xff] %v3348
        %3381 = vst [vmem:[#allocation2 + $0x88] sm:$0xff] %v3349
        %3382 = vst [vmem:[#allocation2 + $0x90] sm:$0xff] %v3350
        %3383 = vst [vmem:[#allocation2 + $0x98] sm:$0xff] %v3351
        %3384 = vst [vmem:[#allocation2 + $0xa0] sm:$0xff] %v3352
        %3385 = vst [vmem:[#allocation2 + $0xa8] sm:$0xff] %v3353
        %3386 = vst [vmem:[#allocation2 + $0xb0] sm:$0xff] %v3354
        %3387 = vst [vmem:[#allocation2 + $0xb8] sm:$0xff] %v3355
        %3388 = vst [vmem:[#allocation2 + $0xc0] sm:$0xff] %v3356
        %3389 = vst [vmem:[#allocation2 + $0xc8] sm:$0xff] %v3357
        %3390 = vst [vmem:[#allocation2 + $0xd0] sm:$0xff] %v3358
        %3391 = vst [vmem:[#allocation2 + $0xd8] sm:$0xff] %v3359
        %3392 = vst [vmem:[#allocation2 + $0xe0] sm:$0xff] %v3360
        %3393 = vst [vmem:[#allocation2 + $0xe8] sm:$0xff] %v3361
        %3394 = vst [vmem:[#allocation2 + $0xf0] sm:$0xff] %v3362
        %3395 = vst [vmem:[#allocation2 + $0xf8] sm:$0xff] %v3363
        %s3396 = scalar_lea.vmem %s168, 48
        %v3397 = vld [vmem:[%s3396] sm:$0xf]
        %v3398 = vld [vmem:[%s3396 + $0x4] sm:$0xf]
        %v3399 = vld [vmem:[%s3396 + $0xc] sm:$0xf]
        %v3400 = vld [vmem:[%s3396 + $0x10] sm:$0xf]
        %v3401 = vld [vmem:[%s3396 + $0x18] sm:$0xf]
        %v3402 = vld [vmem:[%s3396 + $0x1c] sm:$0xf]
        %v3403 = vld [vmem:[%s3396 + $0x24] sm:$0xf]
        %v3404 = vld [vmem:[%s3396 + $0x28] sm:$0xf]
        %v3405 = vld [vmem:[%s3396 + $0x30] sm:$0xf]
        %v3406 = vld [vmem:[%s3396 + $0x34] sm:$0xf]
        %v3407 = vld [vmem:[%s3396 + $0x3c] sm:$0xf]
        %v3408 = vld [vmem:[%s3396 + $0x40] sm:$0xf]
        %v3409 = vld [vmem:[%s3396 + $0x48] sm:$0xf]
        %v3410 = vld [vmem:[%s3396 + $0x4c] sm:$0xf]
        %v3411 = vld [vmem:[%s3396 + $0x54] sm:$0xf]
        %v3412 = vld [vmem:[%s3396 + $0x58] sm:$0xf]
        %v3413 = vld [vmem:[%s3396 + $0x60] sm:$0xf]
        %v3414 = vld [vmem:[%s3396 + $0x64] sm:$0xf]
        %v3415 = vld [vmem:[%s3396 + $0x6c] sm:$0xf]
        %v3416 = vld [vmem:[%s3396 + $0x70] sm:$0xf]
        %v3417 = vld [vmem:[%s3396 + $0x78] sm:$0xf]
        %v3418 = vld [vmem:[%s3396 + $0x7c] sm:$0xf]
        %v3419 = vld [vmem:[%s3396 + $0x84] sm:$0xf]
        %v3420 = vld [vmem:[%s3396 + $0x88] sm:$0xf]
        %v3421 = vld [vmem:[%s3396 + $0x90] sm:$0xf]
        %v3422 = vld [vmem:[%s3396 + $0x94] sm:$0xf]
        %v3423 = vld [vmem:[%s3396 + $0x9c] sm:$0xf]
        %v3424 = vld [vmem:[%s3396 + $0xa0] sm:$0xf]
        %v3425 = vld [vmem:[%s3396 + $0xa8] sm:$0xf]
        %v3426 = vld [vmem:[%s3396 + $0xac] sm:$0xf]
        %v3427 = vld [vmem:[%s3396 + $0xb4] sm:$0xf]
        %v3428 = vld [vmem:[%s3396 + $0xb8] sm:$0xf]
        %v3429 = vld [vmem:[#allocation2] sm:$0xff]
        %v3430 = vld [vmem:[#allocation2 + $0x8] sm:$0xff]
        %v3431 = vld [vmem:[#allocation2 + $0x10] sm:$0xff]
        %v3432 = vld [vmem:[#allocation2 + $0x18] sm:$0xff]
        %v3433 = vld [vmem:[#allocation2 + $0x20] sm:$0xff]
        %v3434 = vld [vmem:[#allocation2 + $0x28] sm:$0xff]
        %v3435 = vld [vmem:[#allocation2 + $0x30] sm:$0xff]
        %v3436 = vld [vmem:[#allocation2 + $0x38] sm:$0xff]
        %v3437 = vld [vmem:[#allocation2 + $0x40] sm:$0xff]
        %v3438 = vld [vmem:[#allocation2 + $0x48] sm:$0xff]
        %v3439 = vld [vmem:[#allocation2 + $0x50] sm:$0xff]
        %v3440 = vld [vmem:[#allocation2 + $0x58] sm:$0xff]
        %v3441 = vld [vmem:[#allocation2 + $0x60] sm:$0xff]
        %v3442 = vld [vmem:[#allocation2 + $0x68] sm:$0xff]
        %v3443 = vld [vmem:[#allocation2 + $0x70] sm:$0xff]
        %v3444 = vld [vmem:[#allocation2 + $0x78] sm:$0xff]
        %v3445 = vld [vmem:[#allocation2 + $0x80] sm:$0xff]
        %v3446 = vld [vmem:[#allocation2 + $0x88] sm:$0xff]
        %v3447 = vld [vmem:[#allocation2 + $0x90] sm:$0xff]
        %v3448 = vld [vmem:[#allocation2 + $0x98] sm:$0xff]
        %v3449 = vld [vmem:[#allocation2 + $0xa0] sm:$0xff]
        %v3450 = vld [vmem:[#allocation2 + $0xa8] sm:$0xff]
        %v3451 = vld [vmem:[#allocation2 + $0xb0] sm:$0xff]
        %v3452 = vld [vmem:[#allocation2 + $0xb8] sm:$0xff]
        %v3453 = vld [vmem:[#allocation2 + $0xc0] sm:$0xff]
        %v3454 = vld [vmem:[#allocation2 + $0xc8] sm:$0xff]
        %v3455 = vld [vmem:[#allocation2 + $0xd0] sm:$0xff]
        %v3456 = vld [vmem:[#allocation2 + $0xd8] sm:$0xff]
        %v3457 = vld [vmem:[#allocation2 + $0xe0] sm:$0xff]
        %v3458 = vld [vmem:[#allocation2 + $0xe8] sm:$0xff]
        %v3459 = vld [vmem:[#allocation2 + $0xf0] sm:$0xff]
        %v3460 = vld [vmem:[#allocation2 + $0xf8] sm:$0xff]
        %s3461 = scalar_lea.vmem %s1, 96
        %v3462 = vld [vmem:[%s3461] sm:$0xf]
        %v3463 = vld [vmem:[%s3461 + $0x4] sm:$0xf]
        %v3464 = vld [vmem:[%s3461 + $0x8] sm:$0xf]
        %v3465 = vld [vmem:[%s3461 + $0xc] sm:$0xf]
        %v3498 = vunpack.c.l.b16 %v3397
        %v3499 = vunpack.c.l.b16 %v3398
        %v3500 = vunpack.c.l.b16 %v3399
        %v3501 = vunpack.c.l.b16 %v3400
        %v3502 = vunpack.c.l.b16 %v3401
        %v3503 = vunpack.c.l.b16 %v3402
        %v3504 = vunpack.c.l.b16 %v3403
        %v3505 = vunpack.c.l.b16 %v3404
        %v3506 = vunpack.c.l.b16 %v3405
        %v3507 = vunpack.c.l.b16 %v3406
        %v3508 = vunpack.c.l.b16 %v3407
        %v3509 = vunpack.c.l.b16 %v3408
        %v3510 = vunpack.c.l.b16 %v3409
        %v3511 = vunpack.c.l.b16 %v3410
        %v3512 = vunpack.c.l.b16 %v3411
        %v3513 = vunpack.c.l.b16 %v3412
        %v3514 = vunpack.c.l.b16 %v3413
        %v3515 = vunpack.c.l.b16 %v3414
        %v3516 = vunpack.c.l.b16 %v3415
        %v3517 = vunpack.c.l.b16 %v3416
        %v3518 = vunpack.c.l.b16 %v3417
        %v3519 = vunpack.c.l.b16 %v3418
        %v3520 = vunpack.c.l.b16 %v3419
        %v3521 = vunpack.c.l.b16 %v3420
        %v3522 = vunpack.c.l.b16 %v3421
        %v3523 = vunpack.c.l.b16 %v3422
        %v3524 = vunpack.c.l.b16 %v3423
        %v3525 = vunpack.c.l.b16 %v3424
        %v3526 = vunpack.c.l.b16 %v3425
        %v3527 = vunpack.c.l.b16 %v3426
        %v3528 = vunpack.c.l.b16 %v3427
        %v3529 = vunpack.c.l.b16 %v3428
        %v3530 = vpack.c.b16 %v3499, %v3498
        %v3531 = vpack.c.b16 %v3501, %v3500
        %v3532 = vpack.c.b16 %v3503, %v3502
        %v3533 = vpack.c.b16 %v3505, %v3504
        %v3534 = vpack.c.b16 %v3507, %v3506
        %v3535 = vpack.c.b16 %v3509, %v3508
        %v3536 = vpack.c.b16 %v3511, %v3510
        %v3537 = vpack.c.b16 %v3513, %v3512
        %v3538 = vpack.c.b16 %v3515, %v3514
        %v3539 = vpack.c.b16 %v3517, %v3516
        %v3540 = vpack.c.b16 %v3519, %v3518
        %v3541 = vpack.c.b16 %v3521, %v3520
        %v3542 = vpack.c.b16 %v3523, %v3522
        %v3543 = vpack.c.b16 %v3525, %v3524
        %v3544 = vpack.c.b16 %v3527, %v3526
        %v3545 = vpack.c.b16 %v3529, %v3528
        %v3550 = vunpack.c.l.b16 %v3462
        %v3551 = vunpack.c.l.b16 %v3463
        %v3552 = vunpack.c.l.b16 %v3464
        %v3553 = vunpack.c.l.b16 %v3465
        %v3554 = vpack.c.b16 %v3551, %v3550
        %v3555 = vpack.c.b16 %v3553, %v3552
        %v3559 = vsel %vm369, %v3530, 0
        %v3562 = vsel %vm369, %v3531, 0
        %v3565 = vsel %vm369, %v3532, 0
        %v3568 = vsel %vm369, %v3533, 0
        %v3571 = vsel %vm369, %v3534, 0
        %v3574 = vsel %vm369, %v3535, 0
        %v3577 = vsel %vm369, %v3536, 0
        %v3580 = vsel %vm369, %v3537, 0
        %v3583 = vsel %vm369, %v3538, 0
        %v3586 = vsel %vm369, %v3539, 0
        %v3589 = vsel %vm369, %v3540, 0
        %v3592 = vsel %vm369, %v3541, 0
        %v3595 = vsel %vm369, %v3542, 0
        %v3598 = vsel %vm369, %v3543, 0
        %v3601 = vsel %vm369, %v3544, 0
        %v3604 = vsel %vm369, %v3545, 0
        %3606 = vmatprep.subr.bf16.mxu0 0
        %3607 = vmatpush1.bf16.msra.mxu0 %v3554
        %3608 = vmatprep.subr.bf16.mxu0 0
        %3609 = vmatpush1.bf16.msra.mxu0 %v3555
        %3610 = vmatprep.subr.bf16.mxu0 0
        %3611 = vmatpush1.bf16.msra.mxu0 0
        %3612 = vmatprep.subr.bf16.mxu0 0
        %3613 = vmatpush1.bf16.msra.mxu0 0
        %3614 = vmatprep.subr.bf16.mxu0 0
        %3615 = vmatpush1.bf16.msra.mxu0 0
        %3616 = vmatprep.subr.bf16.mxu0 0
        %3617 = vmatpush1.bf16.msra.mxu0 0
        %3618 = vmatprep.subr.bf16.mxu0 0
        %3619 = vmatpush1.bf16.msra.mxu0 0
        %3620 = vmatprep.subr.bf16.mxu0 0
        %3621 = vmatpush1.bf16.msra.mxu0 0
        %3622 = vmatprep.subr.bf16.mxu0 0
        %3623 = vmatpush1.bf16.msra.mxu0 0
        %3624 = vmatprep.subr.bf16.mxu0 0
        %3625 = vmatpush1.bf16.msra.mxu0 0
        %3626 = vmatprep.subr.bf16.mxu0 0
        %3627 = vmatpush1.bf16.msra.mxu0 0
        %3628 = vmatprep.subr.bf16.mxu0 0
        %3629 = vmatpush1.bf16.msra.mxu0 0
        %3630 = vmatprep.subr.bf16.mxu0 0
        %3631 = vmatpush1.bf16.msra.mxu0 0
        %3632 = vmatprep.subr.bf16.mxu0 0
        %3633 = vmatpush1.bf16.msra.mxu0 0
        %3634 = vmatprep.subr.bf16.mxu0 0
        %3635 = vmatpush1.bf16.msra.mxu0 0
        %3636 = vmatprep.subr.bf16.mxu0 0
        %3637 = vmatpush1.bf16.msra.mxu0 0
        %3638 = vmatprep.mubr.bf16.mxu0 0
        %3639 = vmatmul.mubr.bf16.gmra.mrb[0].mxu0 %v3559
        %v3640 = vpop.f32.mrb[0].mxu0
        %v3641 = vadd.f32 0.0, %v3640
        %v3642 = vpop.f32.mrb[0].mxu0
        %v3643 = vpop.f32.mrb[0].mxu0
        %v3644 = vadd.f32 0.0, %v3643
        %v3645 = vpop.f32.mrb[0].mxu0
        %3646 = vmatprep.mubr.bf16.mxu0 0
        %3647 = vmatmul.mubr.bf16.gmra.mrb[0].mxu0 %v3562
        %v3648 = vpop.f32.mrb[0].mxu0
        %v3649 = vadd.f32 0.0, %v3648
        %v3650 = vpop.f32.mrb[0].mxu0
        %v3651 = vpop.f32.mrb[0].mxu0
        %v3652 = vadd.f32 0.0, %v3651
        %v3653 = vpop.f32.mrb[0].mxu0
        %3654 = vmatprep.mubr.bf16.mxu0 0
        %3655 = vmatmul.mubr.bf16.gmra.mrb[0].mxu0 %v3565
        %v3656 = vpop.f32.mrb[0].mxu0
        %v3657 = vadd.f32 0.0, %v3656
        %v3658 = vpop.f32.mrb[0].mxu0
        %v3659 = vpop.f32.mrb[0].mxu0
        %v3660 = vadd.f32 0.0, %v3659
        %v3661 = vpop.f32.mrb[0].mxu0
        %3662 = vmatprep.mubr.bf16.mxu0 0
        %3663 = vmatmul.mubr.bf16.gmra.mrb[0].mxu0 %v3568
        %v3664 = vpop.f32.mrb[0].mxu0
        %v3665 = vadd.f32 0.0, %v3664
        %v3666 = vpop.f32.mrb[0].mxu0
        %v3667 = vpop.f32.mrb[0].mxu0
        %v3668 = vadd.f32 0.0, %v3667
        %v3669 = vpop.f32.mrb[0].mxu0
        %3670 = vmatprep.mubr.bf16.mxu0 0
        %3671 = vmatmul.mubr.bf16.gmra.mrb[0].mxu0 %v3571
        %v3672 = vpop.f32.mrb[0].mxu0
        %v3673 = vadd.f32 0.0, %v3672
        %v3674 = vpop.f32.mrb[0].mxu0
        %v3675 = vpop.f32.mrb[0].mxu0
        %v3676 = vadd.f32 0.0, %v3675
        %v3677 = vpop.f32.mrb[0].mxu0
        %3678 = vmatprep.mubr.bf16.mxu0 0
        %3679 = vmatmul.mubr.bf16.gmra.mrb[0].mxu0 %v3574
        %v3680 = vpop.f32.mrb[0].mxu0
        %v3681 = vadd.f32 0.0, %v3680
        %v3682 = vpop.f32.mrb[0].mxu0
        %v3683 = vpop.f32.mrb[0].mxu0
        %v3684 = vadd.f32 0.0, %v3683
        %v3685 = vpop.f32.mrb[0].mxu0
        %3686 = vmatprep.mubr.bf16.mxu0 0
        %3687 = vmatmul.mubr.bf16.gmra.mrb[0].mxu0 %v3577
        %v3688 = vpop.f32.mrb[0].mxu0
        %v3689 = vadd.f32 0.0, %v3688
        %v3690 = vpop.f32.mrb[0].mxu0
        %v3691 = vpop.f32.mrb[0].mxu0
        %v3692 = vadd.f32 0.0, %v3691
        %v3693 = vpop.f32.mrb[0].mxu0
        %3694 = vmatprep.mubr.bf16.mxu0 0
        %3695 = vmatmul.mubr.bf16.gmra.mrb[0].mxu0 %v3580
        %v3696 = vpop.f32.mrb[0].mxu0
        %v3697 = vadd.f32 0.0, %v3696
        %v3698 = vpop.f32.mrb[0].mxu0
        %v3699 = vpop.f32.mrb[0].mxu0
        %v3700 = vadd.f32 0.0, %v3699
        %v3701 = vpop.f32.mrb[0].mxu0
        %3702 = vmatprep.mubr.bf16.mxu0 0
        %3703 = vmatmul.mubr.bf16.gmra.mrb[0].mxu0 %v3583
        %v3704 = vpop.f32.mrb[0].mxu0
        %v3705 = vadd.f32 0.0, %v3704
        %v3706 = vpop.f32.mrb[0].mxu0
        %v3707 = vpop.f32.mrb[0].mxu0
        %v3708 = vadd.f32 0.0, %v3707
        %v3709 = vpop.f32.mrb[0].mxu0
        %3710 = vmatprep.mubr.bf16.mxu0 0
        %3711 = vmatmul.mubr.bf16.gmra.mrb[0].mxu0 %v3586
        %v3712 = vpop.f32.mrb[0].mxu0
        %v3713 = vadd.f32 0.0, %v3712
        %v3714 = vpop.f32.mrb[0].mxu0
        %v3715 = vpop.f32.mrb[0].mxu0
        %v3716 = vadd.f32 0.0, %v3715
        %v3717 = vpop.f32.mrb[0].mxu0
        %3718 = vmatprep.mubr.bf16.mxu0 0
        %3719 = vmatmul.mubr.bf16.gmra.mrb[0].mxu0 %v3589
        %v3720 = vpop.f32.mrb[0].mxu0
        %v3721 = vadd.f32 0.0, %v3720
        %v3722 = vpop.f32.mrb[0].mxu0
        %v3723 = vpop.f32.mrb[0].mxu0
        %v3724 = vadd.f32 0.0, %v3723
        %v3725 = vpop.f32.mrb[0].mxu0
        %3726 = vmatprep.mubr.bf16.mxu0 0
        %3727 = vmatmul.mubr.bf16.gmra.mrb[0].mxu0 %v3592
        %v3728 = vpop.f32.mrb[0].mxu0
        %v3729 = vadd.f32 0.0, %v3728
        %v3730 = vpop.f32.mrb[0].mxu0
        %v3731 = vpop.f32.mrb[0].mxu0
        %v3732 = vadd.f32 0.0, %v3731
        %v3733 = vpop.f32.mrb[0].mxu0
        %3734 = vmatprep.mubr.bf16.mxu0 0
        %3735 = vmatmul.mubr.bf16.gmra.mrb[0].mxu0 %v3595
        %v3736 = vpop.f32.mrb[0].mxu0
        %v3737 = vadd.f32 0.0, %v3736
        %v3738 = vpop.f32.mrb[0].mxu0
        %v3739 = vpop.f32.mrb[0].mxu0
        %v3740 = vadd.f32 0.0, %v3739
        %v3741 = vpop.f32.mrb[0].mxu0
        %3742 = vmatprep.mubr.bf16.mxu0 0
        %3743 = vmatmul.mubr.bf16.gmra.mrb[0].mxu0 %v3598
        %v3744 = vpop.f32.mrb[0].mxu0
        %v3745 = vadd.f32 0.0, %v3744
        %v3746 = vpop.f32.mrb[0].mxu0
        %v3747 = vpop.f32.mrb[0].mxu0
        %v3748 = vadd.f32 0.0, %v3747
        %v3749 = vpop.f32.mrb[0].mxu0
        %3750 = vmatprep.mubr.bf16.mxu0 0
        %3751 = vmatmul.mubr.bf16.gmra.mrb[0].mxu0 %v3601
        %v3752 = vpop.f32.mrb[0].mxu0
        %v3753 = vadd.f32 0.0, %v3752
        %v3754 = vpop.f32.mrb[0].mxu0
        %v3755 = vpop.f32.mrb[0].mxu0
        %v3756 = vadd.f32 0.0, %v3755
        %v3757 = vpop.f32.mrb[0].mxu0
        %3758 = vmatprep.mubr.bf16.mxu0 0
        %3759 = vmatmul.mubr.bf16.gmra.mrb[0].mxu0 %v3604
        %v3760 = vpop.f32.mrb[0].mxu0
        %v3761 = vadd.f32 0.0, %v3760
        %v3762 = vpop.f32.mrb[0].mxu0
        %v3763 = vpop.f32.mrb[0].mxu0
        %v3764 = vadd.f32 0.0, %v3763
        %v3765 = vpop.f32.mrb[0].mxu0
        %3766 = vdwg.mxu0
        %v3767 = vadd.f32 %v3429, %v3641
        %v3768 = vadd.f32 %v3430, %v3644
        %v3769 = vadd.f32 %v3431, %v3649
        %v3770 = vadd.f32 %v3432, %v3652
        %v3771 = vadd.f32 %v3433, %v3657
        %v3772 = vadd.f32 %v3434, %v3660
        %v3773 = vadd.f32 %v3435, %v3665
        %v3774 = vadd.f32 %v3436, %v3668
        %v3775 = vadd.f32 %v3437, %v3673
        %v3776 = vadd.f32 %v3438, %v3676
        %v3777 = vadd.f32 %v3439, %v3681
        %v3778 = vadd.f32 %v3440, %v3684
        %v3779 = vadd.f32 %v3441, %v3689
        %v3780 = vadd.f32 %v3442, %v3692
        %v3781 = vadd.f32 %v3443, %v3697
        %v3782 = vadd.f32 %v3444, %v3700
        %v3783 = vadd.f32 %v3445, %v3705
        %v3784 = vadd.f32 %v3446, %v3708
        %v3785 = vadd.f32 %v3447, %v3713
        %v3786 = vadd.f32 %v3448, %v3716
        %v3787 = vadd.f32 %v3449, %v3721
        %v3788 = vadd.f32 %v3450, %v3724
        %v3789 = vadd.f32 %v3451, %v3729
        %v3790 = vadd.f32 %v3452, %v3732
        %v3791 = vadd.f32 %v3453, %v3737
        %v3792 = vadd.f32 %v3454, %v3740
        %v3793 = vadd.f32 %v3455, %v3745
        %v3794 = vadd.f32 %v3456, %v3748
        %v3795 = vadd.f32 %v3457, %v3753
        %v3796 = vadd.f32 %v3458, %v3756
        %v3797 = vadd.f32 %v3459, %v3761
        %v3798 = vadd.f32 %v3460, %v3764
        %3799 = vst [vmem:[#allocation2] sm:$0xff] %v3767
        %3800 = vst [vmem:[#allocation2 + $0x8] sm:$0xff] %v3768
        %3801 = vst [vmem:[#allocation2 + $0x10] sm:$0xff] %v3769
        %3802 = vst [vmem:[#allocation2 + $0x18] sm:$0xff] %v3770
        %3803 = vst [vmem:[#allocation2 + $0x20] sm:$0xff] %v3771
        %3804 = vst [vmem:[#allocation2 + $0x28] sm:$0xff] %v3772
        %3805 = vst [vmem:[#allocation2 + $0x30] sm:$0xff] %v3773
        %3806 = vst [vmem:[#allocation2 + $0x38] sm:$0xff] %v3774
        %3807 = vst [vmem:[#allocation2 + $0x40] sm:$0xff] %v3775
        %3808 = vst [vmem:[#allocation2 + $0x48] sm:$0xff] %v3776
        %3809 = vst [vmem:[#allocation2 + $0x50] sm:$0xff] %v3777
        %3810 = vst [vmem:[#allocation2 + $0x58] sm:$0xff] %v3778
        %3811 = vst [vmem:[#allocation2 + $0x60] sm:$0xff] %v3779
        %3812 = vst [vmem:[#allocation2 + $0x68] sm:$0xff] %v3780
        %3813 = vst [vmem:[#allocation2 + $0x70] sm:$0xff] %v3781
        %3814 = vst [vmem:[#allocation2 + $0x78] sm:$0xff] %v3782
        %3815 = vst [vmem:[#allocation2 + $0x80] sm:$0xff] %v3783
        %3816 = vst [vmem:[#allocation2 + $0x88] sm:$0xff] %v3784
        %3817 = vst [vmem:[#allocation2 + $0x90] sm:$0xff] %v3785
        %3818 = vst [vmem:[#allocation2 + $0x98] sm:$0xff] %v3786
        %3819 = vst [vmem:[#allocation2 + $0xa0] sm:$0xff] %v3787
        %3820 = vst [vmem:[#allocation2 + $0xa8] sm:$0xff] %v3788
        %3821 = vst [vmem:[#allocation2 + $0xb0] sm:$0xff] %v3789
        %3822 = vst [vmem:[#allocation2 + $0xb8] sm:$0xff] %v3790
        %3823 = vst [vmem:[#allocation2 + $0xc0] sm:$0xff] %v3791
        %3824 = vst [vmem:[#allocation2 + $0xc8] sm:$0xff] %v3792
        %3825 = vst [vmem:[#allocation2 + $0xd0] sm:$0xff] %v3793
        %3826 = vst [vmem:[#allocation2 + $0xd8] sm:$0xff] %v3794
        %3827 = vst [vmem:[#allocation2 + $0xe0] sm:$0xff] %v3795
        %3828 = vst [vmem:[#allocation2 + $0xe8] sm:$0xff] %v3796
        %3829 = vst [vmem:[#allocation2 + $0xf0] sm:$0xff] %v3797
        %3830 = vst [vmem:[#allocation2 + $0xf8] sm:$0xff] %v3798
        %v3831 = vld [vmem:[%s3396] sm:$0xe]
        %v3832 = vld [vmem:[%s3396 + $0x4] sm:$0xf]
        %v3833 = vld [vmem:[%s3396 + $0x8] sm:$0x1]
        %v3834 = vld [vmem:[%s3396 + $0xc] sm:$0xe]
        %v3835 = vld [vmem:[%s3396 + $0x10] sm:$0xf]
        %v3836 = vld [vmem:[%s3396 + $0x14] sm:$0x1]
        %v3837 = vld [vmem:[%s3396 + $0x18] sm:$0xe]
        %v3838 = vld [vmem:[%s3396 + $0x1c] sm:$0xf]
        %v3839 = vld [vmem:[%s3396 + $0x20] sm:$0x1]
        %v3840 = vld [vmem:[%s3396 + $0x24] sm:$0xe]
        %v3841 = vld [vmem:[%s3396 + $0x28] sm:$0xf]
        %v3842 = vld [vmem:[%s3396 + $0x2c] sm:$0x1]
        %v3843 = vld [vmem:[%s3396 + $0x30] sm:$0xe]
        %v3844 = vld [vmem:[%s3396 + $0x34] sm:$0xf]
        %v3845 = vld [vmem:[%s3396 + $0x38] sm:$0x1]
        %v3846 = vld [vmem:[%s3396 + $0x3c] sm:$0xe]
        %v3847 = vld [vmem:[%s3396 + $0x40] sm:$0xf]
        %v3848 = vld [vmem:[%s3396 + $0x44] sm:$0x1]
        %v3849 = vld [vmem:[%s3396 + $0x48] sm:$0xe]
        %v3850 = vld [vmem:[%s3396 + $0x4c] sm:$0xf]
        %v3851 = vld [vmem:[%s3396 + $0x50] sm:$0x1]
        %v3852 = vld [vmem:[%s3396 + $0x54] sm:$0xe]
        %v3853 = vld [vmem:[%s3396 + $0x58] sm:$0xf]
        %v3854 = vld [vmem:[%s3396 + $0x5c] sm:$0x1]
        %v3855 = vld [vmem:[%s3396 + $0x60] sm:$0xe]
        %v3856 = vld [vmem:[%s3396 + $0x64] sm:$0xf]
        %v3857 = vld [vmem:[%s3396 + $0x68] sm:$0x1]
        %v3858 = vld [vmem:[%s3396 + $0x6c] sm:$0xe]
        %v3859 = vld [vmem:[%s3396 + $0x70] sm:$0xf]
        %v3860 = vld [vmem:[%s3396 + $0x74] sm:$0x1]
        %v3861 = vld [vmem:[%s3396 + $0x78] sm:$0xe]
        %v3862 = vld [vmem:[%s3396 + $0x7c] sm:$0xf]
        %v3863 = vld [vmem:[%s3396 + $0x80] sm:$0x1]
        %v3864 = vld [vmem:[%s3396 + $0x84] sm:$0xe]
        %v3865 = vld [vmem:[%s3396 + $0x88] sm:$0xf]
        %v3866 = vld [vmem:[%s3396 + $0x8c] sm:$0x1]
        %v3867 = vld [vmem:[%s3396 + $0x90] sm:$0xe]
        %v3868 = vld [vmem:[%s3396 + $0x94] sm:$0xf]
        %v3869 = vld [vmem:[%s3396 + $0x98] sm:$0x1]
        %v3870 = vld [vmem:[%s3396 + $0x9c] sm:$0xe]
        %v3871 = vld [vmem:[%s3396 + $0xa0] sm:$0xf]
        %v3872 = vld [vmem:[%s3396 + $0xa4] sm:$0x1]
        %v3873 = vld [vmem:[%s3396 + $0xa8] sm:$0xe]
        %v3874 = vld [vmem:[%s3396 + $0xac] sm:$0xf]
        %v3875 = vld [vmem:[%s3396 + $0xb0] sm:$0x1]
        %v3876 = vld [vmem:[%s3396 + $0xb4] sm:$0xe]
        %v3877 = vld [vmem:[%s3396 + $0xb8] sm:$0xf]
        %v3878 = vld [vmem:[%s3396 + $0xbc] sm:$0x1]
        %v3927 = vrot.slane %v3831, 5
        %v3928 = vrot.slane %v3927, 4
        %v3929 = vrot.slane %v3832, 5
        %v3930 = vsel %vm741, %v3928, %v3929
        %v3931 = vrot.slane %v3929, 4
        %v3932 = vrot.slane %v3833, 5
        %v3933 = vsel %vm741, %v3931, %v3932
        %v3934 = vrot.slane %v3834, 5
        %v3935 = vrot.slane %v3934, 4
        %v3936 = vrot.slane %v3835, 5
        %v3937 = vsel %vm741, %v3935, %v3936
        %v3938 = vrot.slane %v3936, 4
        %v3939 = vrot.slane %v3836, 5
        %v3940 = vsel %vm741, %v3938, %v3939
        %v3941 = vrot.slane %v3837, 5
        %v3942 = vrot.slane %v3941, 4
        %v3943 = vrot.slane %v3838, 5
        %v3944 = vsel %vm741, %v3942, %v3943
        %v3945 = vrot.slane %v3943, 4
        %v3946 = vrot.slane %v3839, 5
        %v3947 = vsel %vm741, %v3945, %v3946
        %v3948 = vrot.slane %v3840, 5
        %v3949 = vrot.slane %v3948, 4
        %v3950 = vrot.slane %v3841, 5
        %v3951 = vsel %vm741, %v3949, %v3950
        %v3952 = vrot.slane %v3950, 4
        %v3953 = vrot.slane %v3842, 5
        %v3954 = vsel %vm741, %v3952, %v3953
        %v3955 = vrot.slane %v3843, 5
        %v3956 = vrot.slane %v3955, 4
        %v3957 = vrot.slane %v3844, 5
        %v3958 = vsel %vm741, %v3956, %v3957
        %v3959 = vrot.slane %v3957, 4
        %v3960 = vrot.slane %v3845, 5
        %v3961 = vsel %vm741, %v3959, %v3960
        %v3962 = vrot.slane %v3846, 5
        %v3963 = vrot.slane %v3962, 4
        %v3964 = vrot.slane %v3847, 5
        %v3965 = vsel %vm741, %v3963, %v3964
        %v3966 = vrot.slane %v3964, 4
        %v3967 = vrot.slane %v3848, 5
        %v3968 = vsel %vm741, %v3966, %v3967
        %v3969 = vrot.slane %v3849, 5
        %v3970 = vrot.slane %v3969, 4
        %v3971 = vrot.slane %v3850, 5
        %v3972 = vsel %vm741, %v3970, %v3971
        %v3973 = vrot.slane %v3971, 4
        %v3974 = vrot.slane %v3851, 5
        %v3975 = vsel %vm741, %v3973, %v3974
        %v3976 = vrot.slane %v3852, 5
        %v3977 = vrot.slane %v3976, 4
        %v3978 = vrot.slane %v3853, 5
        %v3979 = vsel %vm741, %v3977, %v3978
        %v3980 = vrot.slane %v3978, 4
        %v3981 = vrot.slane %v3854, 5
        %v3982 = vsel %vm741, %v3980, %v3981
        %v3983 = vrot.slane %v3855, 5
        %v3984 = vrot.slane %v3983, 4
        %v3985 = vrot.slane %v3856, 5
        %v3986 = vsel %vm741, %v3984, %v3985
        %v3987 = vrot.slane %v3985, 4
        %v3988 = vrot.slane %v3857, 5
        %v3989 = vsel %vm741, %v3987, %v3988
        %v3990 = vrot.slane %v3858, 5
        %v3991 = vrot.slane %v3990, 4
        %v3992 = vrot.slane %v3859, 5
        %v3993 = vsel %vm741, %v3991, %v3992
        %v3994 = vrot.slane %v3992, 4
        %v3995 = vrot.slane %v3860, 5
        %v3996 = vsel %vm741, %v3994, %v3995
        %v3997 = vrot.slane %v3861, 5
        %v3998 = vrot.slane %v3997, 4
        %v3999 = vrot.slane %v3862, 5
        %v4000 = vsel %vm741, %v3998, %v3999
        %v4001 = vrot.slane %v3999, 4
        %v4002 = vrot.slane %v3863, 5
        %v4003 = vsel %vm741, %v4001, %v4002
        %v4004 = vrot.slane %v3864, 5
        %v4005 = vrot.slane %v4004, 4
        %v4006 = vrot.slane %v3865, 5
        %v4007 = vsel %vm741, %v4005, %v4006
        %v4008 = vrot.slane %v4006, 4
        %v4009 = vrot.slane %v3866, 5
        %v4010 = vsel %vm741, %v4008, %v4009
        %v4011 = vrot.slane %v3867, 5
        %v4012 = vrot.slane %v4011, 4
        %v4013 = vrot.slane %v3868, 5
        %v4014 = vsel %vm741, %v4012, %v4013
        %v4015 = vrot.slane %v4013, 4
        %v4016 = vrot.slane %v3869, 5
        %v4017 = vsel %vm741, %v4015, %v4016
        %v4018 = vrot.slane %v3870, 5
        %v4019 = vrot.slane %v4018, 4
        %v4020 = vrot.slane %v3871, 5
        %v4021 = vsel %vm741, %v4019, %v4020
        %v4022 = vrot.slane %v4020, 4
        %v4023 = vrot.slane %v3872, 5
        %v4024 = vsel %vm741, %v4022, %v4023
        %v4025 = vrot.slane %v3873, 5
        %v4026 = vrot.slane %v4025, 4
        %v4027 = vrot.slane %v3874, 5
        %v4028 = vsel %vm741, %v4026, %v4027
        %v4029 = vrot.slane %v4027, 4
        %v4030 = vrot.slane %v3875, 5
        %v4031 = vsel %vm741, %v4029, %v4030
        %v4032 = vrot.slane %v3876, 5
        %v4033 = vrot.slane %v4032, 4
        %v4034 = vrot.slane %v3877, 5
        %v4035 = vsel %vm741, %v4033, %v4034
        %v4036 = vrot.slane %v4034, 4
        %v4037 = vrot.slane %v3878, 5
        %v4038 = vsel %vm741, %v4036, %v4037
        %v4039 = vld [vmem:[#allocation2] sm:$0xff]
        %v4040 = vld [vmem:[#allocation2 + $0x8] sm:$0xff]
        %v4041 = vld [vmem:[#allocation2 + $0x10] sm:$0xff]
        %v4042 = vld [vmem:[#allocation2 + $0x18] sm:$0xff]
        %v4043 = vld [vmem:[#allocation2 + $0x20] sm:$0xff]
        %v4044 = vld [vmem:[#allocation2 + $0x28] sm:$0xff]
        %v4045 = vld [vmem:[#allocation2 + $0x30] sm:$0xff]
        %v4046 = vld [vmem:[#allocation2 + $0x38] sm:$0xff]
        %v4047 = vld [vmem:[#allocation2 + $0x40] sm:$0xff]
        %v4048 = vld [vmem:[#allocation2 + $0x48] sm:$0xff]
        %v4049 = vld [vmem:[#allocation2 + $0x50] sm:$0xff]
        %v4050 = vld [vmem:[#allocation2 + $0x58] sm:$0xff]
        %v4051 = vld [vmem:[#allocation2 + $0x60] sm:$0xff]
        %v4052 = vld [vmem:[#allocation2 + $0x68] sm:$0xff]
        %v4053 = vld [vmem:[#allocation2 + $0x70] sm:$0xff]
        %v4054 = vld [vmem:[#allocation2 + $0x78] sm:$0xff]
        %v4055 = vld [vmem:[#allocation2 + $0x80] sm:$0xff]
        %v4056 = vld [vmem:[#allocation2 + $0x88] sm:$0xff]
        %v4057 = vld [vmem:[#allocation2 + $0x90] sm:$0xff]
        %v4058 = vld [vmem:[#allocation2 + $0x98] sm:$0xff]
        %v4059 = vld [vmem:[#allocation2 + $0xa0] sm:$0xff]
        %v4060 = vld [vmem:[#allocation2 + $0xa8] sm:$0xff]
        %v4061 = vld [vmem:[#allocation2 + $0xb0] sm:$0xff]
        %v4062 = vld [vmem:[#allocation2 + $0xb8] sm:$0xff]
        %v4063 = vld [vmem:[#allocation2 + $0xc0] sm:$0xff]
        %v4064 = vld [vmem:[#allocation2 + $0xc8] sm:$0xff]
        %v4065 = vld [vmem:[#allocation2 + $0xd0] sm:$0xff]
        %v4066 = vld [vmem:[#allocation2 + $0xd8] sm:$0xff]
        %v4067 = vld [vmem:[#allocation2 + $0xe0] sm:$0xff]
        %v4068 = vld [vmem:[#allocation2 + $0xe8] sm:$0xff]
        %v4069 = vld [vmem:[#allocation2 + $0xf0] sm:$0xff]
        %v4070 = vld [vmem:[#allocation2 + $0xf8] sm:$0xff]
        %s4071 = scalar_lea.vmem %s1, 112
        %v4072 = vld [vmem:[%s4071] sm:$0xf]
        %v4073 = vld [vmem:[%s4071 + $0x4] sm:$0xf]
        %v4074 = vld [vmem:[%s4071 + $0x8] sm:$0xf]
        %v4075 = vld [vmem:[%s4071 + $0xc] sm:$0xf]
        %v4076 = vunpack.c.l.b16 %v3930
        %v4077 = vunpack.c.l.b16 %v3933
        %v4078 = vunpack.c.l.b16 %v3937
        %v4079 = vunpack.c.l.b16 %v3940
        %v4080 = vunpack.c.l.b16 %v3944
        %v4081 = vunpack.c.l.b16 %v3947
        %v4082 = vunpack.c.l.b16 %v3951
        %v4083 = vunpack.c.l.b16 %v3954
        %v4084 = vunpack.c.l.b16 %v3958
        %v4085 = vunpack.c.l.b16 %v3961
        %v4086 = vunpack.c.l.b16 %v3965
        %v4087 = vunpack.c.l.b16 %v3968
        %v4088 = vunpack.c.l.b16 %v3972
        %v4089 = vunpack.c.l.b16 %v3975
        %v4090 = vunpack.c.l.b16 %v3979
        %v4091 = vunpack.c.l.b16 %v3982
        %v4092 = vunpack.c.l.b16 %v3986
        %v4093 = vunpack.c.l.b16 %v3989
        %v4094 = vunpack.c.l.b16 %v3993
        %v4095 = vunpack.c.l.b16 %v3996
        %v4096 = vunpack.c.l.b16 %v4000
        %v4097 = vunpack.c.l.b16 %v4003
        %v4098 = vunpack.c.l.b16 %v4007
        %v4099 = vunpack.c.l.b16 %v4010
        %v4100 = vunpack.c.l.b16 %v4014
        %v4101 = vunpack.c.l.b16 %v4017
        %v4102 = vunpack.c.l.b16 %v4021
        %v4103 = vunpack.c.l.b16 %v4024
        %v4104 = vunpack.c.l.b16 %v4028
        %v4105 = vunpack.c.l.b16 %v4031
        %v4106 = vunpack.c.l.b16 %v4035
        %v4107 = vunpack.c.l.b16 %v4038
        %v4108 = vpack.c.b16 %v4077, %v4076
        %v4109 = vpack.c.b16 %v4079, %v4078
        %v4110 = vpack.c.b16 %v4081, %v4080
        %v4111 = vpack.c.b16 %v4083, %v4082
        %v4112 = vpack.c.b16 %v4085, %v4084
        %v4113 = vpack.c.b16 %v4087, %v4086
        %v4114 = vpack.c.b16 %v4089, %v4088
        %v4115 = vpack.c.b16 %v4091, %v4090
        %v4116 = vpack.c.b16 %v4093, %v4092
        %v4117 = vpack.c.b16 %v4095, %v4094
        %v4118 = vpack.c.b16 %v4097, %v4096
        %v4119 = vpack.c.b16 %v4099, %v4098
        %v4120 = vpack.c.b16 %v4101, %v4100
        %v4121 = vpack.c.b16 %v4103, %v4102
        %v4122 = vpack.c.b16 %v4105, %v4104
        %v4123 = vpack.c.b16 %v4107, %v4106
        %v4128 = vunpack.c.l.b16 %v4072
        %v4129 = vunpack.c.l.b16 %v4073
        %v4130 = vunpack.c.l.b16 %v4074
        %v4131 = vunpack.c.l.b16 %v4075
        %v4132 = vpack.c.b16 %v4129, %v4128
        %v4133 = vpack.c.b16 %v4131, %v4130
        %v4137 = vsel %vm369, %v4108, 0
        %v4140 = vsel %vm369, %v4109, 0
        %v4143 = vsel %vm369, %v4110, 0
        %v4146 = vsel %vm369, %v4111, 0
        %v4149 = vsel %vm369, %v4112, 0
        %v4152 = vsel %vm369, %v4113, 0
        %v4155 = vsel %vm369, %v4114, 0
        %v4158 = vsel %vm369, %v4115, 0
        %v4161 = vsel %vm369, %v4116, 0
        %v4164 = vsel %vm369, %v4117, 0
        %v4167 = vsel %vm369, %v4118, 0
        %v4170 = vsel %vm369, %v4119, 0
        %v4173 = vsel %vm369, %v4120, 0
        %v4176 = vsel %vm369, %v4121, 0
        %v4179 = vsel %vm369, %v4122, 0
        %v4182 = vsel %vm369, %v4123, 0
        %4184 = vmatprep.subr.bf16.mxu0 0
        %4185 = vmatpush1.bf16.msra.mxu0 %v4132
        %4186 = vmatprep.subr.bf16.mxu0 0
        %4187 = vmatpush1.bf16.msra.mxu0 %v4133
        %4188 = vmatprep.subr.bf16.mxu0 0
        %4189 = vmatpush1.bf16.msra.mxu0 0
        %4190 = vmatprep.subr.bf16.mxu0 0
        %4191 = vmatpush1.bf16.msra.mxu0 0
        %4192 = vmatprep.subr.bf16.mxu0 0
        %4193 = vmatpush1.bf16.msra.mxu0 0
        %4194 = vmatprep.subr.bf16.mxu0 0
        %4195 = vmatpush1.bf16.msra.mxu0 0
        %4196 = vmatprep.subr.bf16.mxu0 0
        %4197 = vmatpush1.bf16.msra.mxu0 0
        %4198 = vmatprep.subr.bf16.mxu0 0
        %4199 = vmatpush1.bf16.msra.mxu0 0
        %4200 = vmatprep.subr.bf16.mxu0 0
        %4201 = vmatpush1.bf16.msra.mxu0 0
        %4202 = vmatprep.subr.bf16.mxu0 0
        %4203 = vmatpush1.bf16.msra.mxu0 0
        %4204 = vmatprep.subr.bf16.mxu0 0
        %4205 = vmatpush1.bf16.msra.mxu0 0
        %4206 = vmatprep.subr.bf16.mxu0 0
        %4207 = vmatpush1.bf16.msra.mxu0 0
        %4208 = vmatprep.subr.bf16.mxu0 0
        %4209 = vmatpush1.bf16.msra.mxu0 0
        %4210 = vmatprep.subr.bf16.mxu0 0
        %4211 = vmatpush1.bf16.msra.mxu0 0
        %4212 = vmatprep.subr.bf16.mxu0 0
        %4213 = vmatpush1.bf16.msra.mxu0 0
        %4214 = vmatprep.subr.bf16.mxu0 0
        %4215 = vmatpush1.bf16.msra.mxu0 0
        %4216 = vmatprep.mubr.bf16.mxu0 0
        %4217 = vmatmul.mubr.bf16.gmra.mrb[0].mxu0 %v4137
        %v4218 = vpop.f32.mrb[0].mxu0
        %v4219 = vadd.f32 0.0, %v4218
        %v4220 = vpop.f32.mrb[0].mxu0
        %v4221 = vpop.f32.mrb[0].mxu0
        %v4222 = vadd.f32 0.0, %v4221
        %v4223 = vpop.f32.mrb[0].mxu0
        %4224 = vmatprep.mubr.bf16.mxu0 0
        %4225 = vmatmul.mubr.bf16.gmra.mrb[0].mxu0 %v4140
        %v4226 = vpop.f32.mrb[0].mxu0
        %v4227 = vadd.f32 0.0, %v4226
        %v4228 = vpop.f32.mrb[0].mxu0
        %v4229 = vpop.f32.mrb[0].mxu0
        %v4230 = vadd.f32 0.0, %v4229
        %v4231 = vpop.f32.mrb[0].mxu0
        %4232 = vmatprep.mubr.bf16.mxu0 0
        %4233 = vmatmul.mubr.bf16.gmra.mrb[0].mxu0 %v4143
        %v4234 = vpop.f32.mrb[0].mxu0
        %v4235 = vadd.f32 0.0, %v4234
        %v4236 = vpop.f32.mrb[0].mxu0
        %v4237 = vpop.f32.mrb[0].mxu0
        %v4238 = vadd.f32 0.0, %v4237
        %v4239 = vpop.f32.mrb[0].mxu0
        %4240 = vmatprep.mubr.bf16.mxu0 0
        %4241 = vmatmul.mubr.bf16.gmra.mrb[0].mxu0 %v4146
        %v4242 = vpop.f32.mrb[0].mxu0
        %v4243 = vadd.f32 0.0, %v4242
        %v4244 = vpop.f32.mrb[0].mxu0
        %v4245 = vpop.f32.mrb[0].mxu0
        %v4246 = vadd.f32 0.0, %v4245
        %v4247 = vpop.f32.mrb[0].mxu0
        %4248 = vmatprep.mubr.bf16.mxu0 0
        %4249 = vmatmul.mubr.bf16.gmra.mrb[0].mxu0 %v4149
        %v4250 = vpop.f32.mrb[0].mxu0
        %v4251 = vadd.f32 0.0, %v4250
        %v4252 = vpop.f32.mrb[0].mxu0
        %v4253 = vpop.f32.mrb[0].mxu0
        %v4254 = vadd.f32 0.0, %v4253
        %v4255 = vpop.f32.mrb[0].mxu0
        %4256 = vmatprep.mubr.bf16.mxu0 0
        %4257 = vmatmul.mubr.bf16.gmra.mrb[0].mxu0 %v4152
        %v4258 = vpop.f32.mrb[0].mxu0
        %v4259 = vadd.f32 0.0, %v4258
        %v4260 = vpop.f32.mrb[0].mxu0
        %v4261 = vpop.f32.mrb[0].mxu0
        %v4262 = vadd.f32 0.0, %v4261
        %v4263 = vpop.f32.mrb[0].mxu0
        %4264 = vmatprep.mubr.bf16.mxu0 0
        %4265 = vmatmul.mubr.bf16.gmra.mrb[0].mxu0 %v4155
        %v4266 = vpop.f32.mrb[0].mxu0
        %v4267 = vadd.f32 0.0, %v4266
        %v4268 = vpop.f32.mrb[0].mxu0
        %v4269 = vpop.f32.mrb[0].mxu0
        %v4270 = vadd.f32 0.0, %v4269
        %v4271 = vpop.f32.mrb[0].mxu0
        %4272 = vmatprep.mubr.bf16.mxu0 0
        %4273 = vmatmul.mubr.bf16.gmra.mrb[0].mxu0 %v4158
        %v4274 = vpop.f32.mrb[0].mxu0
        %v4275 = vadd.f32 0.0, %v4274
        %v4276 = vpop.f32.mrb[0].mxu0
        %v4277 = vpop.f32.mrb[0].mxu0
        %v4278 = vadd.f32 0.0, %v4277
        %v4279 = vpop.f32.mrb[0].mxu0
        %4280 = vmatprep.mubr.bf16.mxu0 0
        %4281 = vmatmul.mubr.bf16.gmra.mrb[0].mxu0 %v4161
        %v4282 = vpop.f32.mrb[0].mxu0
        %v4283 = vadd.f32 0.0, %v4282
        %v4284 = vpop.f32.mrb[0].mxu0
        %v4285 = vpop.f32.mrb[0].mxu0
        %v4286 = vadd.f32 0.0, %v4285
        %v4287 = vpop.f32.mrb[0].mxu0
        %4288 = vmatprep.mubr.bf16.mxu0 0
        %4289 = vmatmul.mubr.bf16.gmra.mrb[0].mxu0 %v4164
        %v4290 = vpop.f32.mrb[0].mxu0
        %v4291 = vadd.f32 0.0, %v4290
        %v4292 = vpop.f32.mrb[0].mxu0
        %v4293 = vpop.f32.mrb[0].mxu0
        %v4294 = vadd.f32 0.0, %v4293
        %v4295 = vpop.f32.mrb[0].mxu0
        %4296 = vmatprep.mubr.bf16.mxu0 0
        %4297 = vmatmul.mubr.bf16.gmra.mrb[0].mxu0 %v4167
        %v4298 = vpop.f32.mrb[0].mxu0
        %v4299 = vadd.f32 0.0, %v4298
        %v4300 = vpop.f32.mrb[0].mxu0
        %v4301 = vpop.f32.mrb[0].mxu0
        %v4302 = vadd.f32 0.0, %v4301
        %v4303 = vpop.f32.mrb[0].mxu0
        %4304 = vmatprep.mubr.bf16.mxu0 0
        %4305 = vmatmul.mubr.bf16.gmra.mrb[0].mxu0 %v4170
        %v4306 = vpop.f32.mrb[0].mxu0
        %v4307 = vadd.f32 0.0, %v4306
        %v4308 = vpop.f32.mrb[0].mxu0
        %v4309 = vpop.f32.mrb[0].mxu0
        %v4310 = vadd.f32 0.0, %v4309
        %v4311 = vpop.f32.mrb[0].mxu0
        %4312 = vmatprep.mubr.bf16.mxu0 0
        %4313 = vmatmul.mubr.bf16.gmra.mrb[0].mxu0 %v4173
        %v4314 = vpop.f32.mrb[0].mxu0
        %v4315 = vadd.f32 0.0, %v4314
        %v4316 = vpop.f32.mrb[0].mxu0
        %v4317 = vpop.f32.mrb[0].mxu0
        %v4318 = vadd.f32 0.0, %v4317
        %v4319 = vpop.f32.mrb[0].mxu0
        %4320 = vmatprep.mubr.bf16.mxu0 0
        %4321 = vmatmul.mubr.bf16.gmra.mrb[0].mxu0 %v4176
        %v4322 = vpop.f32.mrb[0].mxu0
        %v4323 = vadd.f32 0.0, %v4322
        %v4324 = vpop.f32.mrb[0].mxu0
        %v4325 = vpop.f32.mrb[0].mxu0
        %v4326 = vadd.f32 0.0, %v4325
        %v4327 = vpop.f32.mrb[0].mxu0
        %4328 = vmatprep.mubr.bf16.mxu0 0
        %4329 = vmatmul.mubr.bf16.gmra.mrb[0].mxu0 %v4179
        %v4330 = vpop.f32.mrb[0].mxu0
        %v4331 = vadd.f32 0.0, %v4330
        %v4332 = vpop.f32.mrb[0].mxu0
        %v4333 = vpop.f32.mrb[0].mxu0
        %v4334 = vadd.f32 0.0, %v4333
        %v4335 = vpop.f32.mrb[0].mxu0
        %4336 = vmatprep.mubr.bf16.mxu0 0
        %4337 = vmatmul.mubr.bf16.gmra.mrb[0].mxu0 %v4182
        %v4338 = vpop.f32.mrb[0].mxu0
        %v4339 = vadd.f32 0.0, %v4338
        %v4340 = vpop.f32.mrb[0].mxu0
        %v4341 = vpop.f32.mrb[0].mxu0
        %v4342 = vadd.f32 0.0, %v4341
        %v4343 = vpop.f32.mrb[0].mxu0
        %4344 = vdwg.mxu0
        %v4345 = vadd.f32 %v4039, %v4219
        %v4346 = vadd.f32 %v4040, %v4222
        %v4347 = vadd.f32 %v4041, %v4227
        %v4348 = vadd.f32 %v4042, %v4230
        %v4349 = vadd.f32 %v4043, %v4235
        %v4350 = vadd.f32 %v4044, %v4238
        %v4351 = vadd.f32 %v4045, %v4243
        %v4352 = vadd.f32 %v4046, %v4246
        %v4353 = vadd.f32 %v4047, %v4251
        %v4354 = vadd.f32 %v4048, %v4254
        %v4355 = vadd.f32 %v4049, %v4259
        %v4356 = vadd.f32 %v4050, %v4262
        %v4357 = vadd.f32 %v4051, %v4267
        %v4358 = vadd.f32 %v4052, %v4270
        %v4359 = vadd.f32 %v4053, %v4275
        %v4360 = vadd.f32 %v4054, %v4278
        %v4361 = vadd.f32 %v4055, %v4283
        %v4362 = vadd.f32 %v4056, %v4286
        %v4363 = vadd.f32 %v4057, %v4291
        %v4364 = vadd.f32 %v4058, %v4294
        %v4365 = vadd.f32 %v4059, %v4299
        %v4366 = vadd.f32 %v4060, %v4302
        %v4367 = vadd.f32 %v4061, %v4307
        %v4368 = vadd.f32 %v4062, %v4310
        %v4369 = vadd.f32 %v4063, %v4315
        %v4370 = vadd.f32 %v4064, %v4318
        %v4371 = vadd.f32 %v4065, %v4323
        %v4372 = vadd.f32 %v4066, %v4326
        %v4373 = vadd.f32 %v4067, %v4331
        %v4374 = vadd.f32 %v4068, %v4334
        %v4375 = vadd.f32 %v4069, %v4339
        %v4376 = vadd.f32 %v4070, %v4342
        %4377 = vst [vmem:[#allocation2] sm:$0xff] %v4345
        %4378 = vst [vmem:[#allocation2 + $0x8] sm:$0xff] %v4346
        %4379 = vst [vmem:[#allocation2 + $0x10] sm:$0xff] %v4347
        %4380 = vst [vmem:[#allocation2 + $0x18] sm:$0xff] %v4348
        %4381 = vst [vmem:[#allocation2 + $0x20] sm:$0xff] %v4349
        %4382 = vst [vmem:[#allocation2 + $0x28] sm:$0xff] %v4350
        %4383 = vst [vmem:[#allocation2 + $0x30] sm:$0xff] %v4351
        %4384 = vst [vmem:[#allocation2 + $0x38] sm:$0xff] %v4352
        %4385 = vst [vmem:[#allocation2 + $0x40] sm:$0xff] %v4353
        %4386 = vst [vmem:[#allocation2 + $0x48] sm:$0xff] %v4354
        %4387 = vst [vmem:[#allocation2 + $0x50] sm:$0xff] %v4355
        %4388 = vst [vmem:[#allocation2 + $0x58] sm:$0xff] %v4356
        %4389 = vst [vmem:[#allocation2 + $0x60] sm:$0xff] %v4357
        %4390 = vst [vmem:[#allocation2 + $0x68] sm:$0xff] %v4358
        %4391 = vst [vmem:[#allocation2 + $0x70] sm:$0xff] %v4359
        %4392 = vst [vmem:[#allocation2 + $0x78] sm:$0xff] %v4360
        %4393 = vst [vmem:[#allocation2 + $0x80] sm:$0xff] %v4361
        %4394 = vst [vmem:[#allocation2 + $0x88] sm:$0xff] %v4362
        %4395 = vst [vmem:[#allocation2 + $0x90] sm:$0xff] %v4363
        %4396 = vst [vmem:[#allocation2 + $0x98] sm:$0xff] %v4364
        %4397 = vst [vmem:[#allocation2 + $0xa0] sm:$0xff] %v4365
        %4398 = vst [vmem:[#allocation2 + $0xa8] sm:$0xff] %v4366
        %4399 = vst [vmem:[#allocation2 + $0xb0] sm:$0xff] %v4367
        %4400 = vst [vmem:[#allocation2 + $0xb8] sm:$0xff] %v4368
        %4401 = vst [vmem:[#allocation2 + $0xc0] sm:$0xff] %v4369
        %4402 = vst [vmem:[#allocation2 + $0xc8] sm:$0xff] %v4370
        %4403 = vst [vmem:[#allocation2 + $0xd0] sm:$0xff] %v4371
        %4404 = vst [vmem:[#allocation2 + $0xd8] sm:$0xff] %v4372
        %4405 = vst [vmem:[#allocation2 + $0xe0] sm:$0xff] %v4373
        %4406 = vst [vmem:[#allocation2 + $0xe8] sm:$0xff] %v4374
        %4407 = vst [vmem:[#allocation2 + $0xf0] sm:$0xff] %v4375
        %4408 = vst [vmem:[#allocation2 + $0xf8] sm:$0xff] %v4376
        %v4409 = vld [vmem:[%s3396] sm:$0xc]
        %v4410 = vld [vmem:[%s3396 + $0x4] sm:$0xf]
        %v4411 = vld [vmem:[%s3396 + $0x8] sm:$0x3]
        %v4412 = vld [vmem:[%s3396 + $0xc] sm:$0xc]
        %v4413 = vld [vmem:[%s3396 + $0x10] sm:$0xf]
        %v4414 = vld [vmem:[%s3396 + $0x14] sm:$0x3]
        %v4415 = vld [vmem:[%s3396 + $0x18] sm:$0xc]
        %v4416 = vld [vmem:[%s3396 + $0x1c] sm:$0xf]
        %v4417 = vld [vmem:[%s3396 + $0x20] sm:$0x3]
        %v4418 = vld [vmem:[%s3396 + $0x24] sm:$0xc]
        %v4419 = vld [vmem:[%s3396 + $0x28] sm:$0xf]
        %v4420 = vld [vmem:[%s3396 + $0x2c] sm:$0x3]
        %v4421 = vld [vmem:[%s3396 + $0x30] sm:$0xc]
        %v4422 = vld [vmem:[%s3396 + $0x34] sm:$0xf]
        %v4423 = vld [vmem:[%s3396 + $0x38] sm:$0x3]
        %v4424 = vld [vmem:[%s3396 + $0x3c] sm:$0xc]
        %v4425 = vld [vmem:[%s3396 + $0x40] sm:$0xf]
        %v4426 = vld [vmem:[%s3396 + $0x44] sm:$0x3]
        %v4427 = vld [vmem:[%s3396 + $0x48] sm:$0xc]
        %v4428 = vld [vmem:[%s3396 + $0x4c] sm:$0xf]
        %v4429 = vld [vmem:[%s3396 + $0x50] sm:$0x3]
        %v4430 = vld [vmem:[%s3396 + $0x54] sm:$0xc]
        %v4431 = vld [vmem:[%s3396 + $0x58] sm:$0xf]
        %v4432 = vld [vmem:[%s3396 + $0x5c] sm:$0x3]
        %v4433 = vld [vmem:[%s3396 + $0x60] sm:$0xc]
        %v4434 = vld [vmem:[%s3396 + $0x64] sm:$0xf]
        %v4435 = vld [vmem:[%s3396 + $0x68] sm:$0x3]
        %v4436 = vld [vmem:[%s3396 + $0x6c] sm:$0xc]
        %v4437 = vld [vmem:[%s3396 + $0x70] sm:$0xf]
        %v4438 = vld [vmem:[%s3396 + $0x74] sm:$0x3]
        %v4439 = vld [vmem:[%s3396 + $0x78] sm:$0xc]
        %v4440 = vld [vmem:[%s3396 + $0x7c] sm:$0xf]
        %v4441 = vld [vmem:[%s3396 + $0x80] sm:$0x3]
        %v4442 = vld [vmem:[%s3396 + $0x84] sm:$0xc]
        %v4443 = vld [vmem:[%s3396 + $0x88] sm:$0xf]
        %v4444 = vld [vmem:[%s3396 + $0x8c] sm:$0x3]
        %v4445 = vld [vmem:[%s3396 + $0x90] sm:$0xc]
        %v4446 = vld [vmem:[%s3396 + $0x94] sm:$0xf]
        %v4447 = vld [vmem:[%s3396 + $0x98] sm:$0x3]
        %v4448 = vld [vmem:[%s3396 + $0x9c] sm:$0xc]
        %v4449 = vld [vmem:[%s3396 + $0xa0] sm:$0xf]
        %v4450 = vld [vmem:[%s3396 + $0xa4] sm:$0x3]
        %v4451 = vld [vmem:[%s3396 + $0xa8] sm:$0xc]
        %v4452 = vld [vmem:[%s3396 + $0xac] sm:$0xf]
        %v4453 = vld [vmem:[%s3396 + $0xb0] sm:$0x3]
        %v4454 = vld [vmem:[%s3396 + $0xb4] sm:$0xc]
        %v4455 = vld [vmem:[%s3396 + $0xb8] sm:$0xf]
        %v4456 = vld [vmem:[%s3396 + $0xbc] sm:$0x3]
        %v4505 = vrot.slane %v4409, 6
        %v4506 = vrot.slane %v4505, 4
        %v4507 = vrot.slane %v4410, 6
        %v4508 = vsel %vm1322, %v4506, %v4507
        %v4509 = vrot.slane %v4507, 4
        %v4510 = vrot.slane %v4411, 6
        %v4511 = vsel %vm1322, %v4509, %v4510
        %v4512 = vrot.slane %v4412, 6
        %v4513 = vrot.slane %v4512, 4
        %v4514 = vrot.slane %v4413, 6
        %v4515 = vsel %vm1322, %v4513, %v4514
        %v4516 = vrot.slane %v4514, 4
        %v4517 = vrot.slane %v4414, 6
        %v4518 = vsel %vm1322, %v4516, %v4517
        %v4519 = vrot.slane %v4415, 6
        %v4520 = vrot.slane %v4519, 4
        %v4521 = vrot.slane %v4416, 6
        %v4522 = vsel %vm1322, %v4520, %v4521
        %v4523 = vrot.slane %v4521, 4
        %v4524 = vrot.slane %v4417, 6
        %v4525 = vsel %vm1322, %v4523, %v4524
        %v4526 = vrot.slane %v4418, 6
        %v4527 = vrot.slane %v4526, 4
        %v4528 = vrot.slane %v4419, 6
        %v4529 = vsel %vm1322, %v4527, %v4528
        %v4530 = vrot.slane %v4528, 4
        %v4531 = vrot.slane %v4420, 6
        %v4532 = vsel %vm1322, %v4530, %v4531
        %v4533 = vrot.slane %v4421, 6
        %v4534 = vrot.slane %v4533, 4
        %v4535 = vrot.slane %v4422, 6
        %v4536 = vsel %vm1322, %v4534, %v4535
        %v4537 = vrot.slane %v4535, 4
        %v4538 = vrot.slane %v4423, 6
        %v4539 = vsel %vm1322, %v4537, %v4538
        %v4540 = vrot.slane %v4424, 6
        %v4541 = vrot.slane %v4540, 4
        %v4542 = vrot.slane %v4425, 6
        %v4543 = vsel %vm1322, %v4541, %v4542
        %v4544 = vrot.slane %v4542, 4
        %v4545 = vrot.slane %v4426, 6
        %v4546 = vsel %vm1322, %v4544, %v4545
        %v4547 = vrot.slane %v4427, 6
        %v4548 = vrot.slane %v4547, 4
        %v4549 = vrot.slane %v4428, 6
        %v4550 = vsel %vm1322, %v4548, %v4549
        %v4551 = vrot.slane %v4549, 4
        %v4552 = vrot.slane %v4429, 6
        %v4553 = vsel %vm1322, %v4551, %v4552
        %v4554 = vrot.slane %v4430, 6
        %v4555 = vrot.slane %v4554, 4
        %v4556 = vrot.slane %v4431, 6
        %v4557 = vsel %vm1322, %v4555, %v4556
        %v4558 = vrot.slane %v4556, 4
        %v4559 = vrot.slane %v4432, 6
        %v4560 = vsel %vm1322, %v4558, %v4559
        %v4561 = vrot.slane %v4433, 6
        %v4562 = vrot.slane %v4561, 4
        %v4563 = vrot.slane %v4434, 6
        %v4564 = vsel %vm1322, %v4562, %v4563
        %v4565 = vrot.slane %v4563, 4
        %v4566 = vrot.slane %v4435, 6
        %v4567 = vsel %vm1322, %v4565, %v4566
        %v4568 = vrot.slane %v4436, 6
        %v4569 = vrot.slane %v4568, 4
        %v4570 = vrot.slane %v4437, 6
        %v4571 = vsel %vm1322, %v4569, %v4570
        %v4572 = vrot.slane %v4570, 4
        %v4573 = vrot.slane %v4438, 6
        %v4574 = vsel %vm1322, %v4572, %v4573
        %v4575 = vrot.slane %v4439, 6
        %v4576 = vrot.slane %v4575, 4
        %v4577 = vrot.slane %v4440, 6
        %v4578 = vsel %vm1322, %v4576, %v4577
        %v4579 = vrot.slane %v4577, 4
        %v4580 = vrot.slane %v4441, 6
        %v4581 = vsel %vm1322, %v4579, %v4580
        %v4582 = vrot.slane %v4442, 6
        %v4583 = vrot.slane %v4582, 4
        %v4584 = vrot.slane %v4443, 6
        %v4585 = vsel %vm1322, %v4583, %v4584
        %v4586 = vrot.slane %v4584, 4
        %v4587 = vrot.slane %v4444, 6
        %v4588 = vsel %vm1322, %v4586, %v4587
        %v4589 = vrot.slane %v4445, 6
        %v4590 = vrot.slane %v4589, 4
        %v4591 = vrot.slane %v4446, 6
        %v4592 = vsel %vm1322, %v4590, %v4591
        %v4593 = vrot.slane %v4591, 4
        %v4594 = vrot.slane %v4447, 6
        %v4595 = vsel %vm1322, %v4593, %v4594
        %v4596 = vrot.slane %v4448, 6
        %v4597 = vrot.slane %v4596, 4
        %v4598 = vrot.slane %v4449, 6
        %v4599 = vsel %vm1322, %v4597, %v4598
        %v4600 = vrot.slane %v4598, 4
        %v4601 = vrot.slane %v4450, 6
        %v4602 = vsel %vm1322, %v4600, %v4601
        %v4603 = vrot.slane %v4451, 6
        %v4604 = vrot.slane %v4603, 4
        %v4605 = vrot.slane %v4452, 6
        %v4606 = vsel %vm1322, %v4604, %v4605
        %v4607 = vrot.slane %v4605, 4
        %v4608 = vrot.slane %v4453, 6
        %v4609 = vsel %vm1322, %v4607, %v4608
        %v4610 = vrot.slane %v4454, 6
        %v4611 = vrot.slane %v4610, 4
        %v4612 = vrot.slane %v4455, 6
        %v4613 = vsel %vm1322, %v4611, %v4612
        %v4614 = vrot.slane %v4612, 4
        %v4615 = vrot.slane %v4456, 6
        %v4616 = vsel %vm1322, %v4614, %v4615
        %v4617 = vld [vmem:[#allocation2] sm:$0xff]
        %v4618 = vld [vmem:[#allocation2 + $0x8] sm:$0xff]
        %v4619 = vld [vmem:[#allocation2 + $0x10] sm:$0xff]
        %v4620 = vld [vmem:[#allocation2 + $0x18] sm:$0xff]
        %v4621 = vld [vmem:[#allocation2 + $0x20] sm:$0xff]
        %v4622 = vld [vmem:[#allocation2 + $0x28] sm:$0xff]
        %v4623 = vld [vmem:[#allocation2 + $0x30] sm:$0xff]
        %v4624 = vld [vmem:[#allocation2 + $0x38] sm:$0xff]
        %v4625 = vld [vmem:[#allocation2 + $0x40] sm:$0xff]
        %v4626 = vld [vmem:[#allocation2 + $0x48] sm:$0xff]
        %v4627 = vld [vmem:[#allocation2 + $0x50] sm:$0xff]
        %v4628 = vld [vmem:[#allocation2 + $0x58] sm:$0xff]
        %v4629 = vld [vmem:[#allocation2 + $0x60] sm:$0xff]
        %v4630 = vld [vmem:[#allocation2 + $0x68] sm:$0xff]
        %v4631 = vld [vmem:[#allocation2 + $0x70] sm:$0xff]
        %v4632 = vld [vmem:[#allocation2 + $0x78] sm:$0xff]
        %v4633 = vld [vmem:[#allocation2 + $0x80] sm:$0xff]
        %v4634 = vld [vmem:[#allocation2 + $0x88] sm:$0xff]
        %v4635 = vld [vmem:[#allocation2 + $0x90] sm:$0xff]
        %v4636 = vld [vmem:[#allocation2 + $0x98] sm:$0xff]
        %v4637 = vld [vmem:[#allocation2 + $0xa0] sm:$0xff]
        %v4638 = vld [vmem:[#allocation2 + $0xa8] sm:$0xff]
        %v4639 = vld [vmem:[#allocation2 + $0xb0] sm:$0xff]
        %v4640 = vld [vmem:[#allocation2 + $0xb8] sm:$0xff]
        %v4641 = vld [vmem:[#allocation2 + $0xc0] sm:$0xff]
        %v4642 = vld [vmem:[#allocation2 + $0xc8] sm:$0xff]
        %v4643 = vld [vmem:[#allocation2 + $0xd0] sm:$0xff]
        %v4644 = vld [vmem:[#allocation2 + $0xd8] sm:$0xff]
        %v4645 = vld [vmem:[#allocation2 + $0xe0] sm:$0xff]
        %v4646 = vld [vmem:[#allocation2 + $0xe8] sm:$0xff]
        %v4647 = vld [vmem:[#allocation2 + $0xf0] sm:$0xff]
        %v4648 = vld [vmem:[#allocation2 + $0xf8] sm:$0xff]
        %s4649 = scalar_lea.vmem %s1, 128
        %v4650 = vld [vmem:[%s4649] sm:$0xf]
        %v4651 = vld [vmem:[%s4649 + $0x4] sm:$0xf]
        %v4652 = vld [vmem:[%s4649 + $0x8] sm:$0xf]
        %v4653 = vld [vmem:[%s4649 + $0xc] sm:$0xf]
        %v4654 = vunpack.c.l.b16 %v4508
        %v4655 = vunpack.c.l.b16 %v4511
        %v4656 = vunpack.c.l.b16 %v4515
        %v4657 = vunpack.c.l.b16 %v4518
        %v4658 = vunpack.c.l.b16 %v4522
        %v4659 = vunpack.c.l.b16 %v4525
        %v4660 = vunpack.c.l.b16 %v4529
        %v4661 = vunpack.c.l.b16 %v4532
        %v4662 = vunpack.c.l.b16 %v4536
        %v4663 = vunpack.c.l.b16 %v4539
        %v4664 = vunpack.c.l.b16 %v4543
        %v4665 = vunpack.c.l.b16 %v4546
        %v4666 = vunpack.c.l.b16 %v4550
        %v4667 = vunpack.c.l.b16 %v4553
        %v4668 = vunpack.c.l.b16 %v4557
        %v4669 = vunpack.c.l.b16 %v4560
        %v4670 = vunpack.c.l.b16 %v4564
        %v4671 = vunpack.c.l.b16 %v4567
        %v4672 = vunpack.c.l.b16 %v4571
        %v4673 = vunpack.c.l.b16 %v4574
        %v4674 = vunpack.c.l.b16 %v4578
        %v4675 = vunpack.c.l.b16 %v4581
        %v4676 = vunpack.c.l.b16 %v4585
        %v4677 = vunpack.c.l.b16 %v4588
        %v4678 = vunpack.c.l.b16 %v4592
        %v4679 = vunpack.c.l.b16 %v4595
        %v4680 = vunpack.c.l.b16 %v4599
        %v4681 = vunpack.c.l.b16 %v4602
        %v4682 = vunpack.c.l.b16 %v4606
        %v4683 = vunpack.c.l.b16 %v4609
        %v4684 = vunpack.c.l.b16 %v4613
        %v4685 = vunpack.c.l.b16 %v4616
        %v4686 = vpack.c.b16 %v4655, %v4654
        %v4687 = vpack.c.b16 %v4657, %v4656
        %v4688 = vpack.c.b16 %v4659, %v4658
        %v4689 = vpack.c.b16 %v4661, %v4660
        %v4690 = vpack.c.b16 %v4663, %v4662
        %v4691 = vpack.c.b16 %v4665, %v4664
        %v4692 = vpack.c.b16 %v4667, %v4666
        %v4693 = vpack.c.b16 %v4669, %v4668
        %v4694 = vpack.c.b16 %v4671, %v4670
        %v4695 = vpack.c.b16 %v4673, %v4672
        %v4696 = vpack.c.b16 %v4675, %v4674
        %v4697 = vpack.c.b16 %v4677, %v4676
        %v4698 = vpack.c.b16 %v4679, %v4678
        %v4699 = vpack.c.b16 %v4681, %v4680
        %v4700 = vpack.c.b16 %v4683, %v4682
        %v4701 = vpack.c.b16 %v4685, %v4684
        %v4706 = vunpack.c.l.b16 %v4650
        %v4707 = vunpack.c.l.b16 %v4651
        %v4708 = vunpack.c.l.b16 %v4652
        %v4709 = vunpack.c.l.b16 %v4653
        %v4710 = vpack.c.b16 %v4707, %v4706
        %v4711 = vpack.c.b16 %v4709, %v4708
        %v4715 = vsel %vm369, %v4686, 0
        %v4718 = vsel %vm369, %v4687, 0
        %v4721 = vsel %vm369, %v4688, 0
        %v4724 = vsel %vm369, %v4689, 0
        %v4727 = vsel %vm369, %v4690, 0
        %v4730 = vsel %vm369, %v4691, 0
        %v4733 = vsel %vm369, %v4692, 0
        %v4736 = vsel %vm369, %v4693, 0
        %v4739 = vsel %vm369, %v4694, 0
        %v4742 = vsel %vm369, %v4695, 0
        %v4745 = vsel %vm369, %v4696, 0
        %v4748 = vsel %vm369, %v4697, 0
        %v4751 = vsel %vm369, %v4698, 0
        %v4754 = vsel %vm369, %v4699, 0
        %v4757 = vsel %vm369, %v4700, 0
        %v4760 = vsel %vm369, %v4701, 0
        %4762 = vmatprep.subr.bf16.mxu0 0
        %4763 = vmatpush1.bf16.msra.mxu0 %v4710
        %4764 = vmatprep.subr.bf16.mxu0 0
        %4765 = vmatpush1.bf16.msra.mxu0 %v4711
        %4766 = vmatprep.subr.bf16.mxu0 0
        %4767 = vmatpush1.bf16.msra.mxu0 0
        %4768 = vmatprep.subr.bf16.mxu0 0
        %4769 = vmatpush1.bf16.msra.mxu0 0
        %4770 = vmatprep.subr.bf16.mxu0 0
        %4771 = vmatpush1.bf16.msra.mxu0 0
        %4772 = vmatprep.subr.bf16.mxu0 0
        %4773 = vmatpush1.bf16.msra.mxu0 0
        %4774 = vmatprep.subr.bf16.mxu0 0
        %4775 = vmatpush1.bf16.msra.mxu0 0
        %4776 = vmatprep.subr.bf16.mxu0 0
        %4777 = vmatpush1.bf16.msra.mxu0 0
        %4778 = vmatprep.subr.bf16.mxu0 0
        %4779 = vmatpush1.bf16.msra.mxu0 0
        %4780 = vmatprep.subr.bf16.mxu0 0
        %4781 = vmatpush1.bf16.msra.mxu0 0
        %4782 = vmatprep.subr.bf16.mxu0 0
        %4783 = vmatpush1.bf16.msra.mxu0 0
        %4784 = vmatprep.subr.bf16.mxu0 0
        %4785 = vmatpush1.bf16.msra.mxu0 0
        %4786 = vmatprep.subr.bf16.mxu0 0
        %4787 = vmatpush1.bf16.msra.mxu0 0
        %4788 = vmatprep.subr.bf16.mxu0 0
        %4789 = vmatpush1.bf16.msra.mxu0 0
        %4790 = vmatprep.subr.bf16.mxu0 0
        %4791 = vmatpush1.bf16.msra.mxu0 0
        %4792 = vmatprep.subr.bf16.mxu0 0
        %4793 = vmatpush1.bf16.msra.mxu0 0
        %4794 = vmatprep.mubr.bf16.mxu0 0
        %4795 = vmatmul.mubr.bf16.gmra.mrb[0].mxu0 %v4715
        %v4796 = vpop.f32.mrb[0].mxu0
        %v4797 = vadd.f32 0.0, %v4796
        %v4798 = vpop.f32.mrb[0].mxu0
        %v4799 = vpop.f32.mrb[0].mxu0
        %v4800 = vadd.f32 0.0, %v4799
        %v4801 = vpop.f32.mrb[0].mxu0
        %4802 = vmatprep.mubr.bf16.mxu0 0
        %4803 = vmatmul.mubr.bf16.gmra.mrb[0].mxu0 %v4718
        %v4804 = vpop.f32.mrb[0].mxu0
        %v4805 = vadd.f32 0.0, %v4804
        %v4806 = vpop.f32.mrb[0].mxu0
        %v4807 = vpop.f32.mrb[0].mxu0
        %v4808 = vadd.f32 0.0, %v4807
        %v4809 = vpop.f32.mrb[0].mxu0
        %4810 = vmatprep.mubr.bf16.mxu0 0
        %4811 = vmatmul.mubr.bf16.gmra.mrb[0].mxu0 %v4721
        %v4812 = vpop.f32.mrb[0].mxu0
        %v4813 = vadd.f32 0.0, %v4812
        %v4814 = vpop.f32.mrb[0].mxu0
        %v4815 = vpop.f32.mrb[0].mxu0
        %v4816 = vadd.f32 0.0, %v4815
        %v4817 = vpop.f32.mrb[0].mxu0
        %4818 = vmatprep.mubr.bf16.mxu0 0
        %4819 = vmatmul.mubr.bf16.gmra.mrb[0].mxu0 %v4724
        %v4820 = vpop.f32.mrb[0].mxu0
        %v4821 = vadd.f32 0.0, %v4820
        %v4822 = vpop.f32.mrb[0].mxu0
        %v4823 = vpop.f32.mrb[0].mxu0
        %v4824 = vadd.f32 0.0, %v4823
        %v4825 = vpop.f32.mrb[0].mxu0
        %4826 = vmatprep.mubr.bf16.mxu0 0
        %4827 = vmatmul.mubr.bf16.gmra.mrb[0].mxu0 %v4727
        %v4828 = vpop.f32.mrb[0].mxu0
        %v4829 = vadd.f32 0.0, %v4828
        %v4830 = vpop.f32.mrb[0].mxu0
        %v4831 = vpop.f32.mrb[0].mxu0
        %v4832 = vadd.f32 0.0, %v4831
        %v4833 = vpop.f32.mrb[0].mxu0
        %4834 = vmatprep.mubr.bf16.mxu0 0
        %4835 = vmatmul.mubr.bf16.gmra.mrb[0].mxu0 %v4730
        %v4836 = vpop.f32.mrb[0].mxu0
        %v4837 = vadd.f32 0.0, %v4836
        %v4838 = vpop.f32.mrb[0].mxu0
        %v4839 = vpop.f32.mrb[0].mxu0
        %v4840 = vadd.f32 0.0, %v4839
        %v4841 = vpop.f32.mrb[0].mxu0
        %4842 = vmatprep.mubr.bf16.mxu0 0
        %4843 = vmatmul.mubr.bf16.gmra.mrb[0].mxu0 %v4733
        %v4844 = vpop.f32.mrb[0].mxu0
        %v4845 = vadd.f32 0.0, %v4844
        %v4846 = vpop.f32.mrb[0].mxu0
        %v4847 = vpop.f32.mrb[0].mxu0
        %v4848 = vadd.f32 0.0, %v4847
        %v4849 = vpop.f32.mrb[0].mxu0
        %4850 = vmatprep.mubr.bf16.mxu0 0
        %4851 = vmatmul.mubr.bf16.gmra.mrb[0].mxu0 %v4736
        %v4852 = vpop.f32.mrb[0].mxu0
        %v4853 = vadd.f32 0.0, %v4852
        %v4854 = vpop.f32.mrb[0].mxu0
        %v4855 = vpop.f32.mrb[0].mxu0
        %v4856 = vadd.f32 0.0, %v4855
        %v4857 = vpop.f32.mrb[0].mxu0
        %4858 = vmatprep.mubr.bf16.mxu0 0
        %4859 = vmatmul.mubr.bf16.gmra.mrb[0].mxu0 %v4739
        %v4860 = vpop.f32.mrb[0].mxu0
        %v4861 = vadd.f32 0.0, %v4860
        %v4862 = vpop.f32.mrb[0].mxu0
        %v4863 = vpop.f32.mrb[0].mxu0
        %v4864 = vadd.f32 0.0, %v4863
        %v4865 = vpop.f32.mrb[0].mxu0
        %4866 = vmatprep.mubr.bf16.mxu0 0
        %4867 = vmatmul.mubr.bf16.gmra.mrb[0].mxu0 %v4742
        %v4868 = vpop.f32.mrb[0].mxu0
        %v4869 = vadd.f32 0.0, %v4868
        %v4870 = vpop.f32.mrb[0].mxu0
        %v4871 = vpop.f32.mrb[0].mxu0
        %v4872 = vadd.f32 0.0, %v4871
        %v4873 = vpop.f32.mrb[0].mxu0
        %4874 = vmatprep.mubr.bf16.mxu0 0
        %4875 = vmatmul.mubr.bf16.gmra.mrb[0].mxu0 %v4745
        %v4876 = vpop.f32.mrb[0].mxu0
        %v4877 = vadd.f32 0.0, %v4876
        %v4878 = vpop.f32.mrb[0].mxu0
        %v4879 = vpop.f32.mrb[0].mxu0
        %v4880 = vadd.f32 0.0, %v4879
        %v4881 = vpop.f32.mrb[0].mxu0
        %4882 = vmatprep.mubr.bf16.mxu0 0
        %4883 = vmatmul.mubr.bf16.gmra.mrb[0].mxu0 %v4748
        %v4884 = vpop.f32.mrb[0].mxu0
        %v4885 = vadd.f32 0.0, %v4884
        %v4886 = vpop.f32.mrb[0].mxu0
        %v4887 = vpop.f32.mrb[0].mxu0
        %v4888 = vadd.f32 0.0, %v4887
        %v4889 = vpop.f32.mrb[0].mxu0
        %4890 = vmatprep.mubr.bf16.mxu0 0
        %4891 = vmatmul.mubr.bf16.gmra.mrb[0].mxu0 %v4751
        %v4892 = vpop.f32.mrb[0].mxu0
        %v4893 = vadd.f32 0.0, %v4892
        %v4894 = vpop.f32.mrb[0].mxu0
        %v4895 = vpop.f32.mrb[0].mxu0
        %v4896 = vadd.f32 0.0, %v4895
        %v4897 = vpop.f32.mrb[0].mxu0
        %4898 = vmatprep.mubr.bf16.mxu0 0
        %4899 = vmatmul.mubr.bf16.gmra.mrb[0].mxu0 %v4754
        %v4900 = vpop.f32.mrb[0].mxu0
        %v4901 = vadd.f32 0.0, %v4900
        %v4902 = vpop.f32.mrb[0].mxu0
        %v4903 = vpop.f32.mrb[0].mxu0
        %v4904 = vadd.f32 0.0, %v4903
        %v4905 = vpop.f32.mrb[0].mxu0
        %4906 = vmatprep.mubr.bf16.mxu0 0
        %4907 = vmatmul.mubr.bf16.gmra.mrb[0].mxu0 %v4757
        %v4908 = vpop.f32.mrb[0].mxu0
        %v4909 = vadd.f32 0.0, %v4908
        %v4910 = vpop.f32.mrb[0].mxu0
        %v4911 = vpop.f32.mrb[0].mxu0
        %v4912 = vadd.f32 0.0, %v4911
        %v4913 = vpop.f32.mrb[0].mxu0
        %4914 = vmatprep.mubr.bf16.mxu0 0
        %4915 = vmatmul.mubr.bf16.gmra.mrb[0].mxu0 %v4760
        %v4916 = vpop.f32.mrb[0].mxu0
        %v4917 = vadd.f32 0.0, %v4916
        %v4918 = vpop.f32.mrb[0].mxu0
        %v4919 = vpop.f32.mrb[0].mxu0
        %v4920 = vadd.f32 0.0, %v4919
        %v4921 = vpop.f32.mrb[0].mxu0
        %4922 = vdwg.mxu0
        %v4923 = vadd.f32 %v4617, %v4797
        %v4924 = vadd.f32 %v4618, %v4800
        %v4925 = vadd.f32 %v4619, %v4805
        %v4926 = vadd.f32 %v4620, %v4808
        %v4927 = vadd.f32 %v4621, %v4813
        %v4928 = vadd.f32 %v4622, %v4816
        %v4929 = vadd.f32 %v4623, %v4821
        %v4930 = vadd.f32 %v4624, %v4824
        %v4931 = vadd.f32 %v4625, %v4829
        %v4932 = vadd.f32 %v4626, %v4832
        %v4933 = vadd.f32 %v4627, %v4837
        %v4934 = vadd.f32 %v4628, %v4840
        %v4935 = vadd.f32 %v4629, %v4845
        %v4936 = vadd.f32 %v4630, %v4848
        %v4937 = vadd.f32 %v4631, %v4853
        %v4938 = vadd.f32 %v4632, %v4856
        %v4939 = vadd.f32 %v4633, %v4861
        %v4940 = vadd.f32 %v4634, %v4864
        %v4941 = vadd.f32 %v4635, %v4869
        %v4942 = vadd.f32 %v4636, %v4872
        %v4943 = vadd.f32 %v4637, %v4877
        %v4944 = vadd.f32 %v4638, %v4880
        %v4945 = vadd.f32 %v4639, %v4885
        %v4946 = vadd.f32 %v4640, %v4888
        %v4947 = vadd.f32 %v4641, %v4893
        %v4948 = vadd.f32 %v4642, %v4896
        %v4949 = vadd.f32 %v4643, %v4901
        %v4950 = vadd.f32 %v4644, %v4904
        %v4951 = vadd.f32 %v4645, %v4909
        %v4952 = vadd.f32 %v4646, %v4912
        %v4953 = vadd.f32 %v4647, %v4917
        %v4954 = vadd.f32 %v4648, %v4920
        %4955 = vst [vmem:[#allocation2] sm:$0xff] %v4923
        %4956 = vst [vmem:[#allocation2 + $0x8] sm:$0xff] %v4924
        %4957 = vst [vmem:[#allocation2 + $0x10] sm:$0xff] %v4925
        %4958 = vst [vmem:[#allocation2 + $0x18] sm:$0xff] %v4926
        %4959 = vst [vmem:[#allocation2 + $0x20] sm:$0xff] %v4927
        %4960 = vst [vmem:[#allocation2 + $0x28] sm:$0xff] %v4928
        %4961 = vst [vmem:[#allocation2 + $0x30] sm:$0xff] %v4929
        %4962 = vst [vmem:[#allocation2 + $0x38] sm:$0xff] %v4930
        %4963 = vst [vmem:[#allocation2 + $0x40] sm:$0xff] %v4931
        %4964 = vst [vmem:[#allocation2 + $0x48] sm:$0xff] %v4932
        %4965 = vst [vmem:[#allocation2 + $0x50] sm:$0xff] %v4933
        %4966 = vst [vmem:[#allocation2 + $0x58] sm:$0xff] %v4934
        %4967 = vst [vmem:[#allocation2 + $0x60] sm:$0xff] %v4935
        %4968 = vst [vmem:[#allocation2 + $0x68] sm:$0xff] %v4936
        %4969 = vst [vmem:[#allocation2 + $0x70] sm:$0xff] %v4937
        %4970 = vst [vmem:[#allocation2 + $0x78] sm:$0xff] %v4938
        %4971 = vst [vmem:[#allocation2 + $0x80] sm:$0xff] %v4939
        %4972 = vst [vmem:[#allocation2 + $0x88] sm:$0xff] %v4940
        %4973 = vst [vmem:[#allocation2 + $0x90] sm:$0xff] %v4941
        %4974 = vst [vmem:[#allocation2 + $0x98] sm:$0xff] %v4942
        %4975 = vst [vmem:[#allocation2 + $0xa0] sm:$0xff] %v4943
        %4976 = vst [vmem:[#allocation2 + $0xa8] sm:$0xff] %v4944
        %4977 = vst [vmem:[#allocation2 + $0xb0] sm:$0xff] %v4945
        %4978 = vst [vmem:[#allocation2 + $0xb8] sm:$0xff] %v4946
        %4979 = vst [vmem:[#allocation2 + $0xc0] sm:$0xff] %v4947
        %4980 = vst [vmem:[#allocation2 + $0xc8] sm:$0xff] %v4948
        %4981 = vst [vmem:[#allocation2 + $0xd0] sm:$0xff] %v4949
        %4982 = vst [vmem:[#allocation2 + $0xd8] sm:$0xff] %v4950
        %4983 = vst [vmem:[#allocation2 + $0xe0] sm:$0xff] %v4951
        %4984 = vst [vmem:[#allocation2 + $0xe8] sm:$0xff] %v4952
        %4985 = vst [vmem:[#allocation2 + $0xf0] sm:$0xff] %v4953
        %4986 = vst [vmem:[#allocation2 + $0xf8] sm:$0xff] %v4954
        %v4987 = vld [vmem:[#allocation2] sm:$0xff]
        %v4988 = vld [vmem:[#allocation2 + $0x8] sm:$0xff]
        %v4989 = vld [vmem:[#allocation2 + $0x10] sm:$0xff]
        %v4990 = vld [vmem:[#allocation2 + $0x18] sm:$0xff]
        %v4991 = vld [vmem:[#allocation2 + $0x20] sm:$0xff]
        %v4992 = vld [vmem:[#allocation2 + $0x28] sm:$0xff]
        %v4993 = vld [vmem:[#allocation2 + $0x30] sm:$0xff]
        %v4994 = vld [vmem:[#allocation2 + $0x38] sm:$0xff]
        %v4995 = vld [vmem:[#allocation2 + $0x40] sm:$0xff]
        %v4996 = vld [vmem:[#allocation2 + $0x48] sm:$0xff]
        %v4997 = vld [vmem:[#allocation2 + $0x50] sm:$0xff]
        %v4998 = vld [vmem:[#allocation2 + $0x58] sm:$0xff]
        %v4999 = vld [vmem:[#allocation2 + $0x60] sm:$0xff]
        %v5000 = vld [vmem:[#allocation2 + $0x68] sm:$0xff]
        %v5001 = vld [vmem:[#allocation2 + $0x70] sm:$0xff]
        %v5002 = vld [vmem:[#allocation2 + $0x78] sm:$0xff]
        %v5003 = vld [vmem:[#allocation2 + $0x80] sm:$0xff]
        %v5004 = vld [vmem:[#allocation2 + $0x88] sm:$0xff]
        %v5005 = vld [vmem:[#allocation2 + $0x90] sm:$0xff]
        %v5006 = vld [vmem:[#allocation2 + $0x98] sm:$0xff]
        %v5007 = vld [vmem:[#allocation2 + $0xa0] sm:$0xff]
        %v5008 = vld [vmem:[#allocation2 + $0xa8] sm:$0xff]
        %v5009 = vld [vmem:[#allocation2 + $0xb0] sm:$0xff]
        %v5010 = vld [vmem:[#allocation2 + $0xb8] sm:$0xff]
        %v5011 = vld [vmem:[#allocation2 + $0xc0] sm:$0xff]
        %v5012 = vld [vmem:[#allocation2 + $0xc8] sm:$0xff]
        %v5013 = vld [vmem:[#allocation2 + $0xd0] sm:$0xff]
        %v5014 = vld [vmem:[#allocation2 + $0xd8] sm:$0xff]
        %v5015 = vld [vmem:[#allocation2 + $0xe0] sm:$0xff]
        %v5016 = vld [vmem:[#allocation2 + $0xe8] sm:$0xff]
        %v5017 = vld [vmem:[#allocation2 + $0xf0] sm:$0xff]
        %v5018 = vld [vmem:[#allocation2 + $0xf8] sm:$0xff]
        %v5019 = vxor.u32 %v4987, 2147483648
        %v5020 = vxor.u32 %v4988, 2147483648
        %v5021 = vxor.u32 %v4989, 2147483648
        %v5022 = vxor.u32 %v4990, 2147483648
        %v5023 = vxor.u32 %v4991, 2147483648
        %v5024 = vxor.u32 %v4992, 2147483648
        %v5025 = vxor.u32 %v4993, 2147483648
        %v5026 = vxor.u32 %v4994, 2147483648
        %v5027 = vxor.u32 %v4995, 2147483648
        %v5028 = vxor.u32 %v4996, 2147483648
        %v5029 = vxor.u32 %v4997, 2147483648
        %v5030 = vxor.u32 %v4998, 2147483648
        %v5031 = vxor.u32 %v4999, 2147483648
        %v5032 = vxor.u32 %v5000, 2147483648
        %v5033 = vxor.u32 %v5001, 2147483648
        %v5034 = vxor.u32 %v5002, 2147483648
        %v5035 = vxor.u32 %v5003, 2147483648
        %v5036 = vxor.u32 %v5004, 2147483648
        %v5037 = vxor.u32 %v5005, 2147483648
        %v5038 = vxor.u32 %v5006, 2147483648
        %v5039 = vxor.u32 %v5007, 2147483648
        %v5040 = vxor.u32 %v5008, 2147483648
        %v5041 = vxor.u32 %v5009, 2147483648
        %v5042 = vxor.u32 %v5010, 2147483648
        %v5043 = vxor.u32 %v5011, 2147483648
        %v5044 = vxor.u32 %v5012, 2147483648
        %v5045 = vxor.u32 %v5013, 2147483648
        %v5046 = vxor.u32 %v5014, 2147483648
        %v5047 = vxor.u32 %v5015, 2147483648
        %v5048 = vxor.u32 %v5016, 2147483648
        %v5049 = vxor.u32 %v5017, 2147483648
        %v5050 = vxor.u32 %v5018, 2147483648
        %v5051 = vmul.f32 %v5019, 1.442695
        %v5052 = vpow.pop %v5051
        %v5053 = vmul.f32 %v5020, 1.442695
        %v5054 = vpow.pop %v5053
        %v5055 = vmul.f32 %v5021, 1.442695
        %v5056 = vpow.pop %v5055
        %v5057 = vmul.f32 %v5022, 1.442695
        %v5058 = vpow.pop %v5057
        %v5059 = vmul.f32 %v5023, 1.442695
        %v5060 = vpow.pop %v5059
        %v5061 = vmul.f32 %v5024, 1.442695
        %v5062 = vpow.pop %v5061
        %v5063 = vmul.f32 %v5025, 1.442695
        %v5064 = vpow.pop %v5063
        %v5065 = vmul.f32 %v5026, 1.442695
        %v5066 = vpow.pop %v5065
        %v5067 = vmul.f32 %v5027, 1.442695
        %v5068 = vpow.pop %v5067
        %v5069 = vmul.f32 %v5028, 1.442695
        %v5070 = vpow.pop %v5069
        %v5071 = vmul.f32 %v5029, 1.442695
        %v5072 = vpow.pop %v5071
        %v5073 = vmul.f32 %v5030, 1.442695
        %v5074 = vpow.pop %v5073
        %v5075 = vmul.f32 %v5031, 1.442695
        %v5076 = vpow.pop %v5075
        %v5077 = vmul.f32 %v5032, 1.442695
        %v5078 = vpow.pop %v5077
        %v5079 = vmul.f32 %v5033, 1.442695
        %v5080 = vpow.pop %v5079
        %v5081 = vmul.f32 %v5034, 1.442695
        %v5082 = vpow.pop %v5081
        %v5083 = vmul.f32 %v5035, 1.442695
        %v5084 = vpow.pop %v5083
        %v5085 = vmul.f32 %v5036, 1.442695
        %v5086 = vpow.pop %v5085
        %v5087 = vmul.f32 %v5037, 1.442695
        %v5088 = vpow.pop %v5087
        %v5089 = vmul.f32 %v5038, 1.442695
        %v5090 = vpow.pop %v5089
        %v5091 = vmul.f32 %v5039, 1.442695
        %v5092 = vpow.pop %v5091
        %v5093 = vmul.f32 %v5040, 1.442695
        %v5094 = vpow.pop %v5093
        %v5095 = vmul.f32 %v5041, 1.442695
        %v5096 = vpow.pop %v5095
        %v5097 = vmul.f32 %v5042, 1.442695
        %v5098 = vpow.pop %v5097
        %v5099 = vmul.f32 %v5043, 1.442695
        %v5100 = vpow.pop %v5099
        %v5101 = vmul.f32 %v5044, 1.442695
        %v5102 = vpow.pop %v5101
        %v5103 = vmul.f32 %v5045, 1.442695
        %v5104 = vpow.pop %v5103
        %v5105 = vmul.f32 %v5046, 1.442695
        %v5106 = vpow.pop %v5105
        %v5107 = vmul.f32 %v5047, 1.442695
        %v5108 = vpow.pop %v5107
        %v5109 = vmul.f32 %v5048, 1.442695
        %v5110 = vpow.pop %v5109
        %v5111 = vmul.f32 %v5049, 1.442695
        %v5112 = vpow.pop %v5111
        %v5113 = vmul.f32 %v5050, 1.442695
        %v5114 = vpow.pop %v5113
        %v5115 = vadd.f32 %v5052, 1.0
        %v5116 = vadd.f32 %v5054, 1.0
        %v5117 = vadd.f32 %v5056, 1.0
        %v5118 = vadd.f32 %v5058, 1.0
        %v5119 = vadd.f32 %v5060, 1.0
        %v5120 = vadd.f32 %v5062, 1.0
        %v5121 = vadd.f32 %v5064, 1.0
        %v5122 = vadd.f32 %v5066, 1.0
        %v5123 = vadd.f32 %v5068, 1.0
        %v5124 = vadd.f32 %v5070, 1.0
        %v5125 = vadd.f32 %v5072, 1.0
        %v5126 = vadd.f32 %v5074, 1.0
        %v5127 = vadd.f32 %v5076, 1.0
        %v5128 = vadd.f32 %v5078, 1.0
        %v5129 = vadd.f32 %v5080, 1.0
        %v5130 = vadd.f32 %v5082, 1.0
        %v5131 = vadd.f32 %v5084, 1.0
        %v5132 = vadd.f32 %v5086, 1.0
        %v5133 = vadd.f32 %v5088, 1.0
        %v5134 = vadd.f32 %v5090, 1.0
        %v5135 = vadd.f32 %v5092, 1.0
        %v5136 = vadd.f32 %v5094, 1.0
        %v5137 = vadd.f32 %v5096, 1.0
        %v5138 = vadd.f32 %v5098, 1.0
        %v5139 = vadd.f32 %v5100, 1.0
        %v5140 = vadd.f32 %v5102, 1.0
        %v5141 = vadd.f32 %v5104, 1.0
        %v5142 = vadd.f32 %v5106, 1.0
        %v5143 = vadd.f32 %v5108, 1.0
        %v5144 = vadd.f32 %v5110, 1.0
        %v5145 = vadd.f32 %v5112, 1.0
        %v5146 = vadd.f32 %v5114, 1.0
        %v5147 = vrcp.pop %v5115
        %v5148 = vmul.f32 1.0, %v5147
        %v5149 = vrcp.pop %v5116
        %v5150 = vmul.f32 1.0, %v5149
        %v5151 = vrcp.pop %v5117
        %v5152 = vmul.f32 1.0, %v5151
        %v5153 = vrcp.pop %v5118
        %v5154 = vmul.f32 1.0, %v5153
        %v5155 = vrcp.pop %v5119
        %v5156 = vmul.f32 1.0, %v5155
        %v5157 = vrcp.pop %v5120
        %v5158 = vmul.f32 1.0, %v5157
        %v5159 = vrcp.pop %v5121
        %v5160 = vmul.f32 1.0, %v5159
        %v5161 = vrcp.pop %v5122
        %v5162 = vmul.f32 1.0, %v5161
        %v5163 = vrcp.pop %v5123
        %v5164 = vmul.f32 1.0, %v5163
        %v5165 = vrcp.pop %v5124
        %v5166 = vmul.f32 1.0, %v5165
        %v5167 = vrcp.pop %v5125
        %v5168 = vmul.f32 1.0, %v5167
        %v5169 = vrcp.pop %v5126
        %v5170 = vmul.f32 1.0, %v5169
        %v5171 = vrcp.pop %v5127
        %v5172 = vmul.f32 1.0, %v5171
        %v5173 = vrcp.pop %v5128
        %v5174 = vmul.f32 1.0, %v5173
        %v5175 = vrcp.pop %v5129
        %v5176 = vmul.f32 1.0, %v5175
        %v5177 = vrcp.pop %v5130
        %v5178 = vmul.f32 1.0, %v5177
        %v5179 = vrcp.pop %v5131
        %v5180 = vmul.f32 1.0, %v5179
        %v5181 = vrcp.pop %v5132
        %v5182 = vmul.f32 1.0, %v5181
        %v5183 = vrcp.pop %v5133
        %v5184 = vmul.f32 1.0, %v5183
        %v5185 = vrcp.pop %v5134
        %v5186 = vmul.f32 1.0, %v5185
        %v5187 = vrcp.pop %v5135
        %v5188 = vmul.f32 1.0, %v5187
        %v5189 = vrcp.pop %v5136
        %v5190 = vmul.f32 1.0, %v5189
        %v5191 = vrcp.pop %v5137
        %v5192 = vmul.f32 1.0, %v5191
        %v5193 = vrcp.pop %v5138
        %v5194 = vmul.f32 1.0, %v5193
        %v5195 = vrcp.pop %v5139
        %v5196 = vmul.f32 1.0, %v5195
        %v5197 = vrcp.pop %v5140
        %v5198 = vmul.f32 1.0, %v5197
        %v5199 = vrcp.pop %v5141
        %v5200 = vmul.f32 1.0, %v5199
        %v5201 = vrcp.pop %v5142
        %v5202 = vmul.f32 1.0, %v5201
        %v5203 = vrcp.pop %v5143
        %v5204 = vmul.f32 1.0, %v5203
        %v5205 = vrcp.pop %v5144
        %v5206 = vmul.f32 1.0, %v5205
        %v5207 = vrcp.pop %v5145
        %v5208 = vmul.f32 1.0, %v5207
        %v5209 = vrcp.pop %v5146
        %v5210 = vmul.f32 1.0, %v5209
        %vm5211 = vcmp.ge.f32.partialorder %v4987, 0.0
        %vm5212 = vcmp.ge.f32.partialorder %v4988, 0.0
        %vm5213 = vcmp.ge.f32.partialorder %v4989, 0.0
        %vm5214 = vcmp.ge.f32.partialorder %v4990, 0.0
        %vm5215 = vcmp.ge.f32.partialorder %v4991, 0.0
        %vm5216 = vcmp.ge.f32.partialorder %v4992, 0.0
        %vm5217 = vcmp.ge.f32.partialorder %v4993, 0.0
        %vm5218 = vcmp.ge.f32.partialorder %v4994, 0.0
        %vm5219 = vcmp.ge.f32.partialorder %v4995, 0.0
        %vm5220 = vcmp.ge.f32.partialorder %v4996, 0.0
        %vm5221 = vcmp.ge.f32.partialorder %v4997, 0.0
        %vm5222 = vcmp.ge.f32.partialorder %v4998, 0.0
        %vm5223 = vcmp.ge.f32.partialorder %v4999, 0.0
        %vm5224 = vcmp.ge.f32.partialorder %v5000, 0.0
        %vm5225 = vcmp.ge.f32.partialorder %v5001, 0.0
        %vm5226 = vcmp.ge.f32.partialorder %v5002, 0.0
        %vm5227 = vcmp.ge.f32.partialorder %v5003, 0.0
        %vm5228 = vcmp.ge.f32.partialorder %v5004, 0.0
        %vm5229 = vcmp.ge.f32.partialorder %v5005, 0.0
        %vm5230 = vcmp.ge.f32.partialorder %v5006, 0.0
        %vm5231 = vcmp.ge.f32.partialorder %v5007, 0.0
        %vm5232 = vcmp.ge.f32.partialorder %v5008, 0.0
        %vm5233 = vcmp.ge.f32.partialorder %v5009, 0.0
        %vm5234 = vcmp.ge.f32.partialorder %v5010, 0.0
        %vm5235 = vcmp.ge.f32.partialorder %v5011, 0.0
        %vm5236 = vcmp.ge.f32.partialorder %v5012, 0.0
        %vm5237 = vcmp.ge.f32.partialorder %v5013, 0.0
        %vm5238 = vcmp.ge.f32.partialorder %v5014, 0.0
        %vm5239 = vcmp.ge.f32.partialorder %v5015, 0.0
        %vm5240 = vcmp.ge.f32.partialorder %v5016, 0.0
        %vm5241 = vcmp.ge.f32.partialorder %v5017, 0.0
        %vm5242 = vcmp.ge.f32.partialorder %v5018, 0.0
        %v5243 = vmul.f32 %v4987, 0.2
        %v5244 = vmul.f32 %v4988, 0.2
        %v5245 = vmul.f32 %v4989, 0.2
        %v5246 = vmul.f32 %v4990, 0.2
        %v5247 = vmul.f32 %v4991, 0.2
        %v5248 = vmul.f32 %v4992, 0.2
        %v5249 = vmul.f32 %v4993, 0.2
        %v5250 = vmul.f32 %v4994, 0.2
        %v5251 = vmul.f32 %v4995, 0.2
        %v5252 = vmul.f32 %v4996, 0.2
        %v5253 = vmul.f32 %v4997, 0.2
        %v5254 = vmul.f32 %v4998, 0.2
        %v5255 = vmul.f32 %v4999, 0.2
        %v5256 = vmul.f32 %v5000, 0.2
        %v5257 = vmul.f32 %v5001, 0.2
        %v5258 = vmul.f32 %v5002, 0.2
        %v5259 = vmul.f32 %v5003, 0.2
        %v5260 = vmul.f32 %v5004, 0.2
        %v5261 = vmul.f32 %v5005, 0.2
        %v5262 = vmul.f32 %v5006, 0.2
        %v5263 = vmul.f32 %v5007, 0.2
        %v5264 = vmul.f32 %v5008, 0.2
        %v5265 = vmul.f32 %v5009, 0.2
        %v5266 = vmul.f32 %v5010, 0.2
        %v5267 = vmul.f32 %v5011, 0.2
        %v5268 = vmul.f32 %v5012, 0.2
        %v5269 = vmul.f32 %v5013, 0.2
        %v5270 = vmul.f32 %v5014, 0.2
        %v5271 = vmul.f32 %v5015, 0.2
        %v5272 = vmul.f32 %v5016, 0.2
        %v5273 = vmul.f32 %v5017, 0.2
        %v5274 = vmul.f32 %v5018, 0.2
        %v5275 = vsel %vm5211, %v4987, %v5243
        %v5276 = vsel %vm5212, %v4988, %v5244
        %v5277 = vsel %vm5213, %v4989, %v5245
        %v5278 = vsel %vm5214, %v4990, %v5246
        %v5279 = vsel %vm5215, %v4991, %v5247
        %v5280 = vsel %vm5216, %v4992, %v5248
        %v5281 = vsel %vm5217, %v4993, %v5249
        %v5282 = vsel %vm5218, %v4994, %v5250
        %v5283 = vsel %vm5219, %v4995, %v5251
        %v5284 = vsel %vm5220, %v4996, %v5252
        %v5285 = vsel %vm5221, %v4997, %v5253
        %v5286 = vsel %vm5222, %v4998, %v5254
        %v5287 = vsel %vm5223, %v4999, %v5255
        %v5288 = vsel %vm5224, %v5000, %v5256
        %v5289 = vsel %vm5225, %v5001, %v5257
        %v5290 = vsel %vm5226, %v5002, %v5258
        %v5291 = vsel %vm5227, %v5003, %v5259
        %v5292 = vsel %vm5228, %v5004, %v5260
        %v5293 = vsel %vm5229, %v5005, %v5261
        %v5294 = vsel %vm5230, %v5006, %v5262
        %v5295 = vsel %vm5231, %v5007, %v5263
        %v5296 = vsel %vm5232, %v5008, %v5264
        %v5297 = vsel %vm5233, %v5009, %v5265
        %v5298 = vsel %vm5234, %v5010, %v5266
        %v5299 = vsel %vm5235, %v5011, %v5267
        %v5300 = vsel %vm5236, %v5012, %v5268
        %v5301 = vsel %vm5237, %v5013, %v5269
        %v5302 = vsel %vm5238, %v5014, %v5270
        %v5303 = vsel %vm5239, %v5015, %v5271
        %v5304 = vsel %vm5240, %v5016, %v5272
        %v5305 = vsel %vm5241, %v5017, %v5273
        %v5306 = vsel %vm5242, %v5018, %v5274
        %5339 = vrot.lane.b32.xlu0 %v5148, 64
        %v5340 = vpop.permute.xlu0 %5339
        %5341 = vrot.lane.b32.xlu0 %v5150, 64
        %v5342 = vpop.permute.xlu0 %5341
        %5343 = vrot.lane.b32.xlu0 %v5152, 64
        %v5344 = vpop.permute.xlu0 %5343
        %5345 = vrot.lane.b32.xlu0 %v5154, 64
        %v5346 = vpop.permute.xlu0 %5345
        %5347 = vrot.lane.b32.xlu0 %v5156, 64
        %v5348 = vpop.permute.xlu0 %5347
        %5349 = vrot.lane.b32.xlu0 %v5158, 64
        %v5350 = vpop.permute.xlu0 %5349
        %5351 = vrot.lane.b32.xlu0 %v5160, 64
        %v5352 = vpop.permute.xlu0 %5351
        %5353 = vrot.lane.b32.xlu0 %v5162, 64
        %v5354 = vpop.permute.xlu0 %5353
        %5355 = vrot.lane.b32.xlu0 %v5164, 64
        %v5356 = vpop.permute.xlu0 %5355
        %5357 = vrot.lane.b32.xlu0 %v5166, 64
        %v5358 = vpop.permute.xlu0 %5357
        %5359 = vrot.lane.b32.xlu0 %v5168, 64
        %v5360 = vpop.permute.xlu0 %5359
        %5361 = vrot.lane.b32.xlu0 %v5170, 64
        %v5362 = vpop.permute.xlu0 %5361
        %5363 = vrot.lane.b32.xlu0 %v5172, 64
        %v5364 = vpop.permute.xlu0 %5363
        %5365 = vrot.lane.b32.xlu0 %v5174, 64
        %v5366 = vpop.permute.xlu0 %5365
        %5367 = vrot.lane.b32.xlu0 %v5176, 64
        %v5368 = vpop.permute.xlu0 %5367
        %5369 = vrot.lane.b32.xlu0 %v5178, 64
        %v5370 = vpop.permute.xlu0 %5369
        %5371 = vrot.lane.b32.xlu0 %v5180, 64
        %v5372 = vpop.permute.xlu0 %5371
        %5373 = vrot.lane.b32.xlu0 %v5182, 64
        %v5374 = vpop.permute.xlu0 %5373
        %5375 = vrot.lane.b32.xlu0 %v5184, 64
        %v5376 = vpop.permute.xlu0 %5375
        %5377 = vrot.lane.b32.xlu0 %v5186, 64
        %v5378 = vpop.permute.xlu0 %5377
        %5379 = vrot.lane.b32.xlu0 %v5188, 64
        %v5380 = vpop.permute.xlu0 %5379
        %5381 = vrot.lane.b32.xlu0 %v5190, 64
        %v5382 = vpop.permute.xlu0 %5381
        %5383 = vrot.lane.b32.xlu0 %v5192, 64
        %v5384 = vpop.permute.xlu0 %5383
        %5385 = vrot.lane.b32.xlu0 %v5194, 64
        %v5386 = vpop.permute.xlu0 %5385
        %5387 = vrot.lane.b32.xlu0 %v5196, 64
        %v5388 = vpop.permute.xlu0 %5387
        %5389 = vrot.lane.b32.xlu0 %v5198, 64
        %v5390 = vpop.permute.xlu0 %5389
        %5391 = vrot.lane.b32.xlu0 %v5200, 64
        %v5392 = vpop.permute.xlu0 %5391
        %5393 = vrot.lane.b32.xlu0 %v5202, 64
        %v5394 = vpop.permute.xlu0 %5393
        %5395 = vrot.lane.b32.xlu0 %v5204, 64
        %v5396 = vpop.permute.xlu0 %5395
        %5397 = vrot.lane.b32.xlu0 %v5206, 64
        %v5398 = vpop.permute.xlu0 %5397
        %5399 = vrot.lane.b32.xlu0 %v5208, 64
        %v5400 = vpop.permute.xlu0 %5399
        %5401 = vrot.lane.b32.xlu0 %v5210, 64
        %v5402 = vpop.permute.xlu0 %5401
        %v5435 = vmul.f32 %v5275, %v5340
        %v5436 = vmul.f32 %v5276, %v5342
        %v5437 = vmul.f32 %v5277, %v5344
        %v5438 = vmul.f32 %v5278, %v5346
        %v5439 = vmul.f32 %v5279, %v5348
        %v5440 = vmul.f32 %v5280, %v5350
        %v5441 = vmul.f32 %v5281, %v5352
        %v5442 = vmul.f32 %v5282, %v5354
        %v5443 = vmul.f32 %v5283, %v5356
        %v5444 = vmul.f32 %v5284, %v5358
        %v5445 = vmul.f32 %v5285, %v5360
        %v5446 = vmul.f32 %v5286, %v5362
        %v5447 = vmul.f32 %v5287, %v5364
        %v5448 = vmul.f32 %v5288, %v5366
        %v5449 = vmul.f32 %v5289, %v5368
        %v5450 = vmul.f32 %v5290, %v5370
        %v5451 = vmul.f32 %v5291, %v5372
        %v5452 = vmul.f32 %v5292, %v5374
        %v5453 = vmul.f32 %v5293, %v5376
        %v5454 = vmul.f32 %v5294, %v5378
        %v5455 = vmul.f32 %v5295, %v5380
        %v5456 = vmul.f32 %v5296, %v5382
        %v5457 = vmul.f32 %v5297, %v5384
        %v5458 = vmul.f32 %v5298, %v5386
        %v5459 = vmul.f32 %v5299, %v5388
        %v5460 = vmul.f32 %v5300, %v5390
        %v5461 = vmul.f32 %v5301, %v5392
        %v5462 = vmul.f32 %v5302, %v5394
        %v5463 = vmul.f32 %v5303, %v5396
        %v5464 = vmul.f32 %v5304, %v5398
        %v5465 = vmul.f32 %v5305, %v5400
        %v5466 = vmul.f32 %v5306, %v5402
        %vm5467 = vcmask 523264
        %5468 = vst.msk [vmem:[%s163] sm:$0xff] %vm5467, %v5435
        %5469 = vst.msk [vmem:[%s163 + $0x8] sm:$0xff] %vm5467, %v5436
        %5470 = vst.msk [vmem:[%s163 + $0x10] sm:$0xff] %vm5467, %v5437
        %5471 = vst.msk [vmem:[%s163 + $0x18] sm:$0xff] %vm5467, %v5438
        %5472 = vst.msk [vmem:[%s163 + $0x20] sm:$0xff] %vm5467, %v5439
        %5473 = vst.msk [vmem:[%s163 + $0x28] sm:$0xff] %vm5467, %v5440
        %5474 = vst.msk [vmem:[%s163 + $0x30] sm:$0xff] %vm5467, %v5441
        %5475 = vst.msk [vmem:[%s163 + $0x38] sm:$0xff] %vm5467, %v5442
        %5476 = vst.msk [vmem:[%s163 + $0x40] sm:$0xff] %vm5467, %v5443
        %5477 = vst.msk [vmem:[%s163 + $0x48] sm:$0xff] %vm5467, %v5444
        %5478 = vst.msk [vmem:[%s163 + $0x50] sm:$0xff] %vm5467, %v5445
        %5479 = vst.msk [vmem:[%s163 + $0x58] sm:$0xff] %vm5467, %v5446
        %5480 = vst.msk [vmem:[%s163 + $0x60] sm:$0xff] %vm5467, %v5447
        %5481 = vst.msk [vmem:[%s163 + $0x68] sm:$0xff] %vm5467, %v5448
        %5482 = vst.msk [vmem:[%s163 + $0x70] sm:$0xff] %vm5467, %v5449
        %5483 = vst.msk [vmem:[%s163 + $0x78] sm:$0xff] %vm5467, %v5450
        %5484 = vst.msk [vmem:[%s163 + $0x80] sm:$0xff] %vm5467, %v5451
        %5485 = vst.msk [vmem:[%s163 + $0x88] sm:$0xff] %vm5467, %v5452
        %5486 = vst.msk [vmem:[%s163 + $0x90] sm:$0xff] %vm5467, %v5453
        %5487 = vst.msk [vmem:[%s163 + $0x98] sm:$0xff] %vm5467, %v5454
        %5488 = vst.msk [vmem:[%s163 + $0xa0] sm:$0xff] %vm5467, %v5455
        %5489 = vst.msk [vmem:[%s163 + $0xa8] sm:$0xff] %vm5467, %v5456
        %5490 = vst.msk [vmem:[%s163 + $0xb0] sm:$0xff] %vm5467, %v5457
        %5491 = vst.msk [vmem:[%s163 + $0xb8] sm:$0xff] %vm5467, %v5458
        %5492 = vst.msk [vmem:[%s163 + $0xc0] sm:$0xff] %vm5467, %v5459
        %5493 = vst.msk [vmem:[%s163 + $0xc8] sm:$0xff] %vm5467, %v5460
        %5494 = vst.msk [vmem:[%s163 + $0xd0] sm:$0xff] %vm5467, %v5461
        %5495 = vst.msk [vmem:[%s163 + $0xd8] sm:$0xff] %vm5467, %v5462
        %5496 = vst.msk [vmem:[%s163 + $0xe0] sm:$0xff] %vm5467, %v5463
        %5497 = vst.msk [vmem:[%s163 + $0xe8] sm:$0xff] %vm5467, %v5464
        %5498 = vst.msk [vmem:[%s163 + $0xf0] sm:$0xff] %vm5467, %v5465
        %5499 = vst.msk [vmem:[%s163 + $0xf8] sm:$0xff] %vm5467, %v5466
        %s5500 = sand.u32 %s93, 1
        %s5501 = scalar_lea.sflag [#allocation4], %s5500
        %s5502 = sand.u32 %s93, 1
        %s5503 = smul.addr %s5502, 256
        %s5504 = scalar_lea.vmem [#allocation3], %s5503
        // Predicated region
        $region33: #{_lambda_.1} parent=31 // pred_check
          %p5505 = pneg %p103
        $region34: #{_lambda_.1} parent=31 // pred_check_branch
          %5507 = sbr.rel (%p5505) target = $region36
        $region35: #{_lambda_.1} parent=31 // pred_region
          %s5509 = ssub.s32 4096, 4096
          %5510 = vsyncadd %s5501, %s5509
          %s5511 = smul.addr %s17, 32
          %s5512 = smul.addr %s5511, 128
          %s5513 = scalar_lea.hbm %s3, %s5512
          %s5514 = sshll.u32 %s5504, 4
          %s5515 = int_to_ptr.vmem [resolvable:$true] %s5514
          %5520 = dma.vmem_to_hbm [thread:$0]  %s5515, 4096, %s5513, %s5501, 128, 128, 8
        $region36: #{_lambda_.1} parent=31 // pred_fallthru
          _
      $region32: #{_lambda_.1} parent=5 // pred_fallthru
        _
      %p5521 = scmp.le.s32.totalorder 2, %s12
      // Predicated region
      $region37: #{_lambda_.1} parent=5 // pred_check
        %p5522 = pneg %p5521
      $region38: #{_lambda_.1} parent=5 // pred_check_branch
        %5524 = sbr.rel (%p5522) target = $region40
      $region39: #{_lambda_.1} parent=5 // pred_region
        %s5525 = ssub.s32 %s12, 2
        // Predicated region
        $region41: #{_lambda_.1} parent=39 // pred_check
          %p5526 = pneg %p109
        $region42: #{_lambda_.1} parent=39 // pred_check_branch
          %5528 = sbr.rel (%p5526) target = $region44
        $region43: #{_lambda_.1} parent=39 // pred_region
          %s5529 = sand.u32 %s94, 1
          %s5530 = scalar_lea.sflag [#allocation4], %s5529
          %s5531 = sand.u32 %s94, 1
          %s5532 = smul.addr %s5531, 256
          %s5533 = scalar_lea.vmem [#allocation3], %s5532
          %5534 = dma.done %s5530, 4096
        $region44: #{_lambda_.1} parent=39 // pred_fallthru
          _
      $region40: #{_lambda_.1} parent=5 // pred_fallthru
        _
    $region6: #{_lambda_.1} parent=1 // loop_footer
      %s16 = sadd.s32 1, %s12
    $region7: #{_lambda_.1} parent=1 // loop_footer_branch
      %11 = sbr.rel target = $region3
    $region8: #{_lambda_.1} parent=1 // loop_exit
      _
    %5535 = vsyncpa [#allocation4], 1
    %s5536 = scalar_lea.sflag [#allocation4], 1
    %5537 = vsyncpa %s5536, 1

</llo_original>
